<compile_context>
chip_gen: v5e
topology: v5e:2x2
jax: 0.10.0
libtpu: 0.0.40
codegen_flags: <defaults>
</compile_context>

<pallas_src>
import functools
import numpy as np
import jax
import jax.numpy as jnp
from jax import lax
from jax.experimental import pallas as pl
from jax.experimental.pallas import tpu as pltpu

IN_CH = 4          # in_ch
HID = 16           # all conv widths
L_IN = 94          # MaxPool1d(2) -> 47, matching nn.Linear(47, 8)
L_POOL = L_IN // 2
FC_OUT = 8
SLOT = 128         # per-sample lane slot (L_IN zero-padded to one 128-lane tile)
B_TILE = 32        # samples per grid step (concatenated along the lane axis)


def _cnn_kernel(x_ref, w1_ref, w2_ref, w3_ref, w4_ref, b_ref,
                wsel_ref, fcb_ref, mval_ref, meven_ref, out_ref, vbuf_ref):
    f32 = jnp.float32
    cdt = x_ref.dtype
    nlane = x_ref.shape[-1]
    b_tile = out_ref.shape[0]

    m_valid = mval_ref[...]        # (1, nlane): lanes 0..93 of every slot
    m_even = meven_ref[...]        # (1, nlane): even lanes 0..92 of every slot

    def conv(h, w_ref, step, bias):
        # PyTorch Conv1d taps: k=0 -> h[l-step], k=1 -> h[l], k=2 -> h[l+step].
        # Rolls wrap into the zeroed pad lanes of the neighbouring slot, which
        # reproduces Conv1d's zero padding exactly.  Three accumulating K<=16
        # dots (no (3C, nlane) concatenate) keep the live vreg set small.
        y = jnp.dot(w_ref[1], h, preferred_element_type=f32)
        y += jnp.dot(w_ref[0], pltpu.roll(h, step, axis=1),
                     preferred_element_type=f32)
        y += jnp.dot(w_ref[2], pltpu.roll(h, nlane - step, axis=1),
                     preferred_element_type=f32)
        return y + bias                            # (C_out, 1) bcast over lanes

    x = x_ref[...]                                                     # (4, nlane)
    h = jnp.maximum(conv(x, w1_ref, 1, b_ref[0]), 0.0).astype(cdt) * m_valid
    h = conv(h, w2_ref, 1, b_ref[1]).astype(cdt)                       # conv_2
    # MaxPool1d(2), kept dilated: pooled value j stays on lane 2*j, rest zeroed
    h = jnp.maximum(h, pltpu.roll(h, nlane - 1, axis=1))
    h = jnp.maximum(h, 0.0) * m_even                                   # relu
    h = jnp.maximum(conv(h, w3_ref, 2, b_ref[2]), 0.0).astype(cdt) * m_even
    h = jnp.maximum(conv(h, w4_ref, 2, b_ref[3]), 0.0).astype(cdt)

    # channel sum as an MXU epilogue (the 1/16 mean is folded into wsel)
    ones = jnp.full((1, HID), 1.0, cdt)
    v = jnp.dot(ones, h, preferred_element_type=f32)                   # (1, nlane)

    # Per-slot relayout (1, b_tile*128) -> (b_tile, 128) through a small VMEM
    # scratch (explicit so it lowers robustly), then ONE shared (128, 8) FC dot.
    # wsel has zero rows on odd/pad lanes, so conv_4's unmasked garbage there
    # never reaches the output.
    for s in range(b_tile):
        vbuf_ref[pl.ds(s, 1), :] = v[:, s * SLOT:(s + 1) * SLOT]
    y = jnp.dot(vbuf_ref[...], wsel_ref[...], preferred_element_type=f32)
    out_ref[...] = (y + fcb_ref[...]).astype(out_ref.dtype)            # (b_tile, 8)


def _round_up(n, m):
    return -(-n // m) * m


@functools.partial(jax.jit, static_argnames=("b_tile", "compute_dtype"))
def cnn_forward(x, params, b_tile=B_TILE, compute_dtype=jnp.float32):
    """Batched forward of cnn_network. compute_dtype=bf16 recommended on v6e/v7x."""
    w1, b1, w2, b2, w3, b3, w4, b4, fcw, fcb = params
    cdt = compute_dtype
    B = x.shape[0]

    # clamp the batch tile for tiny batches; keep it a sublane multiple.
    # (on v7x pick b_tile so n_steps >= 2 when the batch is large, so both
    #  TensorCores of the chip get grid steps.)
    b_tile = _round_up(max(8, min(int(b_tile), _round_up(B, 8))), 8)
    n_steps = -(-B // b_tile)
    b_pad = n_steps * b_tile
    nlane = b_tile * SLOT

    # ---- input layout: one zero-padded 128-lane slot per sample, samples
    #      concatenated along lanes (transpose + pad only; no channel pad) ----
    x_t = jnp.transpose(x.astype(cdt), (1, 0, 2))              # (4, B, 94)
    x_t = jnp.pad(x_t, ((0, 0), (0, b_pad - B), (0, SLOT - L_IN)))
    x2d = x_t.reshape(IN_CH, b_pad * SLOT)

    def taps(w):   # (C_out, C_in, 3) -> (3, C_out, C_in), tap-major
        return jnp.transpose(w, (2, 0, 1)).astype(cdt)

    w1f, w2f, w3f, w4f = taps(w1), taps(w2), taps(w3), taps(w4)
    b_all = jnp.stack([b1, b2, b3, b4]).astype(jnp.float32).reshape(4, HID, 1)

    # shared per-slot FC: row 2*j carries fcw[:, j] / 16 (channel mean folded in)
    wsel = jnp.zeros((SLOT, FC_OUT), jnp.float32)
    wsel = wsel.at[0:2 * L_POOL:2, :].set(fcw.astype(jnp.float32).T / HID)
    fcb2 = fcb.astype(jnp.float32).reshape(1, FC_OUT)

    lane = jnp.arange(SLOT)
    m_valid = jnp.tile(lane < L_IN, (b_tile,)).astype(cdt).reshape(1, nlane)
    m_even = jnp.tile((lane < L_IN) & (lane % 2 == 0),
                      (b_tile,)).astype(cdt).reshape(1, nlane)

    consts = (w1f, w2f, w3f, w4f, b_all, wsel, fcb2, m_valid, m_even)

    in_specs = [pl.BlockSpec((IN_CH, nlane), lambda b: (0, b))]
    for c in consts:
        nd = c.ndim
        in_specs.append(pl.BlockSpec(c.shape, lambda b, _nd=nd: (0,) * _nd))

    out = pl.pallas_call(
        _cnn_kernel,
        out_shape=jax.ShapeDtypeStruct((b_pad, FC_OUT), jnp.float32),
        grid_spec=pltpu.PrefetchScalarGridSpec(
            num_scalar_prefetch=0,
            grid=(n_steps,),
            in_specs=in_specs,
            out_specs=pl.BlockSpec((b_tile, FC_OUT), lambda b: (b, 0)),
            scratch_shapes=[pltpu.VMEM((b_tile, SLOT), jnp.float32)],
        ),
        compiler_params=pltpu.CompilerParams(
            dimension_semantics=("parallel",),
            vmem_limit_bytes=32 * 1024 * 1024),
    )(x2d, *consts)
    return out[:B]


def reference(x, params):
    """Pure-JAX reference of the PyTorch forward."""
    w1, b1, w2, b2, w3, b3, w4, b4, fcw, fcb = params

    def conv1d(h, w, b):
        y = lax.conv_general_dilated(h, w, window_strides=(1,),
                                     padding=((1, 1),),
                                     dimension_numbers=('NCH', 'OIH', 'NCH'))
        return y + b[None, :, None]

    h = jax.nn.relu(conv1d(x, w1, b1))
    h = conv1d(h, w2, b2)
    B, C, L = h.shape
    h = h[:, :, :(L // 2) * 2].reshape(B, C, L // 2, 2).max(axis=-1)
    h = jax.nn.relu(h)
    h = jax.nn.relu(conv1d(h, w3, b3))
    h = jax.nn.relu(conv1d(h, w4, b4))
    v = h.mean(axis=1)                                       # mean over channels
    return v @ fcw.T + fcb[None, :]


def init_params(key):
    ks = jax.random.split(key, 10)

    def u(k, shape, fan_in):
        bound = 1.0 / np.sqrt(fan_in)
        return jax.random.uniform(k, shape, jnp.float32, -bound, bound)

    w1 = u(ks[0], (HID, IN_CH, 3), IN_CH * 3); b1 = u(ks[1], (HID,), IN_CH * 3)
    w2 = u(ks[2], (HID, HID, 3), HID * 3);     b2 = u(ks[3], (HID,), HID * 3)
    w3 = u(ks[4], (HID, HID, 3), HID * 3);     b3 = u(ks[5], (HID,), HID * 3)
    w4 = u(ks[6], (HID, HID, 3), HID * 3);     b4 = u(ks[7], (HID,), HID * 3)
    fcw = u(ks[8], (FC_OUT, L_POOL), L_POOL);  fcb = u(ks[9], (FC_OUT,), L_POOL)
    return (w1, b1, w2, b2, w3, b3, w4, b4, fcw, fcb)


if __name__ == "__main__":
    key = jax.random.PRNGKey(0)
    kx, kp = jax.random.split(key)
    x = jax.random.normal(kx, (2, IN_CH, L_IN), jnp.float32)
    params = init_params(kp)

    # f32 path, small batch
    out = cnn_forward(x, params)
    jax.block_until_ready(out)
    assert out.shape == (2, FC_OUT)
    ref = reference(x, params)
    np.testing.assert_allclose(np.asarray(out), np.asarray(ref),
                               rtol=1e-4, atol=1e-4)

    # multi-step batch (B > b_tile) exercises slot-boundary masking + the grid
    xb = jax.random.normal(jax.random.PRNGKey(1), (37, IN_CH, L_IN), jnp.float32)
    outb = cnn_forward(xb, params, b_tile=16)
    jax.block_until_ready(outb)
    np.testing.assert_allclose(np.asarray(outb), np.asarray(reference(xb, params)),
                               rtol=1e-4, atol=1e-4)

    # bf16 activation path (perf option for v6e/v7x); dots still accumulate f32
    outbf = cnn_forward(x, params, compute_dtype=jnp.bfloat16)
    jax.block_until_ready(outbf)
    np.testing.assert_allclose(np.asarray(outbf), np.asarray(ref),
                               rtol=3e-2, atol=3e-2)

    print("KERNEL_OK")
</pallas_src>

<mosaic_0001>
module attributes {stable_mosaic.version = 11 : i64} {
  func.func @_cnn_kernel(%arg0: i32, %arg1: memref<4x1024xf32, #tpu.memory_space<vmem>>, %arg2: memref<3x16x4xf32, #tpu.memory_space<vmem>>, %arg3: memref<3x16x16xf32, #tpu.memory_space<vmem>>, %arg4: memref<3x16x16xf32, #tpu.memory_space<vmem>>, %arg5: memref<3x16x16xf32, #tpu.memory_space<vmem>>, %arg6: memref<4x16x1xf32, #tpu.memory_space<vmem>>, %arg7: memref<128x8xf32, #tpu.memory_space<vmem>>, %arg8: memref<1x8xf32, #tpu.memory_space<vmem>>, %arg9: memref<1x1024xf32, #tpu.memory_space<vmem>>, %arg10: memref<1x1024xf32, #tpu.memory_space<vmem>>, %arg11: memref<8x8xf32, #tpu.memory_space<vmem>>, %arg12: memref<8x128xf32, #tpu.memory_space<vmem>>) attributes {dimension_semantics = [#tpu.dimension_semantics<parallel>], iteration_bounds = array<i64: 1>, scalar_prefetch = 0 : i64, scratch_operands = 1 : i64, tpu.core_type = #tpu.core_type<tc>, window_params = [{transform_indices = @transform_0, window_bounds = array<i64: 4, 1024>}, {pipeline_mode = #tpu.pipeline_mode<synchronous>, transform_indices = @transform_1, window_bounds = array<i64: 3, 16, 4>}, {pipeline_mode = #tpu.pipeline_mode<synchronous>, transform_indices = @transform_2, window_bounds = array<i64: 3, 16, 16>}, {pipeline_mode = #tpu.pipeline_mode<synchronous>, transform_indices = @transform_3, window_bounds = array<i64: 3, 16, 16>}, {pipeline_mode = #tpu.pipeline_mode<synchronous>, transform_indices = @transform_4, window_bounds = array<i64: 3, 16, 16>}, {pipeline_mode = #tpu.pipeline_mode<synchronous>, transform_indices = @transform_5, window_bounds = array<i64: 4, 16, 1>}, {pipeline_mode = #tpu.pipeline_mode<synchronous>, transform_indices = @transform_6, window_bounds = array<i64: 128, 8>}, {pipeline_mode = #tpu.pipeline_mode<synchronous>, transform_indices = @transform_7, window_bounds = array<i64: 1, 8>}, {pipeline_mode = #tpu.pipeline_mode<synchronous>, transform_indices = @transform_8, window_bounds = array<i64: 1, 1024>}, {pipeline_mode = #tpu.pipeline_mode<synchronous>, transform_indices = @transform_9, window_bounds = array<i64: 1, 1024>}, {transform_indices = @transform_10, window_bounds = array<i64: 8, 8>}]} {
    %c0 = arith.constant 0 : index
    %c0_0 = arith.constant 0 : index
    %0 = vector.load %arg9[%c0, %c0_0] : memref<1x1024xf32, #tpu.memory_space<vmem>>, vector<1x1024xf32>
    %c0_1 = arith.constant 0 : index
    %c0_2 = arith.constant 0 : index
    %1 = vector.load %arg10[%c0_1, %c0_2] : memref<1x1024xf32, #tpu.memory_space<vmem>>, vector<1x1024xf32>
    %c0_3 = arith.constant 0 : index
    %c0_4 = arith.constant 0 : index
    %2 = vector.load %arg1[%c0_3, %c0_4] : memref<4x1024xf32, #tpu.memory_space<vmem>>, vector<4x1024xf32>
    %c0_5 = arith.constant 0 : index
    %c0_6 = arith.constant 0 : index
    %c0_7 = arith.constant 0 : index
    %3 = vector.load %arg6[%c0_5, %c0_6, %c0_7] : memref<4x16x1xf32, #tpu.memory_space<vmem>>, vector<1x16x1xf32>
    %4 = vector.shape_cast %3 : vector<1x16x1xf32> to vector<16x1xf32>
    %c1 = arith.constant 1 : index
    %c0_8 = arith.constant 0 : index
    %c0_9 = arith.constant 0 : index
    %5 = vector.load %arg2[%c1, %c0_8, %c0_9] : memref<3x16x4xf32, #tpu.memory_space<vmem>>, vector<1x16x4xf32>
    %6 = vector.shape_cast %5 : vector<1x16x4xf32> to vector<16x4xf32>
    %cst = arith.constant dense<0.000000e+00> : vector<16x1024xf32>
    %7 = tpu.matmul %6, %2, %cst {dimension_numbers = #tpu.dot_dimension_numbers<[1], [0], [0], [1], [0, 0, 1, 1], [], []>} : vector<16x4xf32>, vector<4x1024xf32>, vector<16x1024xf32> -> vector<16x1024xf32>
    %c0_10 = arith.constant 0 : index
    %c0_11 = arith.constant 0 : index
    %c0_12 = arith.constant 0 : index
    %8 = vector.load %arg2[%c0_10, %c0_11, %c0_12] : memref<3x16x4xf32, #tpu.memory_space<vmem>>, vector<1x16x4xf32>
    %9 = vector.shape_cast %8 : vector<1x16x4xf32> to vector<16x4xf32>
    %c1_i32 = arith.constant 1 : i32
    %10 = tpu.dynamic_rotate %2 by %c1_i32 dim 1 : vector<4x1024xf32>, i32 -> vector<4x1024xf32>
    %cst_13 = arith.constant dense<0.000000e+00> : vector<16x1024xf32>
    %11 = tpu.matmul %9, %10, %cst_13 {dimension_numbers = #tpu.dot_dimension_numbers<[1], [0], [0], [1], [0, 0, 1, 1], [], []>} : vector<16x4xf32>, vector<4x1024xf32>, vector<16x1024xf32> -> vector<16x1024xf32>
    %12 = arith.addf %7, %11 : vector<16x1024xf32>
    %c2 = arith.constant 2 : index
    %c0_14 = arith.constant 0 : index
    %c0_15 = arith.constant 0 : index
    %13 = vector.load %arg2[%c2, %c0_14, %c0_15] : memref<3x16x4xf32, #tpu.memory_space<vmem>>, vector<1x16x4xf32>
    %14 = vector.shape_cast %13 : vector<1x16x4xf32> to vector<16x4xf32>
    %c1023_i32 = arith.constant 1023 : i32
    %15 = tpu.dynamic_rotate %2 by %c1023_i32 dim 1 : vector<4x1024xf32>, i32 -> vector<4x1024xf32>
    %cst_16 = arith.constant dense<0.000000e+00> : vector<16x1024xf32>
    %16 = tpu.matmul %14, %15, %cst_16 {dimension_numbers = #tpu.dot_dimension_numbers<[1], [0], [0], [1], [0, 0, 1, 1], [], []>} : vector<16x4xf32>, vector<4x1024xf32>, vector<16x1024xf32> -> vector<16x1024xf32>
    %17 = arith.addf %12, %16 : vector<16x1024xf32>
    %18 = vector.broadcast %4 : vector<16x1xf32> to vector<16x1024xf32>
    %19 = arith.addf %17, %18 : vector<16x1024xf32>
    %cst_17 = arith.constant 0.000000e+00 : f32
    %20 = vector.broadcast %cst_17 : f32 to vector<16x1024xf32>
    %21 = arith.maximumf %19, %20 : vector<16x1024xf32>
    %22 = vector.broadcast %0 : vector<1x1024xf32> to vector<16x1024xf32>
    %23 = arith.mulf %21, %22 : vector<16x1024xf32>
    %c1_18 = arith.constant 1 : index
    %c0_19 = arith.constant 0 : index
    %c0_20 = arith.constant 0 : index
    %24 = vector.load %arg6[%c1_18, %c0_19, %c0_20] : memref<4x16x1xf32, #tpu.memory_space<vmem>>, vector<1x16x1xf32>
    %25 = vector.shape_cast %24 : vector<1x16x1xf32> to vector<16x1xf32>
    %c1_21 = arith.constant 1 : index
    %c0_22 = arith.constant 0 : index
    %c0_23 = arith.constant 0 : index
    %26 = vector.load %arg3[%c1_21, %c0_22, %c0_23] : memref<3x16x16xf32, #tpu.memory_space<vmem>>, vector<1x16x16xf32>
    %27 = vector.shape_cast %26 : vector<1x16x16xf32> to vector<16x16xf32>
    %cst_24 = arith.constant dense<0.000000e+00> : vector<16x1024xf32>
    %28 = tpu.matmul %27, %23, %cst_24 {dimension_numbers = #tpu.dot_dimension_numbers<[1], [0], [0], [1], [0, 0, 1, 1], [], []>} : vector<16x16xf32>, vector<16x1024xf32>, vector<16x1024xf32> -> vector<16x1024xf32>
    %c0_25 = arith.constant 0 : index
    %c0_26 = arith.constant 0 : index
    %c0_27 = arith.constant 0 : index
    %29 = vector.load %arg3[%c0_25, %c0_26, %c0_27] : memref<3x16x16xf32, #tpu.memory_space<vmem>>, vector<1x16x16xf32>
    %30 = vector.shape_cast %29 : vector<1x16x16xf32> to vector<16x16xf32>
    %c1_i32_28 = arith.constant 1 : i32
    %31 = tpu.dynamic_rotate %23 by %c1_i32_28 dim 1 : vector<16x1024xf32>, i32 -> vector<16x1024xf32>
    %cst_29 = arith.constant dense<0.000000e+00> : vector<16x1024xf32>
    %32 = tpu.matmul %30, %31, %cst_29 {dimension_numbers = #tpu.dot_dimension_numbers<[1], [0], [0], [1], [0, 0, 1, 1], [], []>} : vector<16x16xf32>, vector<16x1024xf32>, vector<16x1024xf32> -> vector<16x1024xf32>
    %33 = arith.addf %28, %32 : vector<16x1024xf32>
    %c2_30 = arith.constant 2 : index
    %c0_31 = arith.constant 0 : index
    %c0_32 = arith.constant 0 : index
    %34 = vector.load %arg3[%c2_30, %c0_31, %c0_32] : memref<3x16x16xf32, #tpu.memory_space<vmem>>, vector<1x16x16xf32>
    %35 = vector.shape_cast %34 : vector<1x16x16xf32> to vector<16x16xf32>
    %c1023_i32_33 = arith.constant 1023 : i32
    %36 = tpu.dynamic_rotate %23 by %c1023_i32_33 dim 1 : vector<16x1024xf32>, i32 -> vector<16x1024xf32>
    %cst_34 = arith.constant dense<0.000000e+00> : vector<16x1024xf32>
    %37 = tpu.matmul %35, %36, %cst_34 {dimension_numbers = #tpu.dot_dimension_numbers<[1], [0], [0], [1], [0, 0, 1, 1], [], []>} : vector<16x16xf32>, vector<16x1024xf32>, vector<16x1024xf32> -> vector<16x1024xf32>
    %38 = arith.addf %33, %37 : vector<16x1024xf32>
    %39 = vector.broadcast %25 : vector<16x1xf32> to vector<16x1024xf32>
    %40 = arith.addf %38, %39 : vector<16x1024xf32>
    %c1023_i32_35 = arith.constant 1023 : i32
    %41 = tpu.dynamic_rotate %40 by %c1023_i32_35 dim 1 : vector<16x1024xf32>, i32 -> vector<16x1024xf32>
    %42 = arith.maximumf %40, %41 : vector<16x1024xf32>
    %cst_36 = arith.constant 0.000000e+00 : f32
    %43 = vector.broadcast %cst_36 : f32 to vector<16x1024xf32>
    %44 = arith.maximumf %42, %43 : vector<16x1024xf32>
    %45 = vector.broadcast %1 : vector<1x1024xf32> to vector<16x1024xf32>
    %46 = arith.mulf %44, %45 : vector<16x1024xf32>
    %c2_37 = arith.constant 2 : index
    %c0_38 = arith.constant 0 : index
    %c0_39 = arith.constant 0 : index
    %47 = vector.load %arg6[%c2_37, %c0_38, %c0_39] : memref<4x16x1xf32, #tpu.memory_space<vmem>>, vector<1x16x1xf32>
    %48 = vector.shape_cast %47 : vector<1x16x1xf32> to vector<16x1xf32>
    %c1_40 = arith.constant 1 : index
    %c0_41 = arith.constant 0 : index
    %c0_42 = arith.constant 0 : index
    %49 = vector.load %arg4[%c1_40, %c0_41, %c0_42] : memref<3x16x16xf32, #tpu.memory_space<vmem>>, vector<1x16x16xf32>
    %50 = vector.shape_cast %49 : vector<1x16x16xf32> to vector<16x16xf32>
    %cst_43 = arith.constant dense<0.000000e+00> : vector<16x1024xf32>
    %51 = tpu.matmul %50, %46, %cst_43 {dimension_numbers = #tpu.dot_dimension_numbers<[1], [0], [0], [1], [0, 0, 1, 1], [], []>} : vector<16x16xf32>, vector<16x1024xf32>, vector<16x1024xf32> -> vector<16x1024xf32>
    %c0_44 = arith.constant 0 : index
    %c0_45 = arith.constant 0 : index
    %c0_46 = arith.constant 0 : index
    %52 = vector.load %arg4[%c0_44, %c0_45, %c0_46] : memref<3x16x16xf32, #tpu.memory_space<vmem>>, vector<1x16x16xf32>
    %53 = vector.shape_cast %52 : vector<1x16x16xf32> to vector<16x16xf32>
    %c2_i32 = arith.constant 2 : i32
    %54 = tpu.dynamic_rotate %46 by %c2_i32 dim 1 : vector<16x1024xf32>, i32 -> vector<16x1024xf32>
    %cst_47 = arith.constant dense<0.000000e+00> : vector<16x1024xf32>
    %55 = tpu.matmul %53, %54, %cst_47 {dimension_numbers = #tpu.dot_dimension_numbers<[1], [0], [0], [1], [0, 0, 1, 1], [], []>} : vector<16x16xf32>, vector<16x1024xf32>, vector<16x1024xf32> -> vector<16x1024xf32>
    %56 = arith.addf %51, %55 : vector<16x1024xf32>
    %c2_48 = arith.constant 2 : index
    %c0_49 = arith.constant 0 : index
    %c0_50 = arith.constant 0 : index
    %57 = vector.load %arg4[%c2_48, %c0_49, %c0_50] : memref<3x16x16xf32, #tpu.memory_space<vmem>>, vector<1x16x16xf32>
    %58 = vector.shape_cast %57 : vector<1x16x16xf32> to vector<16x16xf32>
    %c1022_i32 = arith.constant 1022 : i32
    %59 = tpu.dynamic_rotate %46 by %c1022_i32 dim 1 : vector<16x1024xf32>, i32 -> vector<16x1024xf32>
    %cst_51 = arith.constant dense<0.000000e+00> : vector<16x1024xf32>
    %60 = tpu.matmul %58, %59, %cst_51 {dimension_numbers = #tpu.dot_dimension_numbers<[1], [0], [0], [1], [0, 0, 1, 1], [], []>} : vector<16x16xf32>, vector<16x1024xf32>, vector<16x1024xf32> -> vector<16x1024xf32>
    %61 = arith.addf %56, %60 : vector<16x1024xf32>
    %62 = vector.broadcast %48 : vector<16x1xf32> to vector<16x1024xf32>
    %63 = arith.addf %61, %62 : vector<16x1024xf32>
    %cst_52 = arith.constant 0.000000e+00 : f32
    %64 = vector.broadcast %cst_52 : f32 to vector<16x1024xf32>
    %65 = arith.maximumf %63, %64 : vector<16x1024xf32>
    %66 = vector.broadcast %1 : vector<1x1024xf32> to vector<16x1024xf32>
    %67 = arith.mulf %65, %66 : vector<16x1024xf32>
    %c3 = arith.constant 3 : index
    %c0_53 = arith.constant 0 : index
    %c0_54 = arith.constant 0 : index
    %68 = vector.load %arg6[%c3, %c0_53, %c0_54] : memref<4x16x1xf32, #tpu.memory_space<vmem>>, vector<1x16x1xf32>
    %69 = vector.shape_cast %68 : vector<1x16x1xf32> to vector<16x1xf32>
    %c1_55 = arith.constant 1 : index
    %c0_56 = arith.constant 0 : index
    %c0_57 = arith.constant 0 : index
    %70 = vector.load %arg5[%c1_55, %c0_56, %c0_57] : memref<3x16x16xf32, #tpu.memory_space<vmem>>, vector<1x16x16xf32>
    %71 = vector.shape_cast %70 : vector<1x16x16xf32> to vector<16x16xf32>
    %cst_58 = arith.constant dense<0.000000e+00> : vector<16x1024xf32>
    %72 = tpu.matmul %71, %67, %cst_58 {dimension_numbers = #tpu.dot_dimension_numbers<[1], [0], [0], [1], [0, 0, 1, 1], [], []>} : vector<16x16xf32>, vector<16x1024xf32>, vector<16x1024xf32> -> vector<16x1024xf32>
    %c0_59 = arith.constant 0 : index
    %c0_60 = arith.constant 0 : index
    %c0_61 = arith.constant 0 : index
    %73 = vector.load %arg5[%c0_59, %c0_60, %c0_61] : memref<3x16x16xf32, #tpu.memory_space<vmem>>, vector<1x16x16xf32>
    %74 = vector.shape_cast %73 : vector<1x16x16xf32> to vector<16x16xf32>
    %c2_i32_62 = arith.constant 2 : i32
    %75 = tpu.dynamic_rotate %67 by %c2_i32_62 dim 1 : vector<16x1024xf32>, i32 -> vector<16x1024xf32>
    %cst_63 = arith.constant dense<0.000000e+00> : vector<16x1024xf32>
    %76 = tpu.matmul %74, %75, %cst_63 {dimension_numbers = #tpu.dot_dimension_numbers<[1], [0], [0], [1], [0, 0, 1, 1], [], []>} : vector<16x16xf32>, vector<16x1024xf32>, vector<16x1024xf32> -> vector<16x1024xf32>
    %77 = arith.addf %72, %76 : vector<16x1024xf32>
    %c2_64 = arith.constant 2 : index
    %c0_65 = arith.constant 0 : index
    %c0_66 = arith.constant 0 : index
    %78 = vector.load %arg5[%c2_64, %c0_65, %c0_66] : memref<3x16x16xf32, #tpu.memory_space<vmem>>, vector<1x16x16xf32>
    %79 = vector.shape_cast %78 : vector<1x16x16xf32> to vector<16x16xf32>
    %c1022_i32_67 = arith.constant 1022 : i32
    %80 = tpu.dynamic_rotate %67 by %c1022_i32_67 dim 1 : vector<16x1024xf32>, i32 -> vector<16x1024xf32>
    %cst_68 = arith.constant dense<0.000000e+00> : vector<16x1024xf32>
    %81 = tpu.matmul %79, %80, %cst_68 {dimension_numbers = #tpu.dot_dimension_numbers<[1], [0], [0], [1], [0, 0, 1, 1], [], []>} : vector<16x16xf32>, vector<16x1024xf32>, vector<16x1024xf32> -> vector<16x1024xf32>
    %82 = arith.addf %77, %81 : vector<16x1024xf32>
    %83 = vector.broadcast %69 : vector<16x1xf32> to vector<16x1024xf32>
    %84 = arith.addf %82, %83 : vector<16x1024xf32>
    %cst_69 = arith.constant 0.000000e+00 : f32
    %85 = vector.broadcast %cst_69 : f32 to vector<16x1024xf32>
    %86 = arith.maximumf %84, %85 : vector<16x1024xf32>
    %cst_70 = arith.constant 1.000000e+00 : f32
    %87 = vector.broadcast %cst_70 : f32 to vector<1x16xf32>
    %cst_71 = arith.constant dense<0.000000e+00> : vector<1x1024xf32>
    %88 = tpu.matmul %87, %86, %cst_71 {dimension_numbers = #tpu.dot_dimension_numbers<[1], [0], [0], [1], [0, 0, 1, 1], [], []>} : vector<1x16xf32>, vector<16x1024xf32>, vector<1x1024xf32> -> vector<1x1024xf32>
    %89 = vector.extract_strided_slice %88 {offsets = [0, 0], sizes = [1, 128], strides = [1, 1]} : vector<1x1024xf32> to vector<1x128xf32>
    %c0_72 = arith.constant 0 : index
    %c0_73 = arith.constant 0 : index
    %90 = vector.load %arg12[%c0_72, %c0_73] : memref<8x128xf32, #tpu.memory_space<vmem>>, vector<1x128xf32>
    tpu.vector_store %arg12[%c0_72, %c0_73], %89 {strides = array<i32>} : memref<8x128xf32, #tpu.memory_space<vmem>>, vector<1x128xf32>,
    %91 = vector.extract_strided_slice %88 {offsets = [0, 128], sizes = [1, 128], strides = [1, 1]} : vector<1x1024xf32> to vector<1x128xf32>
    %c1_74 = arith.constant 1 : index
    %c0_75 = arith.constant 0 : index
    %92 = vector.load %arg12[%c1_74, %c0_75] : memref<8x128xf32, #tpu.memory_space<vmem>>, vector<1x128xf32>
    tpu.vector_store %arg12[%c1_74, %c0_75], %91 {strides = array<i32>} : memref<8x128xf32, #tpu.memory_space<vmem>>, vector<1x128xf32>,
    %93 = vector.extract_strided_slice %88 {offsets = [0, 256], sizes = [1, 128], strides = [1, 1]} : vector<1x1024xf32> to vector<1x128xf32>
    %c2_76 = arith.constant 2 : index
    %c0_77 = arith.constant 0 : index
    %94 = vector.load %arg12[%c2_76, %c0_77] : memref<8x128xf32, #tpu.memory_space<vmem>>, vector<1x128xf32>
    tpu.vector_store %arg12[%c2_76, %c0_77], %93 {strides = array<i32>} : memref<8x128xf32, #tpu.memory_space<vmem>>, vector<1x128xf32>,
    %95 = vector.extract_strided_slice %88 {offsets = [0, 384], sizes = [1, 128], strides = [1, 1]} : vector<1x1024xf32> to vector<1x128xf32>
    %c3_78 = arith.constant 3 : index
    %c0_79 = arith.constant 0 : index
    %96 = vector.load %arg12[%c3_78, %c0_79] : memref<8x128xf32, #tpu.memory_space<vmem>>, vector<1x128xf32>
    tpu.vector_store %arg12[%c3_78, %c0_79], %95 {strides = array<i32>} : memref<8x128xf32, #tpu.memory_space<vmem>>, vector<1x128xf32>,
    %97 = vector.extract_strided_slice %88 {offsets = [0, 512], sizes = [1, 128], strides = [1, 1]} : vector<1x1024xf32> to vector<1x128xf32>
    %c4 = arith.constant 4 : index
    %c0_80 = arith.constant 0 : index
    %98 = vector.load %arg12[%c4, %c0_80] : memref<8x128xf32, #tpu.memory_space<vmem>>, vector<1x128xf32>
    tpu.vector_store %arg12[%c4, %c0_80], %97 {strides = array<i32>} : memref<8x128xf32, #tpu.memory_space<vmem>>, vector<1x128xf32>,
    %99 = vector.extract_strided_slice %88 {offsets = [0, 640], sizes = [1, 128], strides = [1, 1]} : vector<1x1024xf32> to vector<1x128xf32>
    %c5 = arith.constant 5 : index
    %c0_81 = arith.constant 0 : index
    %100 = vector.load %arg12[%c5, %c0_81] : memref<8x128xf32, #tpu.memory_space<vmem>>, vector<1x128xf32>
    tpu.vector_store %arg12[%c5, %c0_81], %99 {strides = array<i32>} : memref<8x128xf32, #tpu.memory_space<vmem>>, vector<1x128xf32>,
    %101 = vector.extract_strided_slice %88 {offsets = [0, 768], sizes = [1, 128], strides = [1, 1]} : vector<1x1024xf32> to vector<1x128xf32>
    %c6 = arith.constant 6 : index
    %c0_82 = arith.constant 0 : index
    %102 = vector.load %arg12[%c6, %c0_82] : memref<8x128xf32, #tpu.memory_space<vmem>>, vector<1x128xf32>
    tpu.vector_store %arg12[%c6, %c0_82], %101 {strides = array<i32>} : memref<8x128xf32, #tpu.memory_space<vmem>>, vector<1x128xf32>,
    %103 = vector.extract_strided_slice %88 {offsets = [0, 896], sizes = [1, 128], strides = [1, 1]} : vector<1x1024xf32> to vector<1x128xf32>
    %c7 = arith.constant 7 : index
    %c0_83 = arith.constant 0 : index
    %104 = vector.load %arg12[%c7, %c0_83] : memref<8x128xf32, #tpu.memory_space<vmem>>, vector<1x128xf32>
    tpu.vector_store %arg12[%c7, %c0_83], %103 {strides = array<i32>} : memref<8x128xf32, #tpu.memory_space<vmem>>, vector<1x128xf32>,
    %c0_84 = arith.constant 0 : index
    %c0_85 = arith.constant 0 : index
    %105 = vector.load %arg12[%c0_84, %c0_85] : memref<8x128xf32, #tpu.memory_space<vmem>>, vector<8x128xf32>
    %c0_86 = arith.constant 0 : index
    %c0_87 = arith.constant 0 : index
    %106 = vector.load %arg7[%c0_86, %c0_87] : memref<128x8xf32, #tpu.memory_space<vmem>>, vector<128x8xf32>
    %cst_88 = arith.constant dense<0.000000e+00> : vector<8x8xf32>
    %107 = tpu.matmul %105, %106, %cst_88 {dimension_numbers = #tpu.dot_dimension_numbers<[1], [0], [0], [1], [0, 0, 1, 1], [], []>} : vector<8x128xf32>, vector<128x8xf32>, vector<8x8xf32> -> vector<8x8xf32>
    %c0_89 = arith.constant 0 : index
    %c0_90 = arith.constant 0 : index
    %108 = vector.load %arg8[%c0_89, %c0_90] : memref<1x8xf32, #tpu.memory_space<vmem>>, vector<1x8xf32>
    %109 = vector.broadcast %108 : vector<1x8xf32> to vector<8x8xf32>
    %110 = arith.addf %107, %109 : vector<8x8xf32>
    %c0_91 = arith.constant 0 : index
    %c0_92 = arith.constant 0 : index
    %111 = vector.load %arg11[%c0_91, %c0_92] : memref<8x8xf32, #tpu.memory_space<vmem>>, vector<8x8xf32>
    tpu.vector_store %arg11[%c0_91, %c0_92], %110 {strides = array<i32>} : memref<8x8xf32, #tpu.memory_space<vmem>>, vector<8x8xf32>,
    return
  }
  func.func @transform_0(%arg0: i32) -> (i32, i32) {
    %c0_i32 = arith.constant 0 : i32
    %c0_i32_0 = arith.constant 0 : i32
    return %c0_i32, %arg0 : i32, i32
  }
  func.func @transform_1(%arg0: i32) -> (i32, i32, i32) {
    %c0_i32 = arith.constant 0 : i32
    %c0_i32_0 = arith.constant 0 : i32
    %c0_i32_1 = arith.constant 0 : i32
    %c0_i32_2 = arith.constant 0 : i32
    return %c0_i32, %c0_i32_0, %c0_i32_1 : i32, i32, i32
  }
  func.func @transform_2(%arg0: i32) -> (i32, i32, i32) {
    %c0_i32 = arith.constant 0 : i32
    %c0_i32_0 = arith.constant 0 : i32
    %c0_i32_1 = arith.constant 0 : i32
    %c0_i32_2 = arith.constant 0 : i32
    return %c0_i32, %c0_i32_0, %c0_i32_1 : i32, i32, i32
  }
  func.func @transform_3(%arg0: i32) -> (i32, i32, i32) {
    %c0_i32 = arith.constant 0 : i32
    %c0_i32_0 = arith.constant 0 : i32
    %c0_i32_1 = arith.constant 0 : i32
    %c0_i32_2 = arith.constant 0 : i32
    return %c0_i32, %c0_i32_0, %c0_i32_1 : i32, i32, i32
  }
  func.func @transform_4(%arg0: i32) -> (i32, i32, i32) {
    %c0_i32 = arith.constant 0 : i32
    %c0_i32_0 = arith.constant 0 : i32
    %c0_i32_1 = arith.constant 0 : i32
    %c0_i32_2 = arith.constant 0 : i32
    return %c0_i32, %c0_i32_0, %c0_i32_1 : i32, i32, i32
  }
  func.func @transform_5(%arg0: i32) -> (i32, i32, i32) {
    %c0_i32 = arith.constant 0 : i32
    %c0_i32_0 = arith.constant 0 : i32
    %c0_i32_1 = arith.constant 0 : i32
    %c0_i32_2 = arith.constant 0 : i32
    return %c0_i32, %c0_i32_0, %c0_i32_1 : i32, i32, i32
  }
  func.func @transform_6(%arg0: i32) -> (i32, i32) {
    %c0_i32 = arith.constant 0 : i32
    %c0_i32_0 = arith.constant 0 : i32
    %c0_i32_1 = arith.constant 0 : i32
    return %c0_i32, %c0_i32_0 : i32, i32
  }
  func.func @transform_7(%arg0: i32) -> (i32, i32) {
    %c0_i32 = arith.constant 0 : i32
    %c0_i32_0 = arith.constant 0 : i32
    %c0_i32_1 = arith.constant 0 : i32
    return %c0_i32, %c0_i32_0 : i32, i32
  }
  func.func @transform_8(%arg0: i32) -> (i32, i32) {
    %c0_i32 = arith.constant 0 : i32
    %c0_i32_0 = arith.constant 0 : i32
    %c0_i32_1 = arith.constant 0 : i32
    return %c0_i32, %c0_i32_0 : i32, i32
  }
  func.func @transform_9(%arg0: i32) -> (i32, i32) {
    %c0_i32 = arith.constant 0 : i32
    %c0_i32_0 = arith.constant 0 : i32
    %c0_i32_1 = arith.constant 0 : i32
    return %c0_i32, %c0_i32_0 : i32, i32
  }
  func.func @transform_10(%arg0: i32) -> (i32, i32) {
    %c0_i32 = arith.constant 0 : i32
    %c0_i32_0 = arith.constant 0 : i32
    return %arg0, %c0_i32 : i32, i32
  }
}

</mosaic_0001>

<llo_original>
// kernel: cnn_forward.1
$region0: #{cnn_forward.1}
  #allocation0 [shape = 'u32[]', space=smem, size = 0x4, offset = 0x4, fixed_abs, tag = 'smem constant byte address 0x4 - core index']
  #allocation1 [shape = 'u32[72,128]{1,0:T(1,128)}', space=vmem, size = 0x9000, scoped, tag = 'internal scratch']
  #allocation2 [shape = 'f32[8,128]{1,0:T(8,128)}', space=vmem, size = 0x1000, scoped, tag = 'scratch operand']
  %s0 = inlined_call_operand.vmem [shape: f32[4,1024], index: 0, kind: input, shape index: {}]
  %s1 = inlined_call_operand.vmem [shape: f32[3,16,4], index: 1, kind: input, shape index: {}]
  %s2 = inlined_call_operand.vmem [shape: f32[3,16,16], index: 2, kind: input, shape index: {}]
  %s3 = inlined_call_operand.vmem [shape: f32[3,16,16], index: 3, kind: input, shape index: {}]
  %s4 = inlined_call_operand.vmem [shape: f32[3,16,16], index: 4, kind: input, shape index: {}]
  %s5 = inlined_call_operand.vmem [shape: f32[4,16,1], index: 5, kind: input, shape index: {}]
  %s6 = inlined_call_operand.vmem [shape: f32[128,8], index: 6, kind: input, shape index: {}]
  %s7 = inlined_call_operand.vmem [shape: f32[1,8], index: 7, kind: input, shape index: {}]
  %s8 = inlined_call_operand.vmem [shape: f32[1,1024], index: 8, kind: input, shape index: {}]
  %s9 = inlined_call_operand.vmem [shape: f32[1,1024], index: 9, kind: input, shape index: {}]
  %s10 = inlined_call_operand.vmem [shape: f32[8,8], index: 10, kind: output, shape index: {}]
  %s11 = sld [smem:[#allocation0]]
  $region50: #{cnn_forward.1} parent=0
    _
  %s13 = ssub.s32 1, %s11
  %s14 = scalar_select 0, %s13, %s11
  // Predicated region
  $region2: #{cnn_forward.1} parent=0 // pred_check
    _
  $region3: #{cnn_forward.1} parent=0 // pred_check_branch
    %16 = sbr.rel (0) target = $region5
  $region4: #{cnn_forward.1} parent=0 // pred_region
    _
  $region5: #{cnn_forward.1} parent=0 // pred_fallthru
    _
  // Predicated region
  $region6: #{cnn_forward.1} parent=0 // pred_check
    _
  $region7: #{cnn_forward.1} parent=0 // pred_check_branch
    %18 = sbr.rel (0) target = $region9
  $region8: #{cnn_forward.1} parent=0 // pred_region
    _
  $region9: #{cnn_forward.1} parent=0 // pred_fallthru
    _
  // Predicated region
  $region10: #{cnn_forward.1} parent=0 // pred_check
    _
  $region11: #{cnn_forward.1} parent=0 // pred_check_branch
    %20 = sbr.rel (0) target = $region13
  $region12: #{cnn_forward.1} parent=0 // pred_region
    _
  $region13: #{cnn_forward.1} parent=0 // pred_fallthru
    _
  // Predicated region
  $region14: #{cnn_forward.1} parent=0 // pred_check
    _
  $region15: #{cnn_forward.1} parent=0 // pred_check_branch
    %22 = sbr.rel (0) target = $region17
  $region16: #{cnn_forward.1} parent=0 // pred_region
    _
  $region17: #{cnn_forward.1} parent=0 // pred_fallthru
    _
  // Predicated region
  $region18: #{cnn_forward.1} parent=0 // pred_check
    _
  $region19: #{cnn_forward.1} parent=0 // pred_check_branch
    %24 = sbr.rel (0) target = $region21
  $region20: #{cnn_forward.1} parent=0 // pred_region
    _
  $region21: #{cnn_forward.1} parent=0 // pred_fallthru
    _
  // Predicated region
  $region22: #{cnn_forward.1} parent=0 // pred_check
    _
  $region23: #{cnn_forward.1} parent=0 // pred_check_branch
    %26 = sbr.rel (0) target = $region25
  $region24: #{cnn_forward.1} parent=0 // pred_region
    _
  $region25: #{cnn_forward.1} parent=0 // pred_fallthru
    _
  // Predicated region
  $region26: #{cnn_forward.1} parent=0 // pred_check
    _
  $region27: #{cnn_forward.1} parent=0 // pred_check_branch
    %28 = sbr.rel (0) target = $region29
  $region28: #{cnn_forward.1} parent=0 // pred_region
    _
  $region29: #{cnn_forward.1} parent=0 // pred_fallthru
    _
  // Predicated region
  $region30: #{cnn_forward.1} parent=0 // pred_check
    _
  $region31: #{cnn_forward.1} parent=0 // pred_check_branch
    %30 = sbr.rel (0) target = $region33
  $region32: #{cnn_forward.1} parent=0 // pred_region
    _
  $region33: #{cnn_forward.1} parent=0 // pred_fallthru
    _
  // Predicated region
  $region34: #{cnn_forward.1} parent=0 // pred_check
    _
  $region35: #{cnn_forward.1} parent=0 // pred_check_branch
    %32 = sbr.rel (0) target = $region37
  $region36: #{cnn_forward.1} parent=0 // pred_region
    _
  $region37: #{cnn_forward.1} parent=0 // pred_fallthru
    _
  // Predicated region
  $region38: #{cnn_forward.1} parent=0 // pred_check
    _
  $region39: #{cnn_forward.1} parent=0 // pred_check_branch
    %34 = sbr.rel (0) target = $region41
  $region40: #{cnn_forward.1} parent=0 // pred_region
    _
  $region41: #{cnn_forward.1} parent=0 // pred_fallthru
    _
  %v35 = vld [vmem:[%s8] sm:$0xff]
  %v36 = vld [vmem:[%s9] sm:$0xff]
  %v37 = vld [vmem:[%s0] sm:$0xff]
  %v38 = vld [vmem:[%s0 + $0x8] sm:$0xff]
  %v39 = vld [vmem:[%s0 + $0x10] sm:$0xff]
  %v40 = vld [vmem:[%s0 + $0x18] sm:$0xff]
  %v41 = vld [vmem:[%s5] sm:$0xff]
  %v42 = vld [vmem:[%s5 + $0x8] sm:$0xff]
  %s43 = scalar_lea.vmem %s1, 16
  %v44 = vld [vmem:[%s43] sm:$0xff]
  %v45 = vld [vmem:[%s43 + $0x8] sm:$0xff]
  %v46 = vld [vmem:[%s1] sm:$0xff]
  %v47 = vld [vmem:[%s1 + $0x8] sm:$0xff]
  %52 = vst [vmem:[#allocation1] ss:$2 sm:$0xff] %v37
  %s53 = scalar_lea.vmem [#allocation1], 16
  %54 = vst [vmem:[%s53] ss:$2 sm:$0xff] %v38
  %s55 = scalar_lea.vmem [#allocation1], 32
  %56 = vst [vmem:[%s55] ss:$2 sm:$0xff] %v39
  %s57 = scalar_lea.vmem [#allocation1], 48
  %58 = vst [vmem:[%s57] ss:$2 sm:$0xff] %v40
  %v59 = vld.sshfl [vmem:[#allocation1] sm:$0xff pattern:$0x75316420]
  %v60 = vld.sshfl [vmem:[#allocation1 + $0x8] sm:$0xff pattern:$0x75316420]
  %v61 = vld.sshfl [vmem:[#allocation1 + $0x10] sm:$0xff pattern:$0x75316420]
  %v62 = vld.sshfl [vmem:[#allocation1 + $0x18] sm:$0xff pattern:$0x75316420]
  %v63 = vld.sshfl [vmem:[#allocation1 + $0x20] sm:$0xff pattern:$0x75316420]
  %v64 = vld.sshfl [vmem:[#allocation1 + $0x28] sm:$0xff pattern:$0x75316420]
  %v65 = vld.sshfl [vmem:[#allocation1 + $0x30] sm:$0xff pattern:$0x75316420]
  %v66 = vld.sshfl [vmem:[#allocation1 + $0x38] sm:$0xff pattern:$0x75316420]
  %75 = vrot.lane.b32.xlu0 %v59, 1
  %v76 = vpop.permute.xlu0 %75
  %77 = vrot.lane.b32.xlu0 %v60, 1
  %v78 = vpop.permute.xlu0 %77
  %79 = vrot.lane.b32.xlu0 %v61, 1
  %v80 = vpop.permute.xlu0 %79
  %81 = vrot.lane.b32.xlu0 %v62, 1
  %v82 = vpop.permute.xlu0 %81
  %83 = vrot.lane.b32.xlu0 %v63, 1
  %v84 = vpop.permute.xlu0 %83
  %85 = vrot.lane.b32.xlu0 %v64, 1
  %v86 = vpop.permute.xlu0 %85
  %87 = vrot.lane.b32.xlu0 %v65, 1
  %v88 = vpop.permute.xlu0 %87
  %89 = vrot.lane.b32.xlu0 %v66, 1
  %v90 = vpop.permute.xlu0 %89
  %v91 = vlaneseq
  %v92 = vand.u32 %v91, 127
  %vm93 = vcmp.lt.s32.totalorder %v92, 1
  %v94 = vsel %vm93, %v88, %v90
  %v95 = vsel %vm93, %v86, %v88
  %v96 = vsel %vm93, %v84, %v86
  %v97 = vsel %vm93, %v82, %v84
  %v98 = vsel %vm93, %v80, %v82
  %v99 = vsel %vm93, %v78, %v80
  %v100 = vsel %vm93, %v76, %v78
  %v101 = vsel %vm93, %v90, %v76
  %vm102 = vcmask 31744
  %v104 = vsel %vm102, %v46, 0
  %v107 = vsel %vm102, %v47, 0
  %vm109 = vcmask 1043456
  %v111 = vsel %vm109, %v101, 0
  %v114 = vsel %vm109, %v100, 0
  %v117 = vsel %vm109, %v99, 0
  %v120 = vsel %vm109, %v98, 0
  %v123 = vsel %vm109, %v97, 0
  %v126 = vsel %vm109, %v96, 0
  %v129 = vsel %vm109, %v95, 0
  %v132 = vsel %vm109, %v94, 0
  %134 = vmatpush.msra.mxu0 0.0
  %135 = vmatpush.msra.mxu0 0.0
  %136 = vmatpush.msra.mxu0 0.0
  %137 = vmatpush.msra.mxu0 0.0
  %138 = vmatpush.msra.mxu0 0.0
  %139 = vmatpush.msra.mxu0 0.0
  %140 = vmatpush.msra.mxu0 0.0
  %141 = vmatpush.msra.mxu0 0.0
  %142 = vmatpush.msra.mxu0 0.0
  %143 = vmatpush.msra.mxu0 0.0
  %144 = vmatpush.msra.mxu0 0.0
  %145 = vmatpush.msra.mxu0 0.0
  %146 = vmatpush.msra.mxu0 0.0
  %147 = vmatpush.msra.mxu0 0.0
  %148 = vmatpush.msra.mxu0 0.0
  %149 = vmatpush.msra.mxu0 %v111
  %150 = vmatmul.f32.gmra.mxu0 %v104
  %v151 = vpop.f32.mrf.mxu0
  %v152 = vadd.f32 0.0, %v151
  %153 = vmatmul.f32.gmra.mxu0 %v107
  %v154 = vpop.f32.mrf.mxu0
  %v155 = vadd.f32 0.0, %v154
  %156 = vdwg.mxu0
  %157 = vmatpush.msra.mxu0 0.0
  %158 = vmatpush.msra.mxu0 0.0
  %159 = vmatpush.msra.mxu0 0.0
  %160 = vmatpush.msra.mxu0 0.0
  %161 = vmatpush.msra.mxu0 0.0
  %162 = vmatpush.msra.mxu0 0.0
  %163 = vmatpush.msra.mxu0 0.0
  %164 = vmatpush.msra.mxu0 0.0
  %165 = vmatpush.msra.mxu0 0.0
  %166 = vmatpush.msra.mxu0 0.0
  %167 = vmatpush.msra.mxu0 0.0
  %168 = vmatpush.msra.mxu0 0.0
  %169 = vmatpush.msra.mxu0 0.0
  %170 = vmatpush.msra.mxu0 0.0
  %171 = vmatpush.msra.mxu0 0.0
  %172 = vmatpush.msra.mxu0 %v114
  %173 = vmatmul.f32.gmra.mxu0 %v104
  %v174 = vpop.f32.mrf.mxu0
  %v175 = vadd.f32 0.0, %v174
  %176 = vmatmul.f32.gmra.mxu0 %v107
  %v177 = vpop.f32.mrf.mxu0
  %v178 = vadd.f32 0.0, %v177
  %179 = vdwg.mxu0
  %180 = vmatpush.msra.mxu0 0.0
  %181 = vmatpush.msra.mxu0 0.0
  %182 = vmatpush.msra.mxu0 0.0
  %183 = vmatpush.msra.mxu0 0.0
  %184 = vmatpush.msra.mxu0 0.0
  %185 = vmatpush.msra.mxu0 0.0
  %186 = vmatpush.msra.mxu0 0.0
  %187 = vmatpush.msra.mxu0 0.0
  %188 = vmatpush.msra.mxu0 0.0
  %189 = vmatpush.msra.mxu0 0.0
  %190 = vmatpush.msra.mxu0 0.0
  %191 = vmatpush.msra.mxu0 0.0
  %192 = vmatpush.msra.mxu0 0.0
  %193 = vmatpush.msra.mxu0 0.0
  %194 = vmatpush.msra.mxu0 0.0
  %195 = vmatpush.msra.mxu0 %v117
  %196 = vmatmul.f32.gmra.mxu0 %v104
  %v197 = vpop.f32.mrf.mxu0
  %v198 = vadd.f32 0.0, %v197
  %199 = vmatmul.f32.gmra.mxu0 %v107
  %v200 = vpop.f32.mrf.mxu0
  %v201 = vadd.f32 0.0, %v200
  %202 = vdwg.mxu0
  %203 = vmatpush.msra.mxu0 0.0
  %204 = vmatpush.msra.mxu0 0.0
  %205 = vmatpush.msra.mxu0 0.0
  %206 = vmatpush.msra.mxu0 0.0
  %207 = vmatpush.msra.mxu0 0.0
  %208 = vmatpush.msra.mxu0 0.0
  %209 = vmatpush.msra.mxu0 0.0
  %210 = vmatpush.msra.mxu0 0.0
  %211 = vmatpush.msra.mxu0 0.0
  %212 = vmatpush.msra.mxu0 0.0
  %213 = vmatpush.msra.mxu0 0.0
  %214 = vmatpush.msra.mxu0 0.0
  %215 = vmatpush.msra.mxu0 0.0
  %216 = vmatpush.msra.mxu0 0.0
  %217 = vmatpush.msra.mxu0 0.0
  %218 = vmatpush.msra.mxu0 %v120
  %219 = vmatmul.f32.gmra.mxu0 %v104
  %v220 = vpop.f32.mrf.mxu0
  %v221 = vadd.f32 0.0, %v220
  %222 = vmatmul.f32.gmra.mxu0 %v107
  %v223 = vpop.f32.mrf.mxu0
  %v224 = vadd.f32 0.0, %v223
  %225 = vdwg.mxu0
  %226 = vmatpush.msra.mxu0 0.0
  %227 = vmatpush.msra.mxu0 0.0
  %228 = vmatpush.msra.mxu0 0.0
  %229 = vmatpush.msra.mxu0 0.0
  %230 = vmatpush.msra.mxu0 0.0
  %231 = vmatpush.msra.mxu0 0.0
  %232 = vmatpush.msra.mxu0 0.0
  %233 = vmatpush.msra.mxu0 0.0
  %234 = vmatpush.msra.mxu0 0.0
  %235 = vmatpush.msra.mxu0 0.0
  %236 = vmatpush.msra.mxu0 0.0
  %237 = vmatpush.msra.mxu0 0.0
  %238 = vmatpush.msra.mxu0 0.0
  %239 = vmatpush.msra.mxu0 0.0
  %240 = vmatpush.msra.mxu0 0.0
  %241 = vmatpush.msra.mxu0 %v123
  %242 = vmatmul.f32.gmra.mxu0 %v104
  %v243 = vpop.f32.mrf.mxu0
  %v244 = vadd.f32 0.0, %v243
  %245 = vmatmul.f32.gmra.mxu0 %v107
  %v246 = vpop.f32.mrf.mxu0
  %v247 = vadd.f32 0.0, %v246
  %248 = vdwg.mxu0
  %249 = vmatpush.msra.mxu0 0.0
  %250 = vmatpush.msra.mxu0 0.0
  %251 = vmatpush.msra.mxu0 0.0
  %252 = vmatpush.msra.mxu0 0.0
  %253 = vmatpush.msra.mxu0 0.0
  %254 = vmatpush.msra.mxu0 0.0
  %255 = vmatpush.msra.mxu0 0.0
  %256 = vmatpush.msra.mxu0 0.0
  %257 = vmatpush.msra.mxu0 0.0
  %258 = vmatpush.msra.mxu0 0.0
  %259 = vmatpush.msra.mxu0 0.0
  %260 = vmatpush.msra.mxu0 0.0
  %261 = vmatpush.msra.mxu0 0.0
  %262 = vmatpush.msra.mxu0 0.0
  %263 = vmatpush.msra.mxu0 0.0
  %264 = vmatpush.msra.mxu0 %v126
  %265 = vmatmul.f32.gmra.mxu0 %v104
  %v266 = vpop.f32.mrf.mxu0
  %v267 = vadd.f32 0.0, %v266
  %268 = vmatmul.f32.gmra.mxu0 %v107
  %v269 = vpop.f32.mrf.mxu0
  %v270 = vadd.f32 0.0, %v269
  %271 = vdwg.mxu0
  %272 = vmatpush.msra.mxu0 0.0
  %273 = vmatpush.msra.mxu0 0.0
  %274 = vmatpush.msra.mxu0 0.0
  %275 = vmatpush.msra.mxu0 0.0
  %276 = vmatpush.msra.mxu0 0.0
  %277 = vmatpush.msra.mxu0 0.0
  %278 = vmatpush.msra.mxu0 0.0
  %279 = vmatpush.msra.mxu0 0.0
  %280 = vmatpush.msra.mxu0 0.0
  %281 = vmatpush.msra.mxu0 0.0
  %282 = vmatpush.msra.mxu0 0.0
  %283 = vmatpush.msra.mxu0 0.0
  %284 = vmatpush.msra.mxu0 0.0
  %285 = vmatpush.msra.mxu0 0.0
  %286 = vmatpush.msra.mxu0 0.0
  %287 = vmatpush.msra.mxu0 %v129
  %288 = vmatmul.f32.gmra.mxu0 %v104
  %v289 = vpop.f32.mrf.mxu0
  %v290 = vadd.f32 0.0, %v289
  %291 = vmatmul.f32.gmra.mxu0 %v107
  %v292 = vpop.f32.mrf.mxu0
  %v293 = vadd.f32 0.0, %v292
  %294 = vdwg.mxu0
  %295 = vmatpush.msra.mxu0 0.0
  %296 = vmatpush.msra.mxu0 0.0
  %297 = vmatpush.msra.mxu0 0.0
  %298 = vmatpush.msra.mxu0 0.0
  %299 = vmatpush.msra.mxu0 0.0
  %300 = vmatpush.msra.mxu0 0.0
  %301 = vmatpush.msra.mxu0 0.0
  %302 = vmatpush.msra.mxu0 0.0
  %303 = vmatpush.msra.mxu0 0.0
  %304 = vmatpush.msra.mxu0 0.0
  %305 = vmatpush.msra.mxu0 0.0
  %306 = vmatpush.msra.mxu0 0.0
  %307 = vmatpush.msra.mxu0 0.0
  %308 = vmatpush.msra.mxu0 0.0
  %309 = vmatpush.msra.mxu0 0.0
  %310 = vmatpush.msra.mxu0 %v132
  %311 = vmatmul.f32.gmra.mxu0 %v104
  %v312 = vpop.f32.mrf.mxu0
  %v313 = vadd.f32 0.0, %v312
  %314 = vmatmul.f32.gmra.mxu0 %v107
  %v315 = vpop.f32.mrf.mxu0
  %v316 = vadd.f32 0.0, %v315
  %317 = vdwg.mxu0
  %318 = vst [vmem:[#allocation1] ss:$2 sm:$0xff] %v37
  %s319 = scalar_lea.vmem [#allocation1], 16
  %320 = vst [vmem:[%s319] ss:$2 sm:$0xff] %v38
  %s321 = scalar_lea.vmem [#allocation1], 32
  %322 = vst [vmem:[%s321] ss:$2 sm:$0xff] %v39
  %s323 = scalar_lea.vmem [#allocation1], 48
  %324 = vst [vmem:[%s323] ss:$2 sm:$0xff] %v40
  %v325 = vld.sshfl [vmem:[#allocation1] sm:$0xff pattern:$0x75316420]
  %v326 = vld.sshfl [vmem:[#allocation1 + $0x8] sm:$0xff pattern:$0x75316420]
  %v327 = vld.sshfl [vmem:[#allocation1 + $0x10] sm:$0xff pattern:$0x75316420]
  %v328 = vld.sshfl [vmem:[#allocation1 + $0x18] sm:$0xff pattern:$0x75316420]
  %v329 = vld.sshfl [vmem:[#allocation1 + $0x20] sm:$0xff pattern:$0x75316420]
  %v330 = vld.sshfl [vmem:[#allocation1 + $0x28] sm:$0xff pattern:$0x75316420]
  %v331 = vld.sshfl [vmem:[#allocation1 + $0x30] sm:$0xff pattern:$0x75316420]
  %v332 = vld.sshfl [vmem:[#allocation1 + $0x38] sm:$0xff pattern:$0x75316420]
  %v334 = vsel %vm102, %v44, 0
  %v337 = vsel %vm102, %v45, 0
  %v339 = vsel %vm109, %v325, 0
  %v341 = vsel %vm109, %v326, 0
  %v343 = vsel %vm109, %v327, 0
  %v345 = vsel %vm109, %v328, 0
  %v347 = vsel %vm109, %v329, 0
  %v349 = vsel %vm109, %v330, 0
  %v351 = vsel %vm109, %v331, 0
  %v353 = vsel %vm109, %v332, 0
  %355 = vmatpush.msra.mxu0 0.0
  %356 = vmatpush.msra.mxu0 0.0
  %357 = vmatpush.msra.mxu0 0.0
  %358 = vmatpush.msra.mxu0 0.0
  %359 = vmatpush.msra.mxu0 0.0
  %360 = vmatpush.msra.mxu0 0.0
  %361 = vmatpush.msra.mxu0 0.0
  %362 = vmatpush.msra.mxu0 0.0
  %363 = vmatpush.msra.mxu0 0.0
  %364 = vmatpush.msra.mxu0 0.0
  %365 = vmatpush.msra.mxu0 0.0
  %366 = vmatpush.msra.mxu0 0.0
  %367 = vmatpush.msra.mxu0 0.0
  %368 = vmatpush.msra.mxu0 0.0
  %369 = vmatpush.msra.mxu0 0.0
  %370 = vmatpush.msra.mxu0 %v339
  %371 = vmatmul.f32.gmra.mxu0 %v334
  %v372 = vpop.f32.mrf.mxu0
  %v373 = vadd.f32 %v152, %v372
  %374 = vmatmul.f32.gmra.mxu0 %v337
  %v375 = vpop.f32.mrf.mxu0
  %v376 = vadd.f32 %v155, %v375
  %377 = vdwg.mxu0
  %378 = vmatpush.msra.mxu0 0.0
  %379 = vmatpush.msra.mxu0 0.0
  %380 = vmatpush.msra.mxu0 0.0
  %381 = vmatpush.msra.mxu0 0.0
  %382 = vmatpush.msra.mxu0 0.0
  %383 = vmatpush.msra.mxu0 0.0
  %384 = vmatpush.msra.mxu0 0.0
  %385 = vmatpush.msra.mxu0 0.0
  %386 = vmatpush.msra.mxu0 0.0
  %387 = vmatpush.msra.mxu0 0.0
  %388 = vmatpush.msra.mxu0 0.0
  %389 = vmatpush.msra.mxu0 0.0
  %390 = vmatpush.msra.mxu0 0.0
  %391 = vmatpush.msra.mxu0 0.0
  %392 = vmatpush.msra.mxu0 0.0
  %393 = vmatpush.msra.mxu0 %v341
  %394 = vmatmul.f32.gmra.mxu0 %v334
  %v395 = vpop.f32.mrf.mxu0
  %v396 = vadd.f32 %v175, %v395
  %397 = vmatmul.f32.gmra.mxu0 %v337
  %v398 = vpop.f32.mrf.mxu0
  %v399 = vadd.f32 %v178, %v398
  %400 = vdwg.mxu0
  %401 = vmatpush.msra.mxu0 0.0
  %402 = vmatpush.msra.mxu0 0.0
  %403 = vmatpush.msra.mxu0 0.0
  %404 = vmatpush.msra.mxu0 0.0
  %405 = vmatpush.msra.mxu0 0.0
  %406 = vmatpush.msra.mxu0 0.0
  %407 = vmatpush.msra.mxu0 0.0
  %408 = vmatpush.msra.mxu0 0.0
  %409 = vmatpush.msra.mxu0 0.0
  %410 = vmatpush.msra.mxu0 0.0
  %411 = vmatpush.msra.mxu0 0.0
  %412 = vmatpush.msra.mxu0 0.0
  %413 = vmatpush.msra.mxu0 0.0
  %414 = vmatpush.msra.mxu0 0.0
  %415 = vmatpush.msra.mxu0 0.0
  %416 = vmatpush.msra.mxu0 %v343
  %417 = vmatmul.f32.gmra.mxu0 %v334
  %v418 = vpop.f32.mrf.mxu0
  %v419 = vadd.f32 %v198, %v418
  %420 = vmatmul.f32.gmra.mxu0 %v337
  %v421 = vpop.f32.mrf.mxu0
  %v422 = vadd.f32 %v201, %v421
  %423 = vdwg.mxu0
  %424 = vmatpush.msra.mxu0 0.0
  %425 = vmatpush.msra.mxu0 0.0
  %426 = vmatpush.msra.mxu0 0.0
  %427 = vmatpush.msra.mxu0 0.0
  %428 = vmatpush.msra.mxu0 0.0
  %429 = vmatpush.msra.mxu0 0.0
  %430 = vmatpush.msra.mxu0 0.0
  %431 = vmatpush.msra.mxu0 0.0
  %432 = vmatpush.msra.mxu0 0.0
  %433 = vmatpush.msra.mxu0 0.0
  %434 = vmatpush.msra.mxu0 0.0
  %435 = vmatpush.msra.mxu0 0.0
  %436 = vmatpush.msra.mxu0 0.0
  %437 = vmatpush.msra.mxu0 0.0
  %438 = vmatpush.msra.mxu0 0.0
  %439 = vmatpush.msra.mxu0 %v345
  %440 = vmatmul.f32.gmra.mxu0 %v334
  %v441 = vpop.f32.mrf.mxu0
  %v442 = vadd.f32 %v221, %v441
  %443 = vmatmul.f32.gmra.mxu0 %v337
  %v444 = vpop.f32.mrf.mxu0
  %v445 = vadd.f32 %v224, %v444
  %446 = vdwg.mxu0
  %447 = vmatpush.msra.mxu0 0.0
  %448 = vmatpush.msra.mxu0 0.0
  %449 = vmatpush.msra.mxu0 0.0
  %450 = vmatpush.msra.mxu0 0.0
  %451 = vmatpush.msra.mxu0 0.0
  %452 = vmatpush.msra.mxu0 0.0
  %453 = vmatpush.msra.mxu0 0.0
  %454 = vmatpush.msra.mxu0 0.0
  %455 = vmatpush.msra.mxu0 0.0
  %456 = vmatpush.msra.mxu0 0.0
  %457 = vmatpush.msra.mxu0 0.0
  %458 = vmatpush.msra.mxu0 0.0
  %459 = vmatpush.msra.mxu0 0.0
  %460 = vmatpush.msra.mxu0 0.0
  %461 = vmatpush.msra.mxu0 0.0
  %462 = vmatpush.msra.mxu0 %v347
  %463 = vmatmul.f32.gmra.mxu0 %v334
  %v464 = vpop.f32.mrf.mxu0
  %v465 = vadd.f32 %v244, %v464
  %466 = vmatmul.f32.gmra.mxu0 %v337
  %v467 = vpop.f32.mrf.mxu0
  %v468 = vadd.f32 %v247, %v467
  %469 = vdwg.mxu0
  %470 = vmatpush.msra.mxu0 0.0
  %471 = vmatpush.msra.mxu0 0.0
  %472 = vmatpush.msra.mxu0 0.0
  %473 = vmatpush.msra.mxu0 0.0
  %474 = vmatpush.msra.mxu0 0.0
  %475 = vmatpush.msra.mxu0 0.0
  %476 = vmatpush.msra.mxu0 0.0
  %477 = vmatpush.msra.mxu0 0.0
  %478 = vmatpush.msra.mxu0 0.0
  %479 = vmatpush.msra.mxu0 0.0
  %480 = vmatpush.msra.mxu0 0.0
  %481 = vmatpush.msra.mxu0 0.0
  %482 = vmatpush.msra.mxu0 0.0
  %483 = vmatpush.msra.mxu0 0.0
  %484 = vmatpush.msra.mxu0 0.0
  %485 = vmatpush.msra.mxu0 %v349
  %486 = vmatmul.f32.gmra.mxu0 %v334
  %v487 = vpop.f32.mrf.mxu0
  %v488 = vadd.f32 %v267, %v487
  %489 = vmatmul.f32.gmra.mxu0 %v337
  %v490 = vpop.f32.mrf.mxu0
  %v491 = vadd.f32 %v270, %v490
  %492 = vdwg.mxu0
  %493 = vmatpush.msra.mxu0 0.0
  %494 = vmatpush.msra.mxu0 0.0
  %495 = vmatpush.msra.mxu0 0.0
  %496 = vmatpush.msra.mxu0 0.0
  %497 = vmatpush.msra.mxu0 0.0
  %498 = vmatpush.msra.mxu0 0.0
  %499 = vmatpush.msra.mxu0 0.0
  %500 = vmatpush.msra.mxu0 0.0
  %501 = vmatpush.msra.mxu0 0.0
  %502 = vmatpush.msra.mxu0 0.0
  %503 = vmatpush.msra.mxu0 0.0
  %504 = vmatpush.msra.mxu0 0.0
  %505 = vmatpush.msra.mxu0 0.0
  %506 = vmatpush.msra.mxu0 0.0
  %507 = vmatpush.msra.mxu0 0.0
  %508 = vmatpush.msra.mxu0 %v351
  %509 = vmatmul.f32.gmra.mxu0 %v334
  %v510 = vpop.f32.mrf.mxu0
  %v511 = vadd.f32 %v290, %v510
  %512 = vmatmul.f32.gmra.mxu0 %v337
  %v513 = vpop.f32.mrf.mxu0
  %v514 = vadd.f32 %v293, %v513
  %515 = vdwg.mxu0
  %516 = vmatpush.msra.mxu0 0.0
  %517 = vmatpush.msra.mxu0 0.0
  %518 = vmatpush.msra.mxu0 0.0
  %519 = vmatpush.msra.mxu0 0.0
  %520 = vmatpush.msra.mxu0 0.0
  %521 = vmatpush.msra.mxu0 0.0
  %522 = vmatpush.msra.mxu0 0.0
  %523 = vmatpush.msra.mxu0 0.0
  %524 = vmatpush.msra.mxu0 0.0
  %525 = vmatpush.msra.mxu0 0.0
  %526 = vmatpush.msra.mxu0 0.0
  %527 = vmatpush.msra.mxu0 0.0
  %528 = vmatpush.msra.mxu0 0.0
  %529 = vmatpush.msra.mxu0 0.0
  %530 = vmatpush.msra.mxu0 0.0
  %531 = vmatpush.msra.mxu0 %v353
  %532 = vmatmul.f32.gmra.mxu0 %v334
  %v533 = vpop.f32.mrf.mxu0
  %v534 = vadd.f32 %v313, %v533
  %535 = vmatmul.f32.gmra.mxu0 %v337
  %v536 = vpop.f32.mrf.mxu0
  %v537 = vadd.f32 %v316, %v536
  %538 = vdwg.mxu0
  %s539 = scalar_lea.vmem %s1, 32
  %v540 = vld [vmem:[%s539] sm:$0xff]
  %v541 = vld [vmem:[%s539 + $0x8] sm:$0xff]
  %542 = vst [vmem:[#allocation1] ss:$2 sm:$0xff] %v37
  %s543 = scalar_lea.vmem [#allocation1], 16
  %544 = vst [vmem:[%s543] ss:$2 sm:$0xff] %v38
  %s545 = scalar_lea.vmem [#allocation1], 32
  %546 = vst [vmem:[%s545] ss:$2 sm:$0xff] %v39
  %s547 = scalar_lea.vmem [#allocation1], 48
  %548 = vst [vmem:[%s547] ss:$2 sm:$0xff] %v40
  %v549 = vld.sshfl [vmem:[#allocation1] sm:$0xff pattern:$0x75316420]
  %v550 = vld.sshfl [vmem:[#allocation1 + $0x8] sm:$0xff pattern:$0x75316420]
  %v551 = vld.sshfl [vmem:[#allocation1 + $0x10] sm:$0xff pattern:$0x75316420]
  %v552 = vld.sshfl [vmem:[#allocation1 + $0x18] sm:$0xff pattern:$0x75316420]
  %v553 = vld.sshfl [vmem:[#allocation1 + $0x20] sm:$0xff pattern:$0x75316420]
  %v554 = vld.sshfl [vmem:[#allocation1 + $0x28] sm:$0xff pattern:$0x75316420]
  %v555 = vld.sshfl [vmem:[#allocation1 + $0x30] sm:$0xff pattern:$0x75316420]
  %v556 = vld.sshfl [vmem:[#allocation1 + $0x38] sm:$0xff pattern:$0x75316420]
  %565 = vrot.lane.b32.xlu0 %v549, 127
  %v566 = vpop.permute.xlu0 %565
  %567 = vrot.lane.b32.xlu0 %v550, 127
  %v568 = vpop.permute.xlu0 %567
  %569 = vrot.lane.b32.xlu0 %v551, 127
  %v570 = vpop.permute.xlu0 %569
  %571 = vrot.lane.b32.xlu0 %v552, 127
  %v572 = vpop.permute.xlu0 %571
  %573 = vrot.lane.b32.xlu0 %v553, 127
  %v574 = vpop.permute.xlu0 %573
  %575 = vrot.lane.b32.xlu0 %v554, 127
  %v576 = vpop.permute.xlu0 %575
  %577 = vrot.lane.b32.xlu0 %v555, 127
  %v578 = vpop.permute.xlu0 %577
  %579 = vrot.lane.b32.xlu0 %v556, 127
  %v580 = vpop.permute.xlu0 %579
  %vm581 = vcmp.lt.s32.totalorder %v92, 127
  %v582 = vsel %vm581, %v578, %v580
  %v583 = vsel %vm581, %v576, %v578
  %v584 = vsel %vm581, %v574, %v576
  %v585 = vsel %vm581, %v572, %v574
  %v586 = vsel %vm581, %v570, %v572
  %v587 = vsel %vm581, %v568, %v570
  %v588 = vsel %vm581, %v566, %v568
  %v589 = vsel %vm581, %v580, %v566
  %v591 = vsel %vm102, %v540, 0
  %v594 = vsel %vm102, %v541, 0
  %v597 = vsel %vm109, %v588, 0
  %v600 = vsel %vm109, %v587, 0
  %v603 = vsel %vm109, %v586, 0
  %v606 = vsel %vm109, %v585, 0
  %v609 = vsel %vm109, %v584, 0
  %v612 = vsel %vm109, %v583, 0
  %v615 = vsel %vm109, %v582, 0
  %v618 = vsel %vm109, %v589, 0
  %620 = vmatpush.msra.mxu0 0.0
  %621 = vmatpush.msra.mxu0 0.0
  %622 = vmatpush.msra.mxu0 0.0
  %623 = vmatpush.msra.mxu0 0.0
  %624 = vmatpush.msra.mxu0 0.0
  %625 = vmatpush.msra.mxu0 0.0
  %626 = vmatpush.msra.mxu0 0.0
  %627 = vmatpush.msra.mxu0 0.0
  %628 = vmatpush.msra.mxu0 0.0
  %629 = vmatpush.msra.mxu0 0.0
  %630 = vmatpush.msra.mxu0 0.0
  %631 = vmatpush.msra.mxu0 0.0
  %632 = vmatpush.msra.mxu0 0.0
  %633 = vmatpush.msra.mxu0 0.0
  %634 = vmatpush.msra.mxu0 0.0
  %635 = vmatpush.msra.mxu0 %v597
  %636 = vmatmul.f32.gmra.mxu0 %v591
  %v637 = vpop.f32.mrf.mxu0
  %v638 = vadd.f32 0.0, %v637
  %639 = vmatmul.f32.gmra.mxu0 %v594
  %v640 = vpop.f32.mrf.mxu0
  %v641 = vadd.f32 0.0, %v640
  %642 = vdwg.mxu0
  %643 = vmatpush.msra.mxu0 0.0
  %644 = vmatpush.msra.mxu0 0.0
  %645 = vmatpush.msra.mxu0 0.0
  %646 = vmatpush.msra.mxu0 0.0
  %647 = vmatpush.msra.mxu0 0.0
  %648 = vmatpush.msra.mxu0 0.0
  %649 = vmatpush.msra.mxu0 0.0
  %650 = vmatpush.msra.mxu0 0.0
  %651 = vmatpush.msra.mxu0 0.0
  %652 = vmatpush.msra.mxu0 0.0
  %653 = vmatpush.msra.mxu0 0.0
  %654 = vmatpush.msra.mxu0 0.0
  %655 = vmatpush.msra.mxu0 0.0
  %656 = vmatpush.msra.mxu0 0.0
  %657 = vmatpush.msra.mxu0 0.0
  %658 = vmatpush.msra.mxu0 %v600
  %659 = vmatmul.f32.gmra.mxu0 %v591
  %v660 = vpop.f32.mrf.mxu0
  %v661 = vadd.f32 0.0, %v660
  %662 = vmatmul.f32.gmra.mxu0 %v594
  %v663 = vpop.f32.mrf.mxu0
  %v664 = vadd.f32 0.0, %v663
  %665 = vdwg.mxu0
  %666 = vmatpush.msra.mxu0 0.0
  %667 = vmatpush.msra.mxu0 0.0
  %668 = vmatpush.msra.mxu0 0.0
  %669 = vmatpush.msra.mxu0 0.0
  %670 = vmatpush.msra.mxu0 0.0
  %671 = vmatpush.msra.mxu0 0.0
  %672 = vmatpush.msra.mxu0 0.0
  %673 = vmatpush.msra.mxu0 0.0
  %674 = vmatpush.msra.mxu0 0.0
  %675 = vmatpush.msra.mxu0 0.0
  %676 = vmatpush.msra.mxu0 0.0
  %677 = vmatpush.msra.mxu0 0.0
  %678 = vmatpush.msra.mxu0 0.0
  %679 = vmatpush.msra.mxu0 0.0
  %680 = vmatpush.msra.mxu0 0.0
  %681 = vmatpush.msra.mxu0 %v603
  %682 = vmatmul.f32.gmra.mxu0 %v591
  %v683 = vpop.f32.mrf.mxu0
  %v684 = vadd.f32 0.0, %v683
  %685 = vmatmul.f32.gmra.mxu0 %v594
  %v686 = vpop.f32.mrf.mxu0
  %v687 = vadd.f32 0.0, %v686
  %688 = vdwg.mxu0
  %689 = vmatpush.msra.mxu0 0.0
  %690 = vmatpush.msra.mxu0 0.0
  %691 = vmatpush.msra.mxu0 0.0
  %692 = vmatpush.msra.mxu0 0.0
  %693 = vmatpush.msra.mxu0 0.0
  %694 = vmatpush.msra.mxu0 0.0
  %695 = vmatpush.msra.mxu0 0.0
  %696 = vmatpush.msra.mxu0 0.0
  %697 = vmatpush.msra.mxu0 0.0
  %698 = vmatpush.msra.mxu0 0.0
  %699 = vmatpush.msra.mxu0 0.0
  %700 = vmatpush.msra.mxu0 0.0
  %701 = vmatpush.msra.mxu0 0.0
  %702 = vmatpush.msra.mxu0 0.0
  %703 = vmatpush.msra.mxu0 0.0
  %704 = vmatpush.msra.mxu0 %v606
  %705 = vmatmul.f32.gmra.mxu0 %v591
  %v706 = vpop.f32.mrf.mxu0
  %v707 = vadd.f32 0.0, %v706
  %708 = vmatmul.f32.gmra.mxu0 %v594
  %v709 = vpop.f32.mrf.mxu0
  %v710 = vadd.f32 0.0, %v709
  %711 = vdwg.mxu0
  %712 = vmatpush.msra.mxu0 0.0
  %713 = vmatpush.msra.mxu0 0.0
  %714 = vmatpush.msra.mxu0 0.0
  %715 = vmatpush.msra.mxu0 0.0
  %716 = vmatpush.msra.mxu0 0.0
  %717 = vmatpush.msra.mxu0 0.0
  %718 = vmatpush.msra.mxu0 0.0
  %719 = vmatpush.msra.mxu0 0.0
  %720 = vmatpush.msra.mxu0 0.0
  %721 = vmatpush.msra.mxu0 0.0
  %722 = vmatpush.msra.mxu0 0.0
  %723 = vmatpush.msra.mxu0 0.0
  %724 = vmatpush.msra.mxu0 0.0
  %725 = vmatpush.msra.mxu0 0.0
  %726 = vmatpush.msra.mxu0 0.0
  %727 = vmatpush.msra.mxu0 %v609
  %728 = vmatmul.f32.gmra.mxu0 %v591
  %v729 = vpop.f32.mrf.mxu0
  %v730 = vadd.f32 0.0, %v729
  %731 = vmatmul.f32.gmra.mxu0 %v594
  %v732 = vpop.f32.mrf.mxu0
  %v733 = vadd.f32 0.0, %v732
  %734 = vdwg.mxu0
  %735 = vmatpush.msra.mxu0 0.0
  %736 = vmatpush.msra.mxu0 0.0
  %737 = vmatpush.msra.mxu0 0.0
  %738 = vmatpush.msra.mxu0 0.0
  %739 = vmatpush.msra.mxu0 0.0
  %740 = vmatpush.msra.mxu0 0.0
  %741 = vmatpush.msra.mxu0 0.0
  %742 = vmatpush.msra.mxu0 0.0
  %743 = vmatpush.msra.mxu0 0.0
  %744 = vmatpush.msra.mxu0 0.0
  %745 = vmatpush.msra.mxu0 0.0
  %746 = vmatpush.msra.mxu0 0.0
  %747 = vmatpush.msra.mxu0 0.0
  %748 = vmatpush.msra.mxu0 0.0
  %749 = vmatpush.msra.mxu0 0.0
  %750 = vmatpush.msra.mxu0 %v612
  %751 = vmatmul.f32.gmra.mxu0 %v591
  %v752 = vpop.f32.mrf.mxu0
  %v753 = vadd.f32 0.0, %v752
  %754 = vmatmul.f32.gmra.mxu0 %v594
  %v755 = vpop.f32.mrf.mxu0
  %v756 = vadd.f32 0.0, %v755
  %757 = vdwg.mxu0
  %758 = vmatpush.msra.mxu0 0.0
  %759 = vmatpush.msra.mxu0 0.0
  %760 = vmatpush.msra.mxu0 0.0
  %761 = vmatpush.msra.mxu0 0.0
  %762 = vmatpush.msra.mxu0 0.0
  %763 = vmatpush.msra.mxu0 0.0
  %764 = vmatpush.msra.mxu0 0.0
  %765 = vmatpush.msra.mxu0 0.0
  %766 = vmatpush.msra.mxu0 0.0
  %767 = vmatpush.msra.mxu0 0.0
  %768 = vmatpush.msra.mxu0 0.0
  %769 = vmatpush.msra.mxu0 0.0
  %770 = vmatpush.msra.mxu0 0.0
  %771 = vmatpush.msra.mxu0 0.0
  %772 = vmatpush.msra.mxu0 0.0
  %773 = vmatpush.msra.mxu0 %v615
  %774 = vmatmul.f32.gmra.mxu0 %v591
  %v775 = vpop.f32.mrf.mxu0
  %v776 = vadd.f32 0.0, %v775
  %777 = vmatmul.f32.gmra.mxu0 %v594
  %v778 = vpop.f32.mrf.mxu0
  %v779 = vadd.f32 0.0, %v778
  %780 = vdwg.mxu0
  %781 = vmatpush.msra.mxu0 0.0
  %782 = vmatpush.msra.mxu0 0.0
  %783 = vmatpush.msra.mxu0 0.0
  %784 = vmatpush.msra.mxu0 0.0
  %785 = vmatpush.msra.mxu0 0.0
  %786 = vmatpush.msra.mxu0 0.0
  %787 = vmatpush.msra.mxu0 0.0
  %788 = vmatpush.msra.mxu0 0.0
  %789 = vmatpush.msra.mxu0 0.0
  %790 = vmatpush.msra.mxu0 0.0
  %791 = vmatpush.msra.mxu0 0.0
  %792 = vmatpush.msra.mxu0 0.0
  %793 = vmatpush.msra.mxu0 0.0
  %794 = vmatpush.msra.mxu0 0.0
  %795 = vmatpush.msra.mxu0 0.0
  %796 = vmatpush.msra.mxu0 %v618
  %797 = vmatmul.f32.gmra.mxu0 %v591
  %v798 = vpop.f32.mrf.mxu0
  %v799 = vadd.f32 0.0, %v798
  %800 = vmatmul.f32.gmra.mxu0 %v594
  %v801 = vpop.f32.mrf.mxu0
  %v802 = vadd.f32 0.0, %v801
  %803 = vdwg.mxu0
  %v804 = vadd.f32 %v373, %v638
  %v805 = vadd.f32 %v396, %v661
  %v806 = vadd.f32 %v419, %v684
  %v807 = vadd.f32 %v442, %v707
  %v808 = vadd.f32 %v465, %v730
  %v809 = vadd.f32 %v488, %v753
  %v810 = vadd.f32 %v511, %v776
  %v811 = vadd.f32 %v534, %v799
  %v812 = vadd.f32 %v376, %v641
  %v813 = vadd.f32 %v399, %v664
  %v814 = vadd.f32 %v422, %v687
  %v815 = vadd.f32 %v445, %v710
  %v816 = vadd.f32 %v468, %v733
  %v817 = vadd.f32 %v491, %v756
  %v818 = vadd.f32 %v514, %v779
  %v819 = vadd.f32 %v537, %v802
  %821 = vset.pattern.permute.xlu0 0
  %822 = vperm.xlu0 %821, %v41
  %v823 = vpop.permute.xlu0 %822
  %826 = vset.pattern.permute.xlu0 0
  %827 = vperm.xlu0 %826, %v42
  %v828 = vpop.permute.xlu0 %827
  %v830 = vadd.f32 %v804, %v823
  %v831 = vadd.f32 %v805, %v823
  %v832 = vadd.f32 %v806, %v823
  %v833 = vadd.f32 %v807, %v823
  %v834 = vadd.f32 %v808, %v823
  %v835 = vadd.f32 %v809, %v823
  %v836 = vadd.f32 %v810, %v823
  %v837 = vadd.f32 %v811, %v823
  %v838 = vadd.f32 %v812, %v828
  %v839 = vadd.f32 %v813, %v828
  %v840 = vadd.f32 %v814, %v828
  %v841 = vadd.f32 %v815, %v828
  %v842 = vadd.f32 %v816, %v828
  %v843 = vadd.f32 %v817, %v828
  %v844 = vadd.f32 %v818, %v828
  %v845 = vadd.f32 %v819, %v828
  %v846 = vmax.f32 %v830, 0.0
  %v847 = vmax.f32 %v831, 0.0
  %v848 = vmax.f32 %v832, 0.0
  %v849 = vmax.f32 %v833, 0.0
  %v850 = vmax.f32 %v834, 0.0
  %v851 = vmax.f32 %v835, 0.0
  %v852 = vmax.f32 %v836, 0.0
  %v853 = vmax.f32 %v837, 0.0
  %v854 = vmax.f32 %v838, 0.0
  %v855 = vmax.f32 %v839, 0.0
  %v856 = vmax.f32 %v840, 0.0
  %v857 = vmax.f32 %v841, 0.0
  %v858 = vmax.f32 %v842, 0.0
  %v859 = vmax.f32 %v843, 0.0
  %v860 = vmax.f32 %v844, 0.0
  %v861 = vmax.f32 %v845, 0.0
  %v863 = vperm.slane %v35, 0
  %v864 = vperm.slane %v35, 1
  %v865 = vperm.slane %v35, 2
  %v866 = vperm.slane %v35, 3
  %v867 = vperm.slane %v35, 4
  %v868 = vperm.slane %v35, 5
  %v869 = vperm.slane %v35, 6
  %v870 = vperm.slane %v35, 7
  %v879 = vmul.f32 %v846, %v863
  %v880 = vmul.f32 %v847, %v864
  %v881 = vmul.f32 %v848, %v865
  %v882 = vmul.f32 %v849, %v866
  %v883 = vmul.f32 %v850, %v867
  %v884 = vmul.f32 %v851, %v868
  %v885 = vmul.f32 %v852, %v869
  %v886 = vmul.f32 %v853, %v870
  %v887 = vmul.f32 %v854, %v863
  %v888 = vmul.f32 %v855, %v864
  %v889 = vmul.f32 %v856, %v865
  %v890 = vmul.f32 %v857, %v866
  %v891 = vmul.f32 %v858, %v867
  %v892 = vmul.f32 %v859, %v868
  %v893 = vmul.f32 %v860, %v869
  %v894 = vmul.f32 %v861, %v870
  %s895 = scalar_lea.vmem %s5, 16
  %v896 = vld [vmem:[%s895] sm:$0xff]
  %v897 = vld [vmem:[%s895 + $0x8] sm:$0xff]
  %s898 = scalar_lea.vmem %s2, 16
  %v899 = vld [vmem:[%s898] sm:$0xff]
  %v900 = vld [vmem:[%s898 + $0x8] sm:$0xff]
  %v901 = vld [vmem:[%s2] sm:$0xff]
  %v902 = vld [vmem:[%s2 + $0x8] sm:$0xff]
  %903 = vrot.lane.b32.xlu0 %v879, 1
  %v904 = vpop.permute.xlu0 %903
  %905 = vrot.lane.b32.xlu0 %v887, 1
  %v906 = vpop.permute.xlu0 %905
  %907 = vrot.lane.b32.xlu0 %v880, 1
  %v908 = vpop.permute.xlu0 %907
  %909 = vrot.lane.b32.xlu0 %v888, 1
  %v910 = vpop.permute.xlu0 %909
  %911 = vrot.lane.b32.xlu0 %v881, 1
  %v912 = vpop.permute.xlu0 %911
  %913 = vrot.lane.b32.xlu0 %v889, 1
  %v914 = vpop.permute.xlu0 %913
  %915 = vrot.lane.b32.xlu0 %v882, 1
  %v916 = vpop.permute.xlu0 %915
  %917 = vrot.lane.b32.xlu0 %v890, 1
  %v918 = vpop.permute.xlu0 %917
  %919 = vrot.lane.b32.xlu0 %v883, 1
  %v920 = vpop.permute.xlu0 %919
  %921 = vrot.lane.b32.xlu0 %v891, 1
  %v922 = vpop.permute.xlu0 %921
  %923 = vrot.lane.b32.xlu0 %v884, 1
  %v924 = vpop.permute.xlu0 %923
  %925 = vrot.lane.b32.xlu0 %v892, 1
  %v926 = vpop.permute.xlu0 %925
  %927 = vrot.lane.b32.xlu0 %v885, 1
  %v928 = vpop.permute.xlu0 %927
  %929 = vrot.lane.b32.xlu0 %v893, 1
  %v930 = vpop.permute.xlu0 %929
  %931 = vrot.lane.b32.xlu0 %v886, 1
  %v932 = vpop.permute.xlu0 %931
  %933 = vrot.lane.b32.xlu0 %v894, 1
  %v934 = vpop.permute.xlu0 %933
  %v935 = vsel %vm93, %v928, %v932
  %v936 = vsel %vm93, %v930, %v934
  %v937 = vsel %vm93, %v924, %v928
  %v938 = vsel %vm93, %v926, %v930
  %v939 = vsel %vm93, %v920, %v924
  %v940 = vsel %vm93, %v922, %v926
  %v941 = vsel %vm93, %v916, %v920
  %v942 = vsel %vm93, %v918, %v922
  %v943 = vsel %vm93, %v912, %v916
  %v944 = vsel %vm93, %v914, %v918
  %v945 = vsel %vm93, %v908, %v912
  %v946 = vsel %vm93, %v910, %v914
  %v947 = vsel %vm93, %v904, %v908
  %v948 = vsel %vm93, %v906, %v910
  %v949 = vsel %vm93, %v932, %v904
  %v950 = vsel %vm93, %v934, %v906
  %vm951 = vcmask 130048
  %v953 = vsel %vm951, %v901, 0
  %v956 = vsel %vm951, %v902, 0
  %958 = vmatpush.msra.mxu0 0.0
  %959 = vmatpush.msra.mxu0 0.0
  %960 = vmatpush.msra.mxu0 0.0
  %961 = vmatpush.msra.mxu0 0.0
  %962 = vmatpush.msra.mxu0 0.0
  %963 = vmatpush.msra.mxu0 0.0
  %964 = vmatpush.msra.mxu0 0.0
  %965 = vmatpush.msra.mxu0 0.0
  %966 = vmatpush.msra.mxu0 0.0
  %967 = vmatpush.msra.mxu0 0.0
  %968 = vmatpush.msra.mxu0 0.0
  %969 = vmatpush.msra.mxu0 0.0
  %970 = vmatpush.msra.mxu0 0.0
  %971 = vmatpush.msra.mxu0 0.0
  %972 = vmatpush.msra.mxu0 %v950
  %973 = vmatpush.msra.mxu0 %v949
  %974 = vmatmul.f32.gmra.mxu0 %v953
  %v975 = vpop.f32.mrf.mxu0
  %v976 = vadd.f32 0.0, %v975
  %977 = vmatmul.f32.gmra.mxu0 %v956
  %v978 = vpop.f32.mrf.mxu0
  %v979 = vadd.f32 0.0, %v978
  %980 = vdwg.mxu0
  %981 = vmatpush.msra.mxu0 0.0
  %982 = vmatpush.msra.mxu0 0.0
  %983 = vmatpush.msra.mxu0 0.0
  %984 = vmatpush.msra.mxu0 0.0
  %985 = vmatpush.msra.mxu0 0.0
  %986 = vmatpush.msra.mxu0 0.0
  %987 = vmatpush.msra.mxu0 0.0
  %988 = vmatpush.msra.mxu0 0.0
  %989 = vmatpush.msra.mxu0 0.0
  %990 = vmatpush.msra.mxu0 0.0
  %991 = vmatpush.msra.mxu0 0.0
  %992 = vmatpush.msra.mxu0 0.0
  %993 = vmatpush.msra.mxu0 0.0
  %994 = vmatpush.msra.mxu0 0.0
  %995 = vmatpush.msra.mxu0 %v948
  %996 = vmatpush.msra.mxu0 %v947
  %997 = vmatmul.f32.gmra.mxu0 %v953
  %v998 = vpop.f32.mrf.mxu0
  %v999 = vadd.f32 0.0, %v998
  %1000 = vmatmul.f32.gmra.mxu0 %v956
  %v1001 = vpop.f32.mrf.mxu0
  %v1002 = vadd.f32 0.0, %v1001
  %1003 = vdwg.mxu0
  %1004 = vmatpush.msra.mxu0 0.0
  %1005 = vmatpush.msra.mxu0 0.0
  %1006 = vmatpush.msra.mxu0 0.0
  %1007 = vmatpush.msra.mxu0 0.0
  %1008 = vmatpush.msra.mxu0 0.0
  %1009 = vmatpush.msra.mxu0 0.0
  %1010 = vmatpush.msra.mxu0 0.0
  %1011 = vmatpush.msra.mxu0 0.0
  %1012 = vmatpush.msra.mxu0 0.0
  %1013 = vmatpush.msra.mxu0 0.0
  %1014 = vmatpush.msra.mxu0 0.0
  %1015 = vmatpush.msra.mxu0 0.0
  %1016 = vmatpush.msra.mxu0 0.0
  %1017 = vmatpush.msra.mxu0 0.0
  %1018 = vmatpush.msra.mxu0 %v946
  %1019 = vmatpush.msra.mxu0 %v945
  %1020 = vmatmul.f32.gmra.mxu0 %v953
  %v1021 = vpop.f32.mrf.mxu0
  %v1022 = vadd.f32 0.0, %v1021
  %1023 = vmatmul.f32.gmra.mxu0 %v956
  %v1024 = vpop.f32.mrf.mxu0
  %v1025 = vadd.f32 0.0, %v1024
  %1026 = vdwg.mxu0
  %1027 = vmatpush.msra.mxu0 0.0
  %1028 = vmatpush.msra.mxu0 0.0
  %1029 = vmatpush.msra.mxu0 0.0
  %1030 = vmatpush.msra.mxu0 0.0
  %1031 = vmatpush.msra.mxu0 0.0
  %1032 = vmatpush.msra.mxu0 0.0
  %1033 = vmatpush.msra.mxu0 0.0
  %1034 = vmatpush.msra.mxu0 0.0
  %1035 = vmatpush.msra.mxu0 0.0
  %1036 = vmatpush.msra.mxu0 0.0
  %1037 = vmatpush.msra.mxu0 0.0
  %1038 = vmatpush.msra.mxu0 0.0
  %1039 = vmatpush.msra.mxu0 0.0
  %1040 = vmatpush.msra.mxu0 0.0
  %1041 = vmatpush.msra.mxu0 %v944
  %1042 = vmatpush.msra.mxu0 %v943
  %1043 = vmatmul.f32.gmra.mxu0 %v953
  %v1044 = vpop.f32.mrf.mxu0
  %v1045 = vadd.f32 0.0, %v1044
  %1046 = vmatmul.f32.gmra.mxu0 %v956
  %v1047 = vpop.f32.mrf.mxu0
  %v1048 = vadd.f32 0.0, %v1047
  %1049 = vdwg.mxu0
  %1050 = vmatpush.msra.mxu0 0.0
  %1051 = vmatpush.msra.mxu0 0.0
  %1052 = vmatpush.msra.mxu0 0.0
  %1053 = vmatpush.msra.mxu0 0.0
  %1054 = vmatpush.msra.mxu0 0.0
  %1055 = vmatpush.msra.mxu0 0.0
  %1056 = vmatpush.msra.mxu0 0.0
  %1057 = vmatpush.msra.mxu0 0.0
  %1058 = vmatpush.msra.mxu0 0.0
  %1059 = vmatpush.msra.mxu0 0.0
  %1060 = vmatpush.msra.mxu0 0.0
  %1061 = vmatpush.msra.mxu0 0.0
  %1062 = vmatpush.msra.mxu0 0.0
  %1063 = vmatpush.msra.mxu0 0.0
  %1064 = vmatpush.msra.mxu0 %v942
  %1065 = vmatpush.msra.mxu0 %v941
  %1066 = vmatmul.f32.gmra.mxu0 %v953
  %v1067 = vpop.f32.mrf.mxu0
  %v1068 = vadd.f32 0.0, %v1067
  %1069 = vmatmul.f32.gmra.mxu0 %v956
  %v1070 = vpop.f32.mrf.mxu0
  %v1071 = vadd.f32 0.0, %v1070
  %1072 = vdwg.mxu0
  %1073 = vmatpush.msra.mxu0 0.0
  %1074 = vmatpush.msra.mxu0 0.0
  %1075 = vmatpush.msra.mxu0 0.0
  %1076 = vmatpush.msra.mxu0 0.0
  %1077 = vmatpush.msra.mxu0 0.0
  %1078 = vmatpush.msra.mxu0 0.0
  %1079 = vmatpush.msra.mxu0 0.0
  %1080 = vmatpush.msra.mxu0 0.0
  %1081 = vmatpush.msra.mxu0 0.0
  %1082 = vmatpush.msra.mxu0 0.0
  %1083 = vmatpush.msra.mxu0 0.0
  %1084 = vmatpush.msra.mxu0 0.0
  %1085 = vmatpush.msra.mxu0 0.0
  %1086 = vmatpush.msra.mxu0 0.0
  %1087 = vmatpush.msra.mxu0 %v940
  %1088 = vmatpush.msra.mxu0 %v939
  %1089 = vmatmul.f32.gmra.mxu0 %v953
  %v1090 = vpop.f32.mrf.mxu0
  %v1091 = vadd.f32 0.0, %v1090
  %1092 = vmatmul.f32.gmra.mxu0 %v956
  %v1093 = vpop.f32.mrf.mxu0
  %v1094 = vadd.f32 0.0, %v1093
  %1095 = vdwg.mxu0
  %1096 = vmatpush.msra.mxu0 0.0
  %1097 = vmatpush.msra.mxu0 0.0
  %1098 = vmatpush.msra.mxu0 0.0
  %1099 = vmatpush.msra.mxu0 0.0
  %1100 = vmatpush.msra.mxu0 0.0
  %1101 = vmatpush.msra.mxu0 0.0
  %1102 = vmatpush.msra.mxu0 0.0
  %1103 = vmatpush.msra.mxu0 0.0
  %1104 = vmatpush.msra.mxu0 0.0
  %1105 = vmatpush.msra.mxu0 0.0
  %1106 = vmatpush.msra.mxu0 0.0
  %1107 = vmatpush.msra.mxu0 0.0
  %1108 = vmatpush.msra.mxu0 0.0
  %1109 = vmatpush.msra.mxu0 0.0
  %1110 = vmatpush.msra.mxu0 %v938
  %1111 = vmatpush.msra.mxu0 %v937
  %1112 = vmatmul.f32.gmra.mxu0 %v953
  %v1113 = vpop.f32.mrf.mxu0
  %v1114 = vadd.f32 0.0, %v1113
  %1115 = vmatmul.f32.gmra.mxu0 %v956
  %v1116 = vpop.f32.mrf.mxu0
  %v1117 = vadd.f32 0.0, %v1116
  %1118 = vdwg.mxu0
  %1119 = vmatpush.msra.mxu0 0.0
  %1120 = vmatpush.msra.mxu0 0.0
  %1121 = vmatpush.msra.mxu0 0.0
  %1122 = vmatpush.msra.mxu0 0.0
  %1123 = vmatpush.msra.mxu0 0.0
  %1124 = vmatpush.msra.mxu0 0.0
  %1125 = vmatpush.msra.mxu0 0.0
  %1126 = vmatpush.msra.mxu0 0.0
  %1127 = vmatpush.msra.mxu0 0.0
  %1128 = vmatpush.msra.mxu0 0.0
  %1129 = vmatpush.msra.mxu0 0.0
  %1130 = vmatpush.msra.mxu0 0.0
  %1131 = vmatpush.msra.mxu0 0.0
  %1132 = vmatpush.msra.mxu0 0.0
  %1133 = vmatpush.msra.mxu0 %v936
  %1134 = vmatpush.msra.mxu0 %v935
  %1135 = vmatmul.f32.gmra.mxu0 %v953
  %v1136 = vpop.f32.mrf.mxu0
  %v1137 = vadd.f32 0.0, %v1136
  %1138 = vmatmul.f32.gmra.mxu0 %v956
  %v1139 = vpop.f32.mrf.mxu0
  %v1140 = vadd.f32 0.0, %v1139
  %1141 = vdwg.mxu0
  %v1143 = vsel %vm951, %v899, 0
  %v1146 = vsel %vm951, %v900, 0
  %1148 = vmatpush.msra.mxu0 0.0
  %1149 = vmatpush.msra.mxu0 0.0
  %1150 = vmatpush.msra.mxu0 0.0
  %1151 = vmatpush.msra.mxu0 0.0
  %1152 = vmatpush.msra.mxu0 0.0
  %1153 = vmatpush.msra.mxu0 0.0
  %1154 = vmatpush.msra.mxu0 0.0
  %1155 = vmatpush.msra.mxu0 0.0
  %1156 = vmatpush.msra.mxu0 0.0
  %1157 = vmatpush.msra.mxu0 0.0
  %1158 = vmatpush.msra.mxu0 0.0
  %1159 = vmatpush.msra.mxu0 0.0
  %1160 = vmatpush.msra.mxu0 0.0
  %1161 = vmatpush.msra.mxu0 0.0
  %1162 = vmatpush.msra.mxu0 %v887
  %1163 = vmatpush.msra.mxu0 %v879
  %1164 = vmatmul.f32.gmra.mxu0 %v1143
  %v1165 = vpop.f32.mrf.mxu0
  %v1166 = vadd.f32 %v976, %v1165
  %1167 = vmatmul.f32.gmra.mxu0 %v1146
  %v1168 = vpop.f32.mrf.mxu0
  %v1169 = vadd.f32 %v979, %v1168
  %1170 = vdwg.mxu0
  %1171 = vmatpush.msra.mxu0 0.0
  %1172 = vmatpush.msra.mxu0 0.0
  %1173 = vmatpush.msra.mxu0 0.0
  %1174 = vmatpush.msra.mxu0 0.0
  %1175 = vmatpush.msra.mxu0 0.0
  %1176 = vmatpush.msra.mxu0 0.0
  %1177 = vmatpush.msra.mxu0 0.0
  %1178 = vmatpush.msra.mxu0 0.0
  %1179 = vmatpush.msra.mxu0 0.0
  %1180 = vmatpush.msra.mxu0 0.0
  %1181 = vmatpush.msra.mxu0 0.0
  %1182 = vmatpush.msra.mxu0 0.0
  %1183 = vmatpush.msra.mxu0 0.0
  %1184 = vmatpush.msra.mxu0 0.0
  %1185 = vmatpush.msra.mxu0 %v888
  %1186 = vmatpush.msra.mxu0 %v880
  %1187 = vmatmul.f32.gmra.mxu0 %v1143
  %v1188 = vpop.f32.mrf.mxu0
  %v1189 = vadd.f32 %v999, %v1188
  %1190 = vmatmul.f32.gmra.mxu0 %v1146
  %v1191 = vpop.f32.mrf.mxu0
  %v1192 = vadd.f32 %v1002, %v1191
  %1193 = vdwg.mxu0
  %1194 = vmatpush.msra.mxu0 0.0
  %1195 = vmatpush.msra.mxu0 0.0
  %1196 = vmatpush.msra.mxu0 0.0
  %1197 = vmatpush.msra.mxu0 0.0
  %1198 = vmatpush.msra.mxu0 0.0
  %1199 = vmatpush.msra.mxu0 0.0
  %1200 = vmatpush.msra.mxu0 0.0
  %1201 = vmatpush.msra.mxu0 0.0
  %1202 = vmatpush.msra.mxu0 0.0
  %1203 = vmatpush.msra.mxu0 0.0
  %1204 = vmatpush.msra.mxu0 0.0
  %1205 = vmatpush.msra.mxu0 0.0
  %1206 = vmatpush.msra.mxu0 0.0
  %1207 = vmatpush.msra.mxu0 0.0
  %1208 = vmatpush.msra.mxu0 %v889
  %1209 = vmatpush.msra.mxu0 %v881
  %1210 = vmatmul.f32.gmra.mxu0 %v1143
  %v1211 = vpop.f32.mrf.mxu0
  %v1212 = vadd.f32 %v1022, %v1211
  %1213 = vmatmul.f32.gmra.mxu0 %v1146
  %v1214 = vpop.f32.mrf.mxu0
  %v1215 = vadd.f32 %v1025, %v1214
  %1216 = vdwg.mxu0
  %1217 = vmatpush.msra.mxu0 0.0
  %1218 = vmatpush.msra.mxu0 0.0
  %1219 = vmatpush.msra.mxu0 0.0
  %1220 = vmatpush.msra.mxu0 0.0
  %1221 = vmatpush.msra.mxu0 0.0
  %1222 = vmatpush.msra.mxu0 0.0
  %1223 = vmatpush.msra.mxu0 0.0
  %1224 = vmatpush.msra.mxu0 0.0
  %1225 = vmatpush.msra.mxu0 0.0
  %1226 = vmatpush.msra.mxu0 0.0
  %1227 = vmatpush.msra.mxu0 0.0
  %1228 = vmatpush.msra.mxu0 0.0
  %1229 = vmatpush.msra.mxu0 0.0
  %1230 = vmatpush.msra.mxu0 0.0
  %1231 = vmatpush.msra.mxu0 %v890
  %1232 = vmatpush.msra.mxu0 %v882
  %1233 = vmatmul.f32.gmra.mxu0 %v1143
  %v1234 = vpop.f32.mrf.mxu0
  %v1235 = vadd.f32 %v1045, %v1234
  %1236 = vmatmul.f32.gmra.mxu0 %v1146
  %v1237 = vpop.f32.mrf.mxu0
  %v1238 = vadd.f32 %v1048, %v1237
  %1239 = vdwg.mxu0
  %1240 = vmatpush.msra.mxu0 0.0
  %1241 = vmatpush.msra.mxu0 0.0
  %1242 = vmatpush.msra.mxu0 0.0
  %1243 = vmatpush.msra.mxu0 0.0
  %1244 = vmatpush.msra.mxu0 0.0
  %1245 = vmatpush.msra.mxu0 0.0
  %1246 = vmatpush.msra.mxu0 0.0
  %1247 = vmatpush.msra.mxu0 0.0
  %1248 = vmatpush.msra.mxu0 0.0
  %1249 = vmatpush.msra.mxu0 0.0
  %1250 = vmatpush.msra.mxu0 0.0
  %1251 = vmatpush.msra.mxu0 0.0
  %1252 = vmatpush.msra.mxu0 0.0
  %1253 = vmatpush.msra.mxu0 0.0
  %1254 = vmatpush.msra.mxu0 %v891
  %1255 = vmatpush.msra.mxu0 %v883
  %1256 = vmatmul.f32.gmra.mxu0 %v1143
  %v1257 = vpop.f32.mrf.mxu0
  %v1258 = vadd.f32 %v1068, %v1257
  %1259 = vmatmul.f32.gmra.mxu0 %v1146
  %v1260 = vpop.f32.mrf.mxu0
  %v1261 = vadd.f32 %v1071, %v1260
  %1262 = vdwg.mxu0
  %1263 = vmatpush.msra.mxu0 0.0
  %1264 = vmatpush.msra.mxu0 0.0
  %1265 = vmatpush.msra.mxu0 0.0
  %1266 = vmatpush.msra.mxu0 0.0
  %1267 = vmatpush.msra.mxu0 0.0
  %1268 = vmatpush.msra.mxu0 0.0
  %1269 = vmatpush.msra.mxu0 0.0
  %1270 = vmatpush.msra.mxu0 0.0
  %1271 = vmatpush.msra.mxu0 0.0
  %1272 = vmatpush.msra.mxu0 0.0
  %1273 = vmatpush.msra.mxu0 0.0
  %1274 = vmatpush.msra.mxu0 0.0
  %1275 = vmatpush.msra.mxu0 0.0
  %1276 = vmatpush.msra.mxu0 0.0
  %1277 = vmatpush.msra.mxu0 %v892
  %1278 = vmatpush.msra.mxu0 %v884
  %1279 = vmatmul.f32.gmra.mxu0 %v1143
  %v1280 = vpop.f32.mrf.mxu0
  %v1281 = vadd.f32 %v1091, %v1280
  %1282 = vmatmul.f32.gmra.mxu0 %v1146
  %v1283 = vpop.f32.mrf.mxu0
  %v1284 = vadd.f32 %v1094, %v1283
  %1285 = vdwg.mxu0
  %1286 = vmatpush.msra.mxu0 0.0
  %1287 = vmatpush.msra.mxu0 0.0
  %1288 = vmatpush.msra.mxu0 0.0
  %1289 = vmatpush.msra.mxu0 0.0
  %1290 = vmatpush.msra.mxu0 0.0
  %1291 = vmatpush.msra.mxu0 0.0
  %1292 = vmatpush.msra.mxu0 0.0
  %1293 = vmatpush.msra.mxu0 0.0
  %1294 = vmatpush.msra.mxu0 0.0
  %1295 = vmatpush.msra.mxu0 0.0
  %1296 = vmatpush.msra.mxu0 0.0
  %1297 = vmatpush.msra.mxu0 0.0
  %1298 = vmatpush.msra.mxu0 0.0
  %1299 = vmatpush.msra.mxu0 0.0
  %1300 = vmatpush.msra.mxu0 %v893
  %1301 = vmatpush.msra.mxu0 %v885
  %1302 = vmatmul.f32.gmra.mxu0 %v1143
  %v1303 = vpop.f32.mrf.mxu0
  %v1304 = vadd.f32 %v1114, %v1303
  %1305 = vmatmul.f32.gmra.mxu0 %v1146
  %v1306 = vpop.f32.mrf.mxu0
  %v1307 = vadd.f32 %v1117, %v1306
  %1308 = vdwg.mxu0
  %1309 = vmatpush.msra.mxu0 0.0
  %1310 = vmatpush.msra.mxu0 0.0
  %1311 = vmatpush.msra.mxu0 0.0
  %1312 = vmatpush.msra.mxu0 0.0
  %1313 = vmatpush.msra.mxu0 0.0
  %1314 = vmatpush.msra.mxu0 0.0
  %1315 = vmatpush.msra.mxu0 0.0
  %1316 = vmatpush.msra.mxu0 0.0
  %1317 = vmatpush.msra.mxu0 0.0
  %1318 = vmatpush.msra.mxu0 0.0
  %1319 = vmatpush.msra.mxu0 0.0
  %1320 = vmatpush.msra.mxu0 0.0
  %1321 = vmatpush.msra.mxu0 0.0
  %1322 = vmatpush.msra.mxu0 0.0
  %1323 = vmatpush.msra.mxu0 %v894
  %1324 = vmatpush.msra.mxu0 %v886
  %1325 = vmatmul.f32.gmra.mxu0 %v1143
  %v1326 = vpop.f32.mrf.mxu0
  %v1327 = vadd.f32 %v1137, %v1326
  %1328 = vmatmul.f32.gmra.mxu0 %v1146
  %v1329 = vpop.f32.mrf.mxu0
  %v1330 = vadd.f32 %v1140, %v1329
  %1331 = vdwg.mxu0
  %s1332 = scalar_lea.vmem %s2, 32
  %v1333 = vld [vmem:[%s1332] sm:$0xff]
  %v1334 = vld [vmem:[%s1332 + $0x8] sm:$0xff]
  %1335 = vrot.lane.b32.xlu0 %v879, 127
  %v1336 = vpop.permute.xlu0 %1335
  %1337 = vrot.lane.b32.xlu0 %v887, 127
  %v1338 = vpop.permute.xlu0 %1337
  %1339 = vrot.lane.b32.xlu0 %v880, 127
  %v1340 = vpop.permute.xlu0 %1339
  %1341 = vrot.lane.b32.xlu0 %v888, 127
  %v1342 = vpop.permute.xlu0 %1341
  %1343 = vrot.lane.b32.xlu0 %v881, 127
  %v1344 = vpop.permute.xlu0 %1343
  %1345 = vrot.lane.b32.xlu0 %v889, 127
  %v1346 = vpop.permute.xlu0 %1345
  %1347 = vrot.lane.b32.xlu0 %v882, 127
  %v1348 = vpop.permute.xlu0 %1347
  %1349 = vrot.lane.b32.xlu0 %v890, 127
  %v1350 = vpop.permute.xlu0 %1349
  %1351 = vrot.lane.b32.xlu0 %v883, 127
  %v1352 = vpop.permute.xlu0 %1351
  %1353 = vrot.lane.b32.xlu0 %v891, 127
  %v1354 = vpop.permute.xlu0 %1353
  %1355 = vrot.lane.b32.xlu0 %v884, 127
  %v1356 = vpop.permute.xlu0 %1355
  %1357 = vrot.lane.b32.xlu0 %v892, 127
  %v1358 = vpop.permute.xlu0 %1357
  %1359 = vrot.lane.b32.xlu0 %v885, 127
  %v1360 = vpop.permute.xlu0 %1359
  %1361 = vrot.lane.b32.xlu0 %v893, 127
  %v1362 = vpop.permute.xlu0 %1361
  %1363 = vrot.lane.b32.xlu0 %v886, 127
  %v1364 = vpop.permute.xlu0 %1363
  %1365 = vrot.lane.b32.xlu0 %v894, 127
  %v1366 = vpop.permute.xlu0 %1365
  %v1367 = vsel %vm581, %v1360, %v1364
  %v1368 = vsel %vm581, %v1362, %v1366
  %v1369 = vsel %vm581, %v1356, %v1360
  %v1370 = vsel %vm581, %v1358, %v1362
  %v1371 = vsel %vm581, %v1352, %v1356
  %v1372 = vsel %vm581, %v1354, %v1358
  %v1373 = vsel %vm581, %v1348, %v1352
  %v1374 = vsel %vm581, %v1350, %v1354
  %v1375 = vsel %vm581, %v1344, %v1348
  %v1376 = vsel %vm581, %v1346, %v1350
  %v1377 = vsel %vm581, %v1340, %v1344
  %v1378 = vsel %vm581, %v1342, %v1346
  %v1379 = vsel %vm581, %v1336, %v1340
  %v1380 = vsel %vm581, %v1338, %v1342
  %v1381 = vsel %vm581, %v1364, %v1336
  %v1382 = vsel %vm581, %v1366, %v1338
  %v1384 = vsel %vm951, %v1333, 0
  %v1387 = vsel %vm951, %v1334, 0
  %1389 = vmatpush.msra.mxu0 0.0
  %1390 = vmatpush.msra.mxu0 0.0
  %1391 = vmatpush.msra.mxu0 0.0
  %1392 = vmatpush.msra.mxu0 0.0
  %1393 = vmatpush.msra.mxu0 0.0
  %1394 = vmatpush.msra.mxu0 0.0
  %1395 = vmatpush.msra.mxu0 0.0
  %1396 = vmatpush.msra.mxu0 0.0
  %1397 = vmatpush.msra.mxu0 0.0
  %1398 = vmatpush.msra.mxu0 0.0
  %1399 = vmatpush.msra.mxu0 0.0
  %1400 = vmatpush.msra.mxu0 0.0
  %1401 = vmatpush.msra.mxu0 0.0
  %1402 = vmatpush.msra.mxu0 0.0
  %1403 = vmatpush.msra.mxu0 %v1380
  %1404 = vmatpush.msra.mxu0 %v1379
  %1405 = vmatmul.f32.gmra.mxu0 %v1384
  %v1406 = vpop.f32.mrf.mxu0
  %v1407 = vadd.f32 0.0, %v1406
  %1408 = vmatmul.f32.gmra.mxu0 %v1387
  %v1409 = vpop.f32.mrf.mxu0
  %v1410 = vadd.f32 0.0, %v1409
  %1411 = vdwg.mxu0
  %1412 = vmatpush.msra.mxu0 0.0
  %1413 = vmatpush.msra.mxu0 0.0
  %1414 = vmatpush.msra.mxu0 0.0
  %1415 = vmatpush.msra.mxu0 0.0
  %1416 = vmatpush.msra.mxu0 0.0
  %1417 = vmatpush.msra.mxu0 0.0
  %1418 = vmatpush.msra.mxu0 0.0
  %1419 = vmatpush.msra.mxu0 0.0
  %1420 = vmatpush.msra.mxu0 0.0
  %1421 = vmatpush.msra.mxu0 0.0
  %1422 = vmatpush.msra.mxu0 0.0
  %1423 = vmatpush.msra.mxu0 0.0
  %1424 = vmatpush.msra.mxu0 0.0
  %1425 = vmatpush.msra.mxu0 0.0
  %1426 = vmatpush.msra.mxu0 %v1378
  %1427 = vmatpush.msra.mxu0 %v1377
  %1428 = vmatmul.f32.gmra.mxu0 %v1384
  %v1429 = vpop.f32.mrf.mxu0
  %v1430 = vadd.f32 0.0, %v1429
  %1431 = vmatmul.f32.gmra.mxu0 %v1387
  %v1432 = vpop.f32.mrf.mxu0
  %v1433 = vadd.f32 0.0, %v1432
  %1434 = vdwg.mxu0
  %1435 = vmatpush.msra.mxu0 0.0
  %1436 = vmatpush.msra.mxu0 0.0
  %1437 = vmatpush.msra.mxu0 0.0
  %1438 = vmatpush.msra.mxu0 0.0
  %1439 = vmatpush.msra.mxu0 0.0
  %1440 = vmatpush.msra.mxu0 0.0
  %1441 = vmatpush.msra.mxu0 0.0
  %1442 = vmatpush.msra.mxu0 0.0
  %1443 = vmatpush.msra.mxu0 0.0
  %1444 = vmatpush.msra.mxu0 0.0
  %1445 = vmatpush.msra.mxu0 0.0
  %1446 = vmatpush.msra.mxu0 0.0
  %1447 = vmatpush.msra.mxu0 0.0
  %1448 = vmatpush.msra.mxu0 0.0
  %1449 = vmatpush.msra.mxu0 %v1376
  %1450 = vmatpush.msra.mxu0 %v1375
  %1451 = vmatmul.f32.gmra.mxu0 %v1384
  %v1452 = vpop.f32.mrf.mxu0
  %v1453 = vadd.f32 0.0, %v1452
  %1454 = vmatmul.f32.gmra.mxu0 %v1387
  %v1455 = vpop.f32.mrf.mxu0
  %v1456 = vadd.f32 0.0, %v1455
  %1457 = vdwg.mxu0
  %1458 = vmatpush.msra.mxu0 0.0
  %1459 = vmatpush.msra.mxu0 0.0
  %1460 = vmatpush.msra.mxu0 0.0
  %1461 = vmatpush.msra.mxu0 0.0
  %1462 = vmatpush.msra.mxu0 0.0
  %1463 = vmatpush.msra.mxu0 0.0
  %1464 = vmatpush.msra.mxu0 0.0
  %1465 = vmatpush.msra.mxu0 0.0
  %1466 = vmatpush.msra.mxu0 0.0
  %1467 = vmatpush.msra.mxu0 0.0
  %1468 = vmatpush.msra.mxu0 0.0
  %1469 = vmatpush.msra.mxu0 0.0
  %1470 = vmatpush.msra.mxu0 0.0
  %1471 = vmatpush.msra.mxu0 0.0
  %1472 = vmatpush.msra.mxu0 %v1374
  %1473 = vmatpush.msra.mxu0 %v1373
  %1474 = vmatmul.f32.gmra.mxu0 %v1384
  %v1475 = vpop.f32.mrf.mxu0
  %v1476 = vadd.f32 0.0, %v1475
  %1477 = vmatmul.f32.gmra.mxu0 %v1387
  %v1478 = vpop.f32.mrf.mxu0
  %v1479 = vadd.f32 0.0, %v1478
  %1480 = vdwg.mxu0
  %1481 = vmatpush.msra.mxu0 0.0
  %1482 = vmatpush.msra.mxu0 0.0
  %1483 = vmatpush.msra.mxu0 0.0
  %1484 = vmatpush.msra.mxu0 0.0
  %1485 = vmatpush.msra.mxu0 0.0
  %1486 = vmatpush.msra.mxu0 0.0
  %1487 = vmatpush.msra.mxu0 0.0
  %1488 = vmatpush.msra.mxu0 0.0
  %1489 = vmatpush.msra.mxu0 0.0
  %1490 = vmatpush.msra.mxu0 0.0
  %1491 = vmatpush.msra.mxu0 0.0
  %1492 = vmatpush.msra.mxu0 0.0
  %1493 = vmatpush.msra.mxu0 0.0
  %1494 = vmatpush.msra.mxu0 0.0
  %1495 = vmatpush.msra.mxu0 %v1372
  %1496 = vmatpush.msra.mxu0 %v1371
  %1497 = vmatmul.f32.gmra.mxu0 %v1384
  %v1498 = vpop.f32.mrf.mxu0
  %v1499 = vadd.f32 0.0, %v1498
  %1500 = vmatmul.f32.gmra.mxu0 %v1387
  %v1501 = vpop.f32.mrf.mxu0
  %v1502 = vadd.f32 0.0, %v1501
  %1503 = vdwg.mxu0
  %1504 = vmatpush.msra.mxu0 0.0
  %1505 = vmatpush.msra.mxu0 0.0
  %1506 = vmatpush.msra.mxu0 0.0
  %1507 = vmatpush.msra.mxu0 0.0
  %1508 = vmatpush.msra.mxu0 0.0
  %1509 = vmatpush.msra.mxu0 0.0
  %1510 = vmatpush.msra.mxu0 0.0
  %1511 = vmatpush.msra.mxu0 0.0
  %1512 = vmatpush.msra.mxu0 0.0
  %1513 = vmatpush.msra.mxu0 0.0
  %1514 = vmatpush.msra.mxu0 0.0
  %1515 = vmatpush.msra.mxu0 0.0
  %1516 = vmatpush.msra.mxu0 0.0
  %1517 = vmatpush.msra.mxu0 0.0
  %1518 = vmatpush.msra.mxu0 %v1370
  %1519 = vmatpush.msra.mxu0 %v1369
  %1520 = vmatmul.f32.gmra.mxu0 %v1384
  %v1521 = vpop.f32.mrf.mxu0
  %v1522 = vadd.f32 0.0, %v1521
  %1523 = vmatmul.f32.gmra.mxu0 %v1387
  %v1524 = vpop.f32.mrf.mxu0
  %v1525 = vadd.f32 0.0, %v1524
  %1526 = vdwg.mxu0
  %1527 = vmatpush.msra.mxu0 0.0
  %1528 = vmatpush.msra.mxu0 0.0
  %1529 = vmatpush.msra.mxu0 0.0
  %1530 = vmatpush.msra.mxu0 0.0
  %1531 = vmatpush.msra.mxu0 0.0
  %1532 = vmatpush.msra.mxu0 0.0
  %1533 = vmatpush.msra.mxu0 0.0
  %1534 = vmatpush.msra.mxu0 0.0
  %1535 = vmatpush.msra.mxu0 0.0
  %1536 = vmatpush.msra.mxu0 0.0
  %1537 = vmatpush.msra.mxu0 0.0
  %1538 = vmatpush.msra.mxu0 0.0
  %1539 = vmatpush.msra.mxu0 0.0
  %1540 = vmatpush.msra.mxu0 0.0
  %1541 = vmatpush.msra.mxu0 %v1368
  %1542 = vmatpush.msra.mxu0 %v1367
  %1543 = vmatmul.f32.gmra.mxu0 %v1384
  %v1544 = vpop.f32.mrf.mxu0
  %v1545 = vadd.f32 0.0, %v1544
  %1546 = vmatmul.f32.gmra.mxu0 %v1387
  %v1547 = vpop.f32.mrf.mxu0
  %v1548 = vadd.f32 0.0, %v1547
  %1549 = vdwg.mxu0
  %1550 = vmatpush.msra.mxu0 0.0
  %1551 = vmatpush.msra.mxu0 0.0
  %1552 = vmatpush.msra.mxu0 0.0
  %1553 = vmatpush.msra.mxu0 0.0
  %1554 = vmatpush.msra.mxu0 0.0
  %1555 = vmatpush.msra.mxu0 0.0
  %1556 = vmatpush.msra.mxu0 0.0
  %1557 = vmatpush.msra.mxu0 0.0
  %1558 = vmatpush.msra.mxu0 0.0
  %1559 = vmatpush.msra.mxu0 0.0
  %1560 = vmatpush.msra.mxu0 0.0
  %1561 = vmatpush.msra.mxu0 0.0
  %1562 = vmatpush.msra.mxu0 0.0
  %1563 = vmatpush.msra.mxu0 0.0
  %1564 = vmatpush.msra.mxu0 %v1382
  %1565 = vmatpush.msra.mxu0 %v1381
  %1566 = vmatmul.f32.gmra.mxu0 %v1384
  %v1567 = vpop.f32.mrf.mxu0
  %v1568 = vadd.f32 0.0, %v1567
  %1569 = vmatmul.f32.gmra.mxu0 %v1387
  %v1570 = vpop.f32.mrf.mxu0
  %v1571 = vadd.f32 0.0, %v1570
  %1572 = vdwg.mxu0
  %v1573 = vadd.f32 %v1166, %v1407
  %v1574 = vadd.f32 %v1189, %v1430
  %v1575 = vadd.f32 %v1212, %v1453
  %v1576 = vadd.f32 %v1235, %v1476
  %v1577 = vadd.f32 %v1258, %v1499
  %v1578 = vadd.f32 %v1281, %v1522
  %v1579 = vadd.f32 %v1304, %v1545
  %v1580 = vadd.f32 %v1327, %v1568
  %v1581 = vadd.f32 %v1169, %v1410
  %v1582 = vadd.f32 %v1192, %v1433
  %v1583 = vadd.f32 %v1215, %v1456
  %v1584 = vadd.f32 %v1238, %v1479
  %v1585 = vadd.f32 %v1261, %v1502
  %v1586 = vadd.f32 %v1284, %v1525
  %v1587 = vadd.f32 %v1307, %v1548
  %v1588 = vadd.f32 %v1330, %v1571
  %1590 = vset.pattern.permute.xlu0 0
  %1591 = vperm.xlu0 %1590, %v896
  %v1592 = vpop.permute.xlu0 %1591
  %1595 = vset.pattern.permute.xlu0 0
  %1596 = vperm.xlu0 %1595, %v897
  %v1597 = vpop.permute.xlu0 %1596
  %v1599 = vadd.f32 %v1573, %v1592
  %v1600 = vadd.f32 %v1574, %v1592
  %v1601 = vadd.f32 %v1575, %v1592
  %v1602 = vadd.f32 %v1576, %v1592
  %v1603 = vadd.f32 %v1577, %v1592
  %v1604 = vadd.f32 %v1578, %v1592
  %v1605 = vadd.f32 %v1579, %v1592
  %v1606 = vadd.f32 %v1580, %v1592
  %v1607 = vadd.f32 %v1581, %v1597
  %v1608 = vadd.f32 %v1582, %v1597
  %v1609 = vadd.f32 %v1583, %v1597
  %v1610 = vadd.f32 %v1584, %v1597
  %v1611 = vadd.f32 %v1585, %v1597
  %v1612 = vadd.f32 %v1586, %v1597
  %v1613 = vadd.f32 %v1587, %v1597
  %v1614 = vadd.f32 %v1588, %v1597
  %1615 = vrot.lane.b32.xlu0 %v1599, 127
  %v1616 = vpop.permute.xlu0 %1615
  %1617 = vrot.lane.b32.xlu0 %v1607, 127
  %v1618 = vpop.permute.xlu0 %1617
  %1619 = vrot.lane.b32.xlu0 %v1600, 127
  %v1620 = vpop.permute.xlu0 %1619
  %1621 = vrot.lane.b32.xlu0 %v1608, 127
  %v1622 = vpop.permute.xlu0 %1621
  %1623 = vrot.lane.b32.xlu0 %v1601, 127
  %v1624 = vpop.permute.xlu0 %1623
  %1625 = vrot.lane.b32.xlu0 %v1609, 127
  %v1626 = vpop.permute.xlu0 %1625
  %1627 = vrot.lane.b32.xlu0 %v1602, 127
  %v1628 = vpop.permute.xlu0 %1627
  %1629 = vrot.lane.b32.xlu0 %v1610, 127
  %v1630 = vpop.permute.xlu0 %1629
  %1631 = vrot.lane.b32.xlu0 %v1603, 127
  %v1632 = vpop.permute.xlu0 %1631
  %1633 = vrot.lane.b32.xlu0 %v1611, 127
  %v1634 = vpop.permute.xlu0 %1633
  %1635 = vrot.lane.b32.xlu0 %v1604, 127
  %v1636 = vpop.permute.xlu0 %1635
  %1637 = vrot.lane.b32.xlu0 %v1612, 127
  %v1638 = vpop.permute.xlu0 %1637
  %1639 = vrot.lane.b32.xlu0 %v1605, 127
  %v1640 = vpop.permute.xlu0 %1639
  %1641 = vrot.lane.b32.xlu0 %v1613, 127
  %v1642 = vpop.permute.xlu0 %1641
  %1643 = vrot.lane.b32.xlu0 %v1606, 127
  %v1644 = vpop.permute.xlu0 %1643
  %1645 = vrot.lane.b32.xlu0 %v1614, 127
  %v1646 = vpop.permute.xlu0 %1645
  %v1647 = vsel %vm581, %v1640, %v1644
  %v1648 = vsel %vm581, %v1642, %v1646
  %v1649 = vsel %vm581, %v1636, %v1640
  %v1650 = vsel %vm581, %v1638, %v1642
  %v1651 = vsel %vm581, %v1632, %v1636
  %v1652 = vsel %vm581, %v1634, %v1638
  %v1653 = vsel %vm581, %v1628, %v1632
  %v1654 = vsel %vm581, %v1630, %v1634
  %v1655 = vsel %vm581, %v1624, %v1628
  %v1656 = vsel %vm581, %v1626, %v1630
  %v1657 = vsel %vm581, %v1620, %v1624
  %v1658 = vsel %vm581, %v1622, %v1626
  %v1659 = vsel %vm581, %v1616, %v1620
  %v1660 = vsel %vm581, %v1618, %v1622
  %v1661 = vsel %vm581, %v1644, %v1616
  %v1662 = vsel %vm581, %v1646, %v1618
  %v1663 = vmax.f32 %v1599, %v1659
  %v1664 = vmax.f32 %v1600, %v1657
  %v1665 = vmax.f32 %v1601, %v1655
  %v1666 = vmax.f32 %v1602, %v1653
  %v1667 = vmax.f32 %v1603, %v1651
  %v1668 = vmax.f32 %v1604, %v1649
  %v1669 = vmax.f32 %v1605, %v1647
  %v1670 = vmax.f32 %v1606, %v1661
  %v1671 = vmax.f32 %v1607, %v1660
  %v1672 = vmax.f32 %v1608, %v1658
  %v1673 = vmax.f32 %v1609, %v1656
  %v1674 = vmax.f32 %v1610, %v1654
  %v1675 = vmax.f32 %v1611, %v1652
  %v1676 = vmax.f32 %v1612, %v1650
  %v1677 = vmax.f32 %v1613, %v1648
  %v1678 = vmax.f32 %v1614, %v1662
  %v1679 = vmax.f32 %v1663, 0.0
  %v1680 = vmax.f32 %v1664, 0.0
  %v1681 = vmax.f32 %v1665, 0.0
  %v1682 = vmax.f32 %v1666, 0.0
  %v1683 = vmax.f32 %v1667, 0.0
  %v1684 = vmax.f32 %v1668, 0.0
  %v1685 = vmax.f32 %v1669, 0.0
  %v1686 = vmax.f32 %v1670, 0.0
  %v1687 = vmax.f32 %v1671, 0.0
  %v1688 = vmax.f32 %v1672, 0.0
  %v1689 = vmax.f32 %v1673, 0.0
  %v1690 = vmax.f32 %v1674, 0.0
  %v1691 = vmax.f32 %v1675, 0.0
  %v1692 = vmax.f32 %v1676, 0.0
  %v1693 = vmax.f32 %v1677, 0.0
  %v1694 = vmax.f32 %v1678, 0.0
  %v1696 = vperm.slane %v36, 0
  %v1697 = vperm.slane %v36, 1
  %v1698 = vperm.slane %v36, 2
  %v1699 = vperm.slane %v36, 3
  %v1700 = vperm.slane %v36, 4
  %v1701 = vperm.slane %v36, 5
  %v1702 = vperm.slane %v36, 6
  %v1703 = vperm.slane %v36, 7
  %v1712 = vmul.f32 %v1679, %v1696
  %v1713 = vmul.f32 %v1680, %v1697
  %v1714 = vmul.f32 %v1681, %v1698
  %v1715 = vmul.f32 %v1682, %v1699
  %v1716 = vmul.f32 %v1683, %v1700
  %v1717 = vmul.f32 %v1684, %v1701
  %v1718 = vmul.f32 %v1685, %v1702
  %v1719 = vmul.f32 %v1686, %v1703
  %v1720 = vmul.f32 %v1687, %v1696
  %v1721 = vmul.f32 %v1688, %v1697
  %v1722 = vmul.f32 %v1689, %v1698
  %v1723 = vmul.f32 %v1690, %v1699
  %v1724 = vmul.f32 %v1691, %v1700
  %v1725 = vmul.f32 %v1692, %v1701
  %v1726 = vmul.f32 %v1693, %v1702
  %v1727 = vmul.f32 %v1694, %v1703
  %s1728 = scalar_lea.vmem %s5, 32
  %v1729 = vld [vmem:[%s1728] sm:$0xff]
  %v1730 = vld [vmem:[%s1728 + $0x8] sm:$0xff]
  %s1731 = scalar_lea.vmem %s3, 16
  %v1732 = vld [vmem:[%s1731] sm:$0xff]
  %v1733 = vld [vmem:[%s1731 + $0x8] sm:$0xff]
  %v1734 = vld [vmem:[%s3] sm:$0xff]
  %v1735 = vld [vmem:[%s3 + $0x8] sm:$0xff]
  %1736 = vrot.lane.b32.xlu0 %v1712, 2
  %v1737 = vpop.permute.xlu0 %1736
  %1738 = vrot.lane.b32.xlu0 %v1720, 2
  %v1739 = vpop.permute.xlu0 %1738
  %1740 = vrot.lane.b32.xlu0 %v1713, 2
  %v1741 = vpop.permute.xlu0 %1740
  %1742 = vrot.lane.b32.xlu0 %v1721, 2
  %v1743 = vpop.permute.xlu0 %1742
  %1744 = vrot.lane.b32.xlu0 %v1714, 2
  %v1745 = vpop.permute.xlu0 %1744
  %1746 = vrot.lane.b32.xlu0 %v1722, 2
  %v1747 = vpop.permute.xlu0 %1746
  %1748 = vrot.lane.b32.xlu0 %v1715, 2
  %v1749 = vpop.permute.xlu0 %1748
  %1750 = vrot.lane.b32.xlu0 %v1723, 2
  %v1751 = vpop.permute.xlu0 %1750
  %1752 = vrot.lane.b32.xlu0 %v1716, 2
  %v1753 = vpop.permute.xlu0 %1752
  %1754 = vrot.lane.b32.xlu0 %v1724, 2
  %v1755 = vpop.permute.xlu0 %1754
  %1756 = vrot.lane.b32.xlu0 %v1717, 2
  %v1757 = vpop.permute.xlu0 %1756
  %1758 = vrot.lane.b32.xlu0 %v1725, 2
  %v1759 = vpop.permute.xlu0 %1758
  %1760 = vrot.lane.b32.xlu0 %v1718, 2
  %v1761 = vpop.permute.xlu0 %1760
  %1762 = vrot.lane.b32.xlu0 %v1726, 2
  %v1763 = vpop.permute.xlu0 %1762
  %1764 = vrot.lane.b32.xlu0 %v1719, 2
  %v1765 = vpop.permute.xlu0 %1764
  %1766 = vrot.lane.b32.xlu0 %v1727, 2
  %v1767 = vpop.permute.xlu0 %1766
  %vm1768 = vcmp.lt.s32.totalorder %v92, 2
  %v1769 = vsel %vm1768, %v1761, %v1765
  %v1770 = vsel %vm1768, %v1763, %v1767
  %v1771 = vsel %vm1768, %v1757, %v1761
  %v1772 = vsel %vm1768, %v1759, %v1763
  %v1773 = vsel %vm1768, %v1753, %v1757
  %v1774 = vsel %vm1768, %v1755, %v1759
  %v1775 = vsel %vm1768, %v1749, %v1753
  %v1776 = vsel %vm1768, %v1751, %v1755
  %v1777 = vsel %vm1768, %v1745, %v1749
  %v1778 = vsel %vm1768, %v1747, %v1751
  %v1779 = vsel %vm1768, %v1741, %v1745
  %v1780 = vsel %vm1768, %v1743, %v1747
  %v1781 = vsel %vm1768, %v1737, %v1741
  %v1782 = vsel %vm1768, %v1739, %v1743
  %v1783 = vsel %vm1768, %v1765, %v1737
  %v1784 = vsel %vm1768, %v1767, %v1739
  %v1786 = vsel %vm951, %v1734, 0
  %v1789 = vsel %vm951, %v1735, 0
  %1791 = vmatpush.msra.mxu0 0.0
  %1792 = vmatpush.msra.mxu0 0.0
  %1793 = vmatpush.msra.mxu0 0.0
  %1794 = vmatpush.msra.mxu0 0.0
  %1795 = vmatpush.msra.mxu0 0.0
  %1796 = vmatpush.msra.mxu0 0.0
  %1797 = vmatpush.msra.mxu0 0.0
  %1798 = vmatpush.msra.mxu0 0.0
  %1799 = vmatpush.msra.mxu0 0.0
  %1800 = vmatpush.msra.mxu0 0.0
  %1801 = vmatpush.msra.mxu0 0.0
  %1802 = vmatpush.msra.mxu0 0.0
  %1803 = vmatpush.msra.mxu0 0.0
  %1804 = vmatpush.msra.mxu0 0.0
  %1805 = vmatpush.msra.mxu0 %v1784
  %1806 = vmatpush.msra.mxu0 %v1783
  %1807 = vmatmul.f32.gmra.mxu0 %v1786
  %v1808 = vpop.f32.mrf.mxu0
  %v1809 = vadd.f32 0.0, %v1808
  %1810 = vmatmul.f32.gmra.mxu0 %v1789
  %v1811 = vpop.f32.mrf.mxu0
  %v1812 = vadd.f32 0.0, %v1811
  %1813 = vdwg.mxu0
  %1814 = vmatpush.msra.mxu0 0.0
  %1815 = vmatpush.msra.mxu0 0.0
  %1816 = vmatpush.msra.mxu0 0.0
  %1817 = vmatpush.msra.mxu0 0.0
  %1818 = vmatpush.msra.mxu0 0.0
  %1819 = vmatpush.msra.mxu0 0.0
  %1820 = vmatpush.msra.mxu0 0.0
  %1821 = vmatpush.msra.mxu0 0.0
  %1822 = vmatpush.msra.mxu0 0.0
  %1823 = vmatpush.msra.mxu0 0.0
  %1824 = vmatpush.msra.mxu0 0.0
  %1825 = vmatpush.msra.mxu0 0.0
  %1826 = vmatpush.msra.mxu0 0.0
  %1827 = vmatpush.msra.mxu0 0.0
  %1828 = vmatpush.msra.mxu0 %v1782
  %1829 = vmatpush.msra.mxu0 %v1781
  %1830 = vmatmul.f32.gmra.mxu0 %v1786
  %v1831 = vpop.f32.mrf.mxu0
  %v1832 = vadd.f32 0.0, %v1831
  %1833 = vmatmul.f32.gmra.mxu0 %v1789
  %v1834 = vpop.f32.mrf.mxu0
  %v1835 = vadd.f32 0.0, %v1834
  %1836 = vdwg.mxu0
  %1837 = vmatpush.msra.mxu0 0.0
  %1838 = vmatpush.msra.mxu0 0.0
  %1839 = vmatpush.msra.mxu0 0.0
  %1840 = vmatpush.msra.mxu0 0.0
  %1841 = vmatpush.msra.mxu0 0.0
  %1842 = vmatpush.msra.mxu0 0.0
  %1843 = vmatpush.msra.mxu0 0.0
  %1844 = vmatpush.msra.mxu0 0.0
  %1845 = vmatpush.msra.mxu0 0.0
  %1846 = vmatpush.msra.mxu0 0.0
  %1847 = vmatpush.msra.mxu0 0.0
  %1848 = vmatpush.msra.mxu0 0.0
  %1849 = vmatpush.msra.mxu0 0.0
  %1850 = vmatpush.msra.mxu0 0.0
  %1851 = vmatpush.msra.mxu0 %v1780
  %1852 = vmatpush.msra.mxu0 %v1779
  %1853 = vmatmul.f32.gmra.mxu0 %v1786
  %v1854 = vpop.f32.mrf.mxu0
  %v1855 = vadd.f32 0.0, %v1854
  %1856 = vmatmul.f32.gmra.mxu0 %v1789
  %v1857 = vpop.f32.mrf.mxu0
  %v1858 = vadd.f32 0.0, %v1857
  %1859 = vdwg.mxu0
  %1860 = vmatpush.msra.mxu0 0.0
  %1861 = vmatpush.msra.mxu0 0.0
  %1862 = vmatpush.msra.mxu0 0.0
  %1863 = vmatpush.msra.mxu0 0.0
  %1864 = vmatpush.msra.mxu0 0.0
  %1865 = vmatpush.msra.mxu0 0.0
  %1866 = vmatpush.msra.mxu0 0.0
  %1867 = vmatpush.msra.mxu0 0.0
  %1868 = vmatpush.msra.mxu0 0.0
  %1869 = vmatpush.msra.mxu0 0.0
  %1870 = vmatpush.msra.mxu0 0.0
  %1871 = vmatpush.msra.mxu0 0.0
  %1872 = vmatpush.msra.mxu0 0.0
  %1873 = vmatpush.msra.mxu0 0.0
  %1874 = vmatpush.msra.mxu0 %v1778
  %1875 = vmatpush.msra.mxu0 %v1777
  %1876 = vmatmul.f32.gmra.mxu0 %v1786
  %v1877 = vpop.f32.mrf.mxu0
  %v1878 = vadd.f32 0.0, %v1877
  %1879 = vmatmul.f32.gmra.mxu0 %v1789
  %v1880 = vpop.f32.mrf.mxu0
  %v1881 = vadd.f32 0.0, %v1880
  %1882 = vdwg.mxu0
  %1883 = vmatpush.msra.mxu0 0.0
  %1884 = vmatpush.msra.mxu0 0.0
  %1885 = vmatpush.msra.mxu0 0.0
  %1886 = vmatpush.msra.mxu0 0.0
  %1887 = vmatpush.msra.mxu0 0.0
  %1888 = vmatpush.msra.mxu0 0.0
  %1889 = vmatpush.msra.mxu0 0.0
  %1890 = vmatpush.msra.mxu0 0.0
  %1891 = vmatpush.msra.mxu0 0.0
  %1892 = vmatpush.msra.mxu0 0.0
  %1893 = vmatpush.msra.mxu0 0.0
  %1894 = vmatpush.msra.mxu0 0.0
  %1895 = vmatpush.msra.mxu0 0.0
  %1896 = vmatpush.msra.mxu0 0.0
  %1897 = vmatpush.msra.mxu0 %v1776
  %1898 = vmatpush.msra.mxu0 %v1775
  %1899 = vmatmul.f32.gmra.mxu0 %v1786
  %v1900 = vpop.f32.mrf.mxu0
  %v1901 = vadd.f32 0.0, %v1900
  %1902 = vmatmul.f32.gmra.mxu0 %v1789
  %v1903 = vpop.f32.mrf.mxu0
  %v1904 = vadd.f32 0.0, %v1903
  %1905 = vdwg.mxu0
  %1906 = vmatpush.msra.mxu0 0.0
  %1907 = vmatpush.msra.mxu0 0.0
  %1908 = vmatpush.msra.mxu0 0.0
  %1909 = vmatpush.msra.mxu0 0.0
  %1910 = vmatpush.msra.mxu0 0.0
  %1911 = vmatpush.msra.mxu0 0.0
  %1912 = vmatpush.msra.mxu0 0.0
  %1913 = vmatpush.msra.mxu0 0.0
  %1914 = vmatpush.msra.mxu0 0.0
  %1915 = vmatpush.msra.mxu0 0.0
  %1916 = vmatpush.msra.mxu0 0.0
  %1917 = vmatpush.msra.mxu0 0.0
  %1918 = vmatpush.msra.mxu0 0.0
  %1919 = vmatpush.msra.mxu0 0.0
  %1920 = vmatpush.msra.mxu0 %v1774
  %1921 = vmatpush.msra.mxu0 %v1773
  %1922 = vmatmul.f32.gmra.mxu0 %v1786
  %v1923 = vpop.f32.mrf.mxu0
  %v1924 = vadd.f32 0.0, %v1923
  %1925 = vmatmul.f32.gmra.mxu0 %v1789
  %v1926 = vpop.f32.mrf.mxu0
  %v1927 = vadd.f32 0.0, %v1926
  %1928 = vdwg.mxu0
  %1929 = vmatpush.msra.mxu0 0.0
  %1930 = vmatpush.msra.mxu0 0.0
  %1931 = vmatpush.msra.mxu0 0.0
  %1932 = vmatpush.msra.mxu0 0.0
  %1933 = vmatpush.msra.mxu0 0.0
  %1934 = vmatpush.msra.mxu0 0.0
  %1935 = vmatpush.msra.mxu0 0.0
  %1936 = vmatpush.msra.mxu0 0.0
  %1937 = vmatpush.msra.mxu0 0.0
  %1938 = vmatpush.msra.mxu0 0.0
  %1939 = vmatpush.msra.mxu0 0.0
  %1940 = vmatpush.msra.mxu0 0.0
  %1941 = vmatpush.msra.mxu0 0.0
  %1942 = vmatpush.msra.mxu0 0.0
  %1943 = vmatpush.msra.mxu0 %v1772
  %1944 = vmatpush.msra.mxu0 %v1771
  %1945 = vmatmul.f32.gmra.mxu0 %v1786
  %v1946 = vpop.f32.mrf.mxu0
  %v1947 = vadd.f32 0.0, %v1946
  %1948 = vmatmul.f32.gmra.mxu0 %v1789
  %v1949 = vpop.f32.mrf.mxu0
  %v1950 = vadd.f32 0.0, %v1949
  %1951 = vdwg.mxu0
  %1952 = vmatpush.msra.mxu0 0.0
  %1953 = vmatpush.msra.mxu0 0.0
  %1954 = vmatpush.msra.mxu0 0.0
  %1955 = vmatpush.msra.mxu0 0.0
  %1956 = vmatpush.msra.mxu0 0.0
  %1957 = vmatpush.msra.mxu0 0.0
  %1958 = vmatpush.msra.mxu0 0.0
  %1959 = vmatpush.msra.mxu0 0.0
  %1960 = vmatpush.msra.mxu0 0.0
  %1961 = vmatpush.msra.mxu0 0.0
  %1962 = vmatpush.msra.mxu0 0.0
  %1963 = vmatpush.msra.mxu0 0.0
  %1964 = vmatpush.msra.mxu0 0.0
  %1965 = vmatpush.msra.mxu0 0.0
  %1966 = vmatpush.msra.mxu0 %v1770
  %1967 = vmatpush.msra.mxu0 %v1769
  %1968 = vmatmul.f32.gmra.mxu0 %v1786
  %v1969 = vpop.f32.mrf.mxu0
  %v1970 = vadd.f32 0.0, %v1969
  %1971 = vmatmul.f32.gmra.mxu0 %v1789
  %v1972 = vpop.f32.mrf.mxu0
  %v1973 = vadd.f32 0.0, %v1972
  %1974 = vdwg.mxu0
  %v1976 = vsel %vm951, %v1732, 0
  %v1979 = vsel %vm951, %v1733, 0
  %1981 = vmatpush.msra.mxu0 0.0
  %1982 = vmatpush.msra.mxu0 0.0
  %1983 = vmatpush.msra.mxu0 0.0
  %1984 = vmatpush.msra.mxu0 0.0
  %1985 = vmatpush.msra.mxu0 0.0
  %1986 = vmatpush.msra.mxu0 0.0
  %1987 = vmatpush.msra.mxu0 0.0
  %1988 = vmatpush.msra.mxu0 0.0
  %1989 = vmatpush.msra.mxu0 0.0
  %1990 = vmatpush.msra.mxu0 0.0
  %1991 = vmatpush.msra.mxu0 0.0
  %1992 = vmatpush.msra.mxu0 0.0
  %1993 = vmatpush.msra.mxu0 0.0
  %1994 = vmatpush.msra.mxu0 0.0
  %1995 = vmatpush.msra.mxu0 %v1720
  %1996 = vmatpush.msra.mxu0 %v1712
  %1997 = vmatmul.f32.gmra.mxu0 %v1976
  %v1998 = vpop.f32.mrf.mxu0
  %v1999 = vadd.f32 %v1809, %v1998
  %2000 = vmatmul.f32.gmra.mxu0 %v1979
  %v2001 = vpop.f32.mrf.mxu0
  %v2002 = vadd.f32 %v1812, %v2001
  %2003 = vdwg.mxu0
  %2004 = vmatpush.msra.mxu0 0.0
  %2005 = vmatpush.msra.mxu0 0.0
  %2006 = vmatpush.msra.mxu0 0.0
  %2007 = vmatpush.msra.mxu0 0.0
  %2008 = vmatpush.msra.mxu0 0.0
  %2009 = vmatpush.msra.mxu0 0.0
  %2010 = vmatpush.msra.mxu0 0.0
  %2011 = vmatpush.msra.mxu0 0.0
  %2012 = vmatpush.msra.mxu0 0.0
  %2013 = vmatpush.msra.mxu0 0.0
  %2014 = vmatpush.msra.mxu0 0.0
  %2015 = vmatpush.msra.mxu0 0.0
  %2016 = vmatpush.msra.mxu0 0.0
  %2017 = vmatpush.msra.mxu0 0.0
  %2018 = vmatpush.msra.mxu0 %v1721
  %2019 = vmatpush.msra.mxu0 %v1713
  %2020 = vmatmul.f32.gmra.mxu0 %v1976
  %v2021 = vpop.f32.mrf.mxu0
  %v2022 = vadd.f32 %v1832, %v2021
  %2023 = vmatmul.f32.gmra.mxu0 %v1979
  %v2024 = vpop.f32.mrf.mxu0
  %v2025 = vadd.f32 %v1835, %v2024
  %2026 = vdwg.mxu0
  %2027 = vmatpush.msra.mxu0 0.0
  %2028 = vmatpush.msra.mxu0 0.0
  %2029 = vmatpush.msra.mxu0 0.0
  %2030 = vmatpush.msra.mxu0 0.0
  %2031 = vmatpush.msra.mxu0 0.0
  %2032 = vmatpush.msra.mxu0 0.0
  %2033 = vmatpush.msra.mxu0 0.0
  %2034 = vmatpush.msra.mxu0 0.0
  %2035 = vmatpush.msra.mxu0 0.0
  %2036 = vmatpush.msra.mxu0 0.0
  %2037 = vmatpush.msra.mxu0 0.0
  %2038 = vmatpush.msra.mxu0 0.0
  %2039 = vmatpush.msra.mxu0 0.0
  %2040 = vmatpush.msra.mxu0 0.0
  %2041 = vmatpush.msra.mxu0 %v1722
  %2042 = vmatpush.msra.mxu0 %v1714
  %2043 = vmatmul.f32.gmra.mxu0 %v1976
  %v2044 = vpop.f32.mrf.mxu0
  %v2045 = vadd.f32 %v1855, %v2044
  %2046 = vmatmul.f32.gmra.mxu0 %v1979
  %v2047 = vpop.f32.mrf.mxu0
  %v2048 = vadd.f32 %v1858, %v2047
  %2049 = vdwg.mxu0
  %2050 = vmatpush.msra.mxu0 0.0
  %2051 = vmatpush.msra.mxu0 0.0
  %2052 = vmatpush.msra.mxu0 0.0
  %2053 = vmatpush.msra.mxu0 0.0
  %2054 = vmatpush.msra.mxu0 0.0
  %2055 = vmatpush.msra.mxu0 0.0
  %2056 = vmatpush.msra.mxu0 0.0
  %2057 = vmatpush.msra.mxu0 0.0
  %2058 = vmatpush.msra.mxu0 0.0
  %2059 = vmatpush.msra.mxu0 0.0
  %2060 = vmatpush.msra.mxu0 0.0
  %2061 = vmatpush.msra.mxu0 0.0
  %2062 = vmatpush.msra.mxu0 0.0
  %2063 = vmatpush.msra.mxu0 0.0
  %2064 = vmatpush.msra.mxu0 %v1723
  %2065 = vmatpush.msra.mxu0 %v1715
  %2066 = vmatmul.f32.gmra.mxu0 %v1976
  %v2067 = vpop.f32.mrf.mxu0
  %v2068 = vadd.f32 %v1878, %v2067
  %2069 = vmatmul.f32.gmra.mxu0 %v1979
  %v2070 = vpop.f32.mrf.mxu0
  %v2071 = vadd.f32 %v1881, %v2070
  %2072 = vdwg.mxu0
  %2073 = vmatpush.msra.mxu0 0.0
  %2074 = vmatpush.msra.mxu0 0.0
  %2075 = vmatpush.msra.mxu0 0.0
  %2076 = vmatpush.msra.mxu0 0.0
  %2077 = vmatpush.msra.mxu0 0.0
  %2078 = vmatpush.msra.mxu0 0.0
  %2079 = vmatpush.msra.mxu0 0.0
  %2080 = vmatpush.msra.mxu0 0.0
  %2081 = vmatpush.msra.mxu0 0.0
  %2082 = vmatpush.msra.mxu0 0.0
  %2083 = vmatpush.msra.mxu0 0.0
  %2084 = vmatpush.msra.mxu0 0.0
  %2085 = vmatpush.msra.mxu0 0.0
  %2086 = vmatpush.msra.mxu0 0.0
  %2087 = vmatpush.msra.mxu0 %v1724
  %2088 = vmatpush.msra.mxu0 %v1716
  %2089 = vmatmul.f32.gmra.mxu0 %v1976
  %v2090 = vpop.f32.mrf.mxu0
  %v2091 = vadd.f32 %v1901, %v2090
  %2092 = vmatmul.f32.gmra.mxu0 %v1979
  %v2093 = vpop.f32.mrf.mxu0
  %v2094 = vadd.f32 %v1904, %v2093
  %2095 = vdwg.mxu0
  %2096 = vmatpush.msra.mxu0 0.0
  %2097 = vmatpush.msra.mxu0 0.0
  %2098 = vmatpush.msra.mxu0 0.0
  %2099 = vmatpush.msra.mxu0 0.0
  %2100 = vmatpush.msra.mxu0 0.0
  %2101 = vmatpush.msra.mxu0 0.0
  %2102 = vmatpush.msra.mxu0 0.0
  %2103 = vmatpush.msra.mxu0 0.0
  %2104 = vmatpush.msra.mxu0 0.0
  %2105 = vmatpush.msra.mxu0 0.0
  %2106 = vmatpush.msra.mxu0 0.0
  %2107 = vmatpush.msra.mxu0 0.0
  %2108 = vmatpush.msra.mxu0 0.0
  %2109 = vmatpush.msra.mxu0 0.0
  %2110 = vmatpush.msra.mxu0 %v1725
  %2111 = vmatpush.msra.mxu0 %v1717
  %2112 = vmatmul.f32.gmra.mxu0 %v1976
  %v2113 = vpop.f32.mrf.mxu0
  %v2114 = vadd.f32 %v1924, %v2113
  %2115 = vmatmul.f32.gmra.mxu0 %v1979
  %v2116 = vpop.f32.mrf.mxu0
  %v2117 = vadd.f32 %v1927, %v2116
  %2118 = vdwg.mxu0
  %2119 = vmatpush.msra.mxu0 0.0
  %2120 = vmatpush.msra.mxu0 0.0
  %2121 = vmatpush.msra.mxu0 0.0
  %2122 = vmatpush.msra.mxu0 0.0
  %2123 = vmatpush.msra.mxu0 0.0
  %2124 = vmatpush.msra.mxu0 0.0
  %2125 = vmatpush.msra.mxu0 0.0
  %2126 = vmatpush.msra.mxu0 0.0
  %2127 = vmatpush.msra.mxu0 0.0
  %2128 = vmatpush.msra.mxu0 0.0
  %2129 = vmatpush.msra.mxu0 0.0
  %2130 = vmatpush.msra.mxu0 0.0
  %2131 = vmatpush.msra.mxu0 0.0
  %2132 = vmatpush.msra.mxu0 0.0
  %2133 = vmatpush.msra.mxu0 %v1726
  %2134 = vmatpush.msra.mxu0 %v1718
  %2135 = vmatmul.f32.gmra.mxu0 %v1976
  %v2136 = vpop.f32.mrf.mxu0
  %v2137 = vadd.f32 %v1947, %v2136
  %2138 = vmatmul.f32.gmra.mxu0 %v1979
  %v2139 = vpop.f32.mrf.mxu0
  %v2140 = vadd.f32 %v1950, %v2139
  %2141 = vdwg.mxu0
  %2142 = vmatpush.msra.mxu0 0.0
  %2143 = vmatpush.msra.mxu0 0.0
  %2144 = vmatpush.msra.mxu0 0.0
  %2145 = vmatpush.msra.mxu0 0.0
  %2146 = vmatpush.msra.mxu0 0.0
  %2147 = vmatpush.msra.mxu0 0.0
  %2148 = vmatpush.msra.mxu0 0.0
  %2149 = vmatpush.msra.mxu0 0.0
  %2150 = vmatpush.msra.mxu0 0.0
  %2151 = vmatpush.msra.mxu0 0.0
  %2152 = vmatpush.msra.mxu0 0.0
  %2153 = vmatpush.msra.mxu0 0.0
  %2154 = vmatpush.msra.mxu0 0.0
  %2155 = vmatpush.msra.mxu0 0.0
  %2156 = vmatpush.msra.mxu0 %v1727
  %2157 = vmatpush.msra.mxu0 %v1719
  %2158 = vmatmul.f32.gmra.mxu0 %v1976
  %v2159 = vpop.f32.mrf.mxu0
  %v2160 = vadd.f32 %v1970, %v2159
  %2161 = vmatmul.f32.gmra.mxu0 %v1979
  %v2162 = vpop.f32.mrf.mxu0
  %v2163 = vadd.f32 %v1973, %v2162
  %2164 = vdwg.mxu0
  %s2165 = scalar_lea.vmem %s3, 32
  %v2166 = vld [vmem:[%s2165] sm:$0xff]
  %v2167 = vld [vmem:[%s2165 + $0x8] sm:$0xff]
  %2168 = vrot.lane.b32.xlu0 %v1712, 126
  %v2169 = vpop.permute.xlu0 %2168
  %2170 = vrot.lane.b32.xlu0 %v1720, 126
  %v2171 = vpop.permute.xlu0 %2170
  %2172 = vrot.lane.b32.xlu0 %v1713, 126
  %v2173 = vpop.permute.xlu0 %2172
  %2174 = vrot.lane.b32.xlu0 %v1721, 126
  %v2175 = vpop.permute.xlu0 %2174
  %2176 = vrot.lane.b32.xlu0 %v1714, 126
  %v2177 = vpop.permute.xlu0 %2176
  %2178 = vrot.lane.b32.xlu0 %v1722, 126
  %v2179 = vpop.permute.xlu0 %2178
  %2180 = vrot.lane.b32.xlu0 %v1715, 126
  %v2181 = vpop.permute.xlu0 %2180
  %2182 = vrot.lane.b32.xlu0 %v1723, 126
  %v2183 = vpop.permute.xlu0 %2182
  %2184 = vrot.lane.b32.xlu0 %v1716, 126
  %v2185 = vpop.permute.xlu0 %2184
  %2186 = vrot.lane.b32.xlu0 %v1724, 126
  %v2187 = vpop.permute.xlu0 %2186
  %2188 = vrot.lane.b32.xlu0 %v1717, 126
  %v2189 = vpop.permute.xlu0 %2188
  %2190 = vrot.lane.b32.xlu0 %v1725, 126
  %v2191 = vpop.permute.xlu0 %2190
  %2192 = vrot.lane.b32.xlu0 %v1718, 126
  %v2193 = vpop.permute.xlu0 %2192
  %2194 = vrot.lane.b32.xlu0 %v1726, 126
  %v2195 = vpop.permute.xlu0 %2194
  %2196 = vrot.lane.b32.xlu0 %v1719, 126
  %v2197 = vpop.permute.xlu0 %2196
  %2198 = vrot.lane.b32.xlu0 %v1727, 126
  %v2199 = vpop.permute.xlu0 %2198
  %vm2200 = vcmp.lt.s32.totalorder %v92, 126
  %v2201 = vsel %vm2200, %v2193, %v2197
  %v2202 = vsel %vm2200, %v2195, %v2199
  %v2203 = vsel %vm2200, %v2189, %v2193
  %v2204 = vsel %vm2200, %v2191, %v2195
  %v2205 = vsel %vm2200, %v2185, %v2189
  %v2206 = vsel %vm2200, %v2187, %v2191
  %v2207 = vsel %vm2200, %v2181, %v2185
  %v2208 = vsel %vm2200, %v2183, %v2187
  %v2209 = vsel %vm2200, %v2177, %v2181
  %v2210 = vsel %vm2200, %v2179, %v2183
  %v2211 = vsel %vm2200, %v2173, %v2177
  %v2212 = vsel %vm2200, %v2175, %v2179
  %v2213 = vsel %vm2200, %v2169, %v2173
  %v2214 = vsel %vm2200, %v2171, %v2175
  %v2215 = vsel %vm2200, %v2197, %v2169
  %v2216 = vsel %vm2200, %v2199, %v2171
  %v2218 = vsel %vm951, %v2166, 0
  %v2221 = vsel %vm951, %v2167, 0
  %2223 = vmatpush.msra.mxu0 0.0
  %2224 = vmatpush.msra.mxu0 0.0
  %2225 = vmatpush.msra.mxu0 0.0
  %2226 = vmatpush.msra.mxu0 0.0
  %2227 = vmatpush.msra.mxu0 0.0
  %2228 = vmatpush.msra.mxu0 0.0
  %2229 = vmatpush.msra.mxu0 0.0
  %2230 = vmatpush.msra.mxu0 0.0
  %2231 = vmatpush.msra.mxu0 0.0
  %2232 = vmatpush.msra.mxu0 0.0
  %2233 = vmatpush.msra.mxu0 0.0
  %2234 = vmatpush.msra.mxu0 0.0
  %2235 = vmatpush.msra.mxu0 0.0
  %2236 = vmatpush.msra.mxu0 0.0
  %2237 = vmatpush.msra.mxu0 %v2214
  %2238 = vmatpush.msra.mxu0 %v2213
  %2239 = vmatmul.f32.gmra.mxu0 %v2218
  %v2240 = vpop.f32.mrf.mxu0
  %v2241 = vadd.f32 0.0, %v2240
  %2242 = vmatmul.f32.gmra.mxu0 %v2221
  %v2243 = vpop.f32.mrf.mxu0
  %v2244 = vadd.f32 0.0, %v2243
  %2245 = vdwg.mxu0
  %2246 = vmatpush.msra.mxu0 0.0
  %2247 = vmatpush.msra.mxu0 0.0
  %2248 = vmatpush.msra.mxu0 0.0
  %2249 = vmatpush.msra.mxu0 0.0
  %2250 = vmatpush.msra.mxu0 0.0
  %2251 = vmatpush.msra.mxu0 0.0
  %2252 = vmatpush.msra.mxu0 0.0
  %2253 = vmatpush.msra.mxu0 0.0
  %2254 = vmatpush.msra.mxu0 0.0
  %2255 = vmatpush.msra.mxu0 0.0
  %2256 = vmatpush.msra.mxu0 0.0
  %2257 = vmatpush.msra.mxu0 0.0
  %2258 = vmatpush.msra.mxu0 0.0
  %2259 = vmatpush.msra.mxu0 0.0
  %2260 = vmatpush.msra.mxu0 %v2212
  %2261 = vmatpush.msra.mxu0 %v2211
  %2262 = vmatmul.f32.gmra.mxu0 %v2218
  %v2263 = vpop.f32.mrf.mxu0
  %v2264 = vadd.f32 0.0, %v2263
  %2265 = vmatmul.f32.gmra.mxu0 %v2221
  %v2266 = vpop.f32.mrf.mxu0
  %v2267 = vadd.f32 0.0, %v2266
  %2268 = vdwg.mxu0
  %2269 = vmatpush.msra.mxu0 0.0
  %2270 = vmatpush.msra.mxu0 0.0
  %2271 = vmatpush.msra.mxu0 0.0
  %2272 = vmatpush.msra.mxu0 0.0
  %2273 = vmatpush.msra.mxu0 0.0
  %2274 = vmatpush.msra.mxu0 0.0
  %2275 = vmatpush.msra.mxu0 0.0
  %2276 = vmatpush.msra.mxu0 0.0
  %2277 = vmatpush.msra.mxu0 0.0
  %2278 = vmatpush.msra.mxu0 0.0
  %2279 = vmatpush.msra.mxu0 0.0
  %2280 = vmatpush.msra.mxu0 0.0
  %2281 = vmatpush.msra.mxu0 0.0
  %2282 = vmatpush.msra.mxu0 0.0
  %2283 = vmatpush.msra.mxu0 %v2210
  %2284 = vmatpush.msra.mxu0 %v2209
  %2285 = vmatmul.f32.gmra.mxu0 %v2218
  %v2286 = vpop.f32.mrf.mxu0
  %v2287 = vadd.f32 0.0, %v2286
  %2288 = vmatmul.f32.gmra.mxu0 %v2221
  %v2289 = vpop.f32.mrf.mxu0
  %v2290 = vadd.f32 0.0, %v2289
  %2291 = vdwg.mxu0
  %2292 = vmatpush.msra.mxu0 0.0
  %2293 = vmatpush.msra.mxu0 0.0
  %2294 = vmatpush.msra.mxu0 0.0
  %2295 = vmatpush.msra.mxu0 0.0
  %2296 = vmatpush.msra.mxu0 0.0
  %2297 = vmatpush.msra.mxu0 0.0
  %2298 = vmatpush.msra.mxu0 0.0
  %2299 = vmatpush.msra.mxu0 0.0
  %2300 = vmatpush.msra.mxu0 0.0
  %2301 = vmatpush.msra.mxu0 0.0
  %2302 = vmatpush.msra.mxu0 0.0
  %2303 = vmatpush.msra.mxu0 0.0
  %2304 = vmatpush.msra.mxu0 0.0
  %2305 = vmatpush.msra.mxu0 0.0
  %2306 = vmatpush.msra.mxu0 %v2208
  %2307 = vmatpush.msra.mxu0 %v2207
  %2308 = vmatmul.f32.gmra.mxu0 %v2218
  %v2309 = vpop.f32.mrf.mxu0
  %v2310 = vadd.f32 0.0, %v2309
  %2311 = vmatmul.f32.gmra.mxu0 %v2221
  %v2312 = vpop.f32.mrf.mxu0
  %v2313 = vadd.f32 0.0, %v2312
  %2314 = vdwg.mxu0
  %2315 = vmatpush.msra.mxu0 0.0
  %2316 = vmatpush.msra.mxu0 0.0
  %2317 = vmatpush.msra.mxu0 0.0
  %2318 = vmatpush.msra.mxu0 0.0
  %2319 = vmatpush.msra.mxu0 0.0
  %2320 = vmatpush.msra.mxu0 0.0
  %2321 = vmatpush.msra.mxu0 0.0
  %2322 = vmatpush.msra.mxu0 0.0
  %2323 = vmatpush.msra.mxu0 0.0
  %2324 = vmatpush.msra.mxu0 0.0
  %2325 = vmatpush.msra.mxu0 0.0
  %2326 = vmatpush.msra.mxu0 0.0
  %2327 = vmatpush.msra.mxu0 0.0
  %2328 = vmatpush.msra.mxu0 0.0
  %2329 = vmatpush.msra.mxu0 %v2206
  %2330 = vmatpush.msra.mxu0 %v2205
  %2331 = vmatmul.f32.gmra.mxu0 %v2218
  %v2332 = vpop.f32.mrf.mxu0
  %v2333 = vadd.f32 0.0, %v2332
  %2334 = vmatmul.f32.gmra.mxu0 %v2221
  %v2335 = vpop.f32.mrf.mxu0
  %v2336 = vadd.f32 0.0, %v2335
  %2337 = vdwg.mxu0
  %2338 = vmatpush.msra.mxu0 0.0
  %2339 = vmatpush.msra.mxu0 0.0
  %2340 = vmatpush.msra.mxu0 0.0
  %2341 = vmatpush.msra.mxu0 0.0
  %2342 = vmatpush.msra.mxu0 0.0
  %2343 = vmatpush.msra.mxu0 0.0
  %2344 = vmatpush.msra.mxu0 0.0
  %2345 = vmatpush.msra.mxu0 0.0
  %2346 = vmatpush.msra.mxu0 0.0
  %2347 = vmatpush.msra.mxu0 0.0
  %2348 = vmatpush.msra.mxu0 0.0
  %2349 = vmatpush.msra.mxu0 0.0
  %2350 = vmatpush.msra.mxu0 0.0
  %2351 = vmatpush.msra.mxu0 0.0
  %2352 = vmatpush.msra.mxu0 %v2204
  %2353 = vmatpush.msra.mxu0 %v2203
  %2354 = vmatmul.f32.gmra.mxu0 %v2218
  %v2355 = vpop.f32.mrf.mxu0
  %v2356 = vadd.f32 0.0, %v2355
  %2357 = vmatmul.f32.gmra.mxu0 %v2221
  %v2358 = vpop.f32.mrf.mxu0
  %v2359 = vadd.f32 0.0, %v2358
  %2360 = vdwg.mxu0
  %2361 = vmatpush.msra.mxu0 0.0
  %2362 = vmatpush.msra.mxu0 0.0
  %2363 = vmatpush.msra.mxu0 0.0
  %2364 = vmatpush.msra.mxu0 0.0
  %2365 = vmatpush.msra.mxu0 0.0
  %2366 = vmatpush.msra.mxu0 0.0
  %2367 = vmatpush.msra.mxu0 0.0
  %2368 = vmatpush.msra.mxu0 0.0
  %2369 = vmatpush.msra.mxu0 0.0
  %2370 = vmatpush.msra.mxu0 0.0
  %2371 = vmatpush.msra.mxu0 0.0
  %2372 = vmatpush.msra.mxu0 0.0
  %2373 = vmatpush.msra.mxu0 0.0
  %2374 = vmatpush.msra.mxu0 0.0
  %2375 = vmatpush.msra.mxu0 %v2202
  %2376 = vmatpush.msra.mxu0 %v2201
  %2377 = vmatmul.f32.gmra.mxu0 %v2218
  %v2378 = vpop.f32.mrf.mxu0
  %v2379 = vadd.f32 0.0, %v2378
  %2380 = vmatmul.f32.gmra.mxu0 %v2221
  %v2381 = vpop.f32.mrf.mxu0
  %v2382 = vadd.f32 0.0, %v2381
  %2383 = vdwg.mxu0
  %2384 = vmatpush.msra.mxu0 0.0
  %2385 = vmatpush.msra.mxu0 0.0
  %2386 = vmatpush.msra.mxu0 0.0
  %2387 = vmatpush.msra.mxu0 0.0
  %2388 = vmatpush.msra.mxu0 0.0
  %2389 = vmatpush.msra.mxu0 0.0
  %2390 = vmatpush.msra.mxu0 0.0
  %2391 = vmatpush.msra.mxu0 0.0
  %2392 = vmatpush.msra.mxu0 0.0
  %2393 = vmatpush.msra.mxu0 0.0
  %2394 = vmatpush.msra.mxu0 0.0
  %2395 = vmatpush.msra.mxu0 0.0
  %2396 = vmatpush.msra.mxu0 0.0
  %2397 = vmatpush.msra.mxu0 0.0
  %2398 = vmatpush.msra.mxu0 %v2216
  %2399 = vmatpush.msra.mxu0 %v2215
  %2400 = vmatmul.f32.gmra.mxu0 %v2218
  %v2401 = vpop.f32.mrf.mxu0
  %v2402 = vadd.f32 0.0, %v2401
  %2403 = vmatmul.f32.gmra.mxu0 %v2221
  %v2404 = vpop.f32.mrf.mxu0
  %v2405 = vadd.f32 0.0, %v2404
  %2406 = vdwg.mxu0
  %v2407 = vadd.f32 %v1999, %v2241
  %v2408 = vadd.f32 %v2022, %v2264
  %v2409 = vadd.f32 %v2045, %v2287
  %v2410 = vadd.f32 %v2068, %v2310
  %v2411 = vadd.f32 %v2091, %v2333
  %v2412 = vadd.f32 %v2114, %v2356
  %v2413 = vadd.f32 %v2137, %v2379
  %v2414 = vadd.f32 %v2160, %v2402
  %v2415 = vadd.f32 %v2002, %v2244
  %v2416 = vadd.f32 %v2025, %v2267
  %v2417 = vadd.f32 %v2048, %v2290
  %v2418 = vadd.f32 %v2071, %v2313
  %v2419 = vadd.f32 %v2094, %v2336
  %v2420 = vadd.f32 %v2117, %v2359
  %v2421 = vadd.f32 %v2140, %v2382
  %v2422 = vadd.f32 %v2163, %v2405
  %2424 = vset.pattern.permute.xlu0 0
  %2425 = vperm.xlu0 %2424, %v1729
  %v2426 = vpop.permute.xlu0 %2425
  %2429 = vset.pattern.permute.xlu0 0
  %2430 = vperm.xlu0 %2429, %v1730
  %v2431 = vpop.permute.xlu0 %2430
  %v2433 = vadd.f32 %v2407, %v2426
  %v2434 = vadd.f32 %v2408, %v2426
  %v2435 = vadd.f32 %v2409, %v2426
  %v2436 = vadd.f32 %v2410, %v2426
  %v2437 = vadd.f32 %v2411, %v2426
  %v2438 = vadd.f32 %v2412, %v2426
  %v2439 = vadd.f32 %v2413, %v2426
  %v2440 = vadd.f32 %v2414, %v2426
  %v2441 = vadd.f32 %v2415, %v2431
  %v2442 = vadd.f32 %v2416, %v2431
  %v2443 = vadd.f32 %v2417, %v2431
  %v2444 = vadd.f32 %v2418, %v2431
  %v2445 = vadd.f32 %v2419, %v2431
  %v2446 = vadd.f32 %v2420, %v2431
  %v2447 = vadd.f32 %v2421, %v2431
  %v2448 = vadd.f32 %v2422, %v2431
  %v2449 = vmax.f32 %v2433, 0.0
  %v2450 = vmax.f32 %v2434, 0.0
  %v2451 = vmax.f32 %v2435, 0.0
  %v2452 = vmax.f32 %v2436, 0.0
  %v2453 = vmax.f32 %v2437, 0.0
  %v2454 = vmax.f32 %v2438, 0.0
  %v2455 = vmax.f32 %v2439, 0.0
  %v2456 = vmax.f32 %v2440, 0.0
  %v2457 = vmax.f32 %v2441, 0.0
  %v2458 = vmax.f32 %v2442, 0.0
  %v2459 = vmax.f32 %v2443, 0.0
  %v2460 = vmax.f32 %v2444, 0.0
  %v2461 = vmax.f32 %v2445, 0.0
  %v2462 = vmax.f32 %v2446, 0.0
  %v2463 = vmax.f32 %v2447, 0.0
  %v2464 = vmax.f32 %v2448, 0.0
  %v2465 = vmul.f32 %v2449, %v1696
  %v2466 = vmul.f32 %v2450, %v1697
  %v2467 = vmul.f32 %v2451, %v1698
  %v2468 = vmul.f32 %v2452, %v1699
  %v2469 = vmul.f32 %v2453, %v1700
  %v2470 = vmul.f32 %v2454, %v1701
  %v2471 = vmul.f32 %v2455, %v1702
  %v2472 = vmul.f32 %v2456, %v1703
  %v2473 = vmul.f32 %v2457, %v1696
  %v2474 = vmul.f32 %v2458, %v1697
  %v2475 = vmul.f32 %v2459, %v1698
  %v2476 = vmul.f32 %v2460, %v1699
  %v2477 = vmul.f32 %v2461, %v1700
  %v2478 = vmul.f32 %v2462, %v1701
  %v2479 = vmul.f32 %v2463, %v1702
  %v2480 = vmul.f32 %v2464, %v1703
  %s2481 = scalar_lea.vmem %s5, 48
  %v2482 = vld [vmem:[%s2481] sm:$0xff]
  %v2483 = vld [vmem:[%s2481 + $0x8] sm:$0xff]
  %s2484 = scalar_lea.vmem %s4, 16
  %v2485 = vld [vmem:[%s2484] sm:$0xff]
  %v2486 = vld [vmem:[%s2484 + $0x8] sm:$0xff]
  %v2487 = vld [vmem:[%s4] sm:$0xff]
  %v2488 = vld [vmem:[%s4 + $0x8] sm:$0xff]
  %2489 = vrot.lane.b32.xlu0 %v2465, 2
  %v2490 = vpop.permute.xlu0 %2489
  %2491 = vrot.lane.b32.xlu0 %v2473, 2
  %v2492 = vpop.permute.xlu0 %2491
  %2493 = vrot.lane.b32.xlu0 %v2466, 2
  %v2494 = vpop.permute.xlu0 %2493
  %2495 = vrot.lane.b32.xlu0 %v2474, 2
  %v2496 = vpop.permute.xlu0 %2495
  %2497 = vrot.lane.b32.xlu0 %v2467, 2
  %v2498 = vpop.permute.xlu0 %2497
  %2499 = vrot.lane.b32.xlu0 %v2475, 2
  %v2500 = vpop.permute.xlu0 %2499
  %2501 = vrot.lane.b32.xlu0 %v2468, 2
  %v2502 = vpop.permute.xlu0 %2501
  %2503 = vrot.lane.b32.xlu0 %v2476, 2
  %v2504 = vpop.permute.xlu0 %2503
  %2505 = vrot.lane.b32.xlu0 %v2469, 2
  %v2506 = vpop.permute.xlu0 %2505
  %2507 = vrot.lane.b32.xlu0 %v2477, 2
  %v2508 = vpop.permute.xlu0 %2507
  %2509 = vrot.lane.b32.xlu0 %v2470, 2
  %v2510 = vpop.permute.xlu0 %2509
  %2511 = vrot.lane.b32.xlu0 %v2478, 2
  %v2512 = vpop.permute.xlu0 %2511
  %2513 = vrot.lane.b32.xlu0 %v2471, 2
  %v2514 = vpop.permute.xlu0 %2513
  %2515 = vrot.lane.b32.xlu0 %v2479, 2
  %v2516 = vpop.permute.xlu0 %2515
  %2517 = vrot.lane.b32.xlu0 %v2472, 2
  %v2518 = vpop.permute.xlu0 %2517
  %2519 = vrot.lane.b32.xlu0 %v2480, 2
  %v2520 = vpop.permute.xlu0 %2519
  %v2521 = vsel %vm1768, %v2514, %v2518
  %v2522 = vsel %vm1768, %v2516, %v2520
  %v2523 = vsel %vm1768, %v2510, %v2514
  %v2524 = vsel %vm1768, %v2512, %v2516
  %v2525 = vsel %vm1768, %v2506, %v2510
  %v2526 = vsel %vm1768, %v2508, %v2512
  %v2527 = vsel %vm1768, %v2502, %v2506
  %v2528 = vsel %vm1768, %v2504, %v2508
  %v2529 = vsel %vm1768, %v2498, %v2502
  %v2530 = vsel %vm1768, %v2500, %v2504
  %v2531 = vsel %vm1768, %v2494, %v2498
  %v2532 = vsel %vm1768, %v2496, %v2500
  %v2533 = vsel %vm1768, %v2490, %v2494
  %v2534 = vsel %vm1768, %v2492, %v2496
  %v2535 = vsel %vm1768, %v2518, %v2490
  %v2536 = vsel %vm1768, %v2520, %v2492
  %v2538 = vsel %vm951, %v2487, 0
  %v2541 = vsel %vm951, %v2488, 0
  %2543 = vmatpush.msra.mxu0 0.0
  %2544 = vmatpush.msra.mxu0 0.0
  %2545 = vmatpush.msra.mxu0 0.0
  %2546 = vmatpush.msra.mxu0 0.0
  %2547 = vmatpush.msra.mxu0 0.0
  %2548 = vmatpush.msra.mxu0 0.0
  %2549 = vmatpush.msra.mxu0 0.0
  %2550 = vmatpush.msra.mxu0 0.0
  %2551 = vmatpush.msra.mxu0 0.0
  %2552 = vmatpush.msra.mxu0 0.0
  %2553 = vmatpush.msra.mxu0 0.0
  %2554 = vmatpush.msra.mxu0 0.0
  %2555 = vmatpush.msra.mxu0 0.0
  %2556 = vmatpush.msra.mxu0 0.0
  %2557 = vmatpush.msra.mxu0 %v2536
  %2558 = vmatpush.msra.mxu0 %v2535
  %2559 = vmatmul.f32.gmra.mxu0 %v2538
  %v2560 = vpop.f32.mrf.mxu0
  %v2561 = vadd.f32 0.0, %v2560
  %2562 = vmatmul.f32.gmra.mxu0 %v2541
  %v2563 = vpop.f32.mrf.mxu0
  %v2564 = vadd.f32 0.0, %v2563
  %2565 = vdwg.mxu0
  %2566 = vmatpush.msra.mxu0 0.0
  %2567 = vmatpush.msra.mxu0 0.0
  %2568 = vmatpush.msra.mxu0 0.0
  %2569 = vmatpush.msra.mxu0 0.0
  %2570 = vmatpush.msra.mxu0 0.0
  %2571 = vmatpush.msra.mxu0 0.0
  %2572 = vmatpush.msra.mxu0 0.0
  %2573 = vmatpush.msra.mxu0 0.0
  %2574 = vmatpush.msra.mxu0 0.0
  %2575 = vmatpush.msra.mxu0 0.0
  %2576 = vmatpush.msra.mxu0 0.0
  %2577 = vmatpush.msra.mxu0 0.0
  %2578 = vmatpush.msra.mxu0 0.0
  %2579 = vmatpush.msra.mxu0 0.0
  %2580 = vmatpush.msra.mxu0 %v2534
  %2581 = vmatpush.msra.mxu0 %v2533
  %2582 = vmatmul.f32.gmra.mxu0 %v2538
  %v2583 = vpop.f32.mrf.mxu0
  %v2584 = vadd.f32 0.0, %v2583
  %2585 = vmatmul.f32.gmra.mxu0 %v2541
  %v2586 = vpop.f32.mrf.mxu0
  %v2587 = vadd.f32 0.0, %v2586
  %2588 = vdwg.mxu0
  %2589 = vmatpush.msra.mxu0 0.0
  %2590 = vmatpush.msra.mxu0 0.0
  %2591 = vmatpush.msra.mxu0 0.0
  %2592 = vmatpush.msra.mxu0 0.0
  %2593 = vmatpush.msra.mxu0 0.0
  %2594 = vmatpush.msra.mxu0 0.0
  %2595 = vmatpush.msra.mxu0 0.0
  %2596 = vmatpush.msra.mxu0 0.0
  %2597 = vmatpush.msra.mxu0 0.0
  %2598 = vmatpush.msra.mxu0 0.0
  %2599 = vmatpush.msra.mxu0 0.0
  %2600 = vmatpush.msra.mxu0 0.0
  %2601 = vmatpush.msra.mxu0 0.0
  %2602 = vmatpush.msra.mxu0 0.0
  %2603 = vmatpush.msra.mxu0 %v2532
  %2604 = vmatpush.msra.mxu0 %v2531
  %2605 = vmatmul.f32.gmra.mxu0 %v2538
  %v2606 = vpop.f32.mrf.mxu0
  %v2607 = vadd.f32 0.0, %v2606
  %2608 = vmatmul.f32.gmra.mxu0 %v2541
  %v2609 = vpop.f32.mrf.mxu0
  %v2610 = vadd.f32 0.0, %v2609
  %2611 = vdwg.mxu0
  %2612 = vmatpush.msra.mxu0 0.0
  %2613 = vmatpush.msra.mxu0 0.0
  %2614 = vmatpush.msra.mxu0 0.0
  %2615 = vmatpush.msra.mxu0 0.0
  %2616 = vmatpush.msra.mxu0 0.0
  %2617 = vmatpush.msra.mxu0 0.0
  %2618 = vmatpush.msra.mxu0 0.0
  %2619 = vmatpush.msra.mxu0 0.0
  %2620 = vmatpush.msra.mxu0 0.0
  %2621 = vmatpush.msra.mxu0 0.0
  %2622 = vmatpush.msra.mxu0 0.0
  %2623 = vmatpush.msra.mxu0 0.0
  %2624 = vmatpush.msra.mxu0 0.0
  %2625 = vmatpush.msra.mxu0 0.0
  %2626 = vmatpush.msra.mxu0 %v2530
  %2627 = vmatpush.msra.mxu0 %v2529
  %2628 = vmatmul.f32.gmra.mxu0 %v2538
  %v2629 = vpop.f32.mrf.mxu0
  %v2630 = vadd.f32 0.0, %v2629
  %2631 = vmatmul.f32.gmra.mxu0 %v2541
  %v2632 = vpop.f32.mrf.mxu0
  %v2633 = vadd.f32 0.0, %v2632
  %2634 = vdwg.mxu0
  %2635 = vmatpush.msra.mxu0 0.0
  %2636 = vmatpush.msra.mxu0 0.0
  %2637 = vmatpush.msra.mxu0 0.0
  %2638 = vmatpush.msra.mxu0 0.0
  %2639 = vmatpush.msra.mxu0 0.0
  %2640 = vmatpush.msra.mxu0 0.0
  %2641 = vmatpush.msra.mxu0 0.0
  %2642 = vmatpush.msra.mxu0 0.0
  %2643 = vmatpush.msra.mxu0 0.0
  %2644 = vmatpush.msra.mxu0 0.0
  %2645 = vmatpush.msra.mxu0 0.0
  %2646 = vmatpush.msra.mxu0 0.0
  %2647 = vmatpush.msra.mxu0 0.0
  %2648 = vmatpush.msra.mxu0 0.0
  %2649 = vmatpush.msra.mxu0 %v2528
  %2650 = vmatpush.msra.mxu0 %v2527
  %2651 = vmatmul.f32.gmra.mxu0 %v2538
  %v2652 = vpop.f32.mrf.mxu0
  %v2653 = vadd.f32 0.0, %v2652
  %2654 = vmatmul.f32.gmra.mxu0 %v2541
  %v2655 = vpop.f32.mrf.mxu0
  %v2656 = vadd.f32 0.0, %v2655
  %2657 = vdwg.mxu0
  %2658 = vmatpush.msra.mxu0 0.0
  %2659 = vmatpush.msra.mxu0 0.0
  %2660 = vmatpush.msra.mxu0 0.0
  %2661 = vmatpush.msra.mxu0 0.0
  %2662 = vmatpush.msra.mxu0 0.0
  %2663 = vmatpush.msra.mxu0 0.0
  %2664 = vmatpush.msra.mxu0 0.0
  %2665 = vmatpush.msra.mxu0 0.0
  %2666 = vmatpush.msra.mxu0 0.0
  %2667 = vmatpush.msra.mxu0 0.0
  %2668 = vmatpush.msra.mxu0 0.0
  %2669 = vmatpush.msra.mxu0 0.0
  %2670 = vmatpush.msra.mxu0 0.0
  %2671 = vmatpush.msra.mxu0 0.0
  %2672 = vmatpush.msra.mxu0 %v2526
  %2673 = vmatpush.msra.mxu0 %v2525
  %2674 = vmatmul.f32.gmra.mxu0 %v2538
  %v2675 = vpop.f32.mrf.mxu0
  %v2676 = vadd.f32 0.0, %v2675
  %2677 = vmatmul.f32.gmra.mxu0 %v2541
  %v2678 = vpop.f32.mrf.mxu0
  %v2679 = vadd.f32 0.0, %v2678
  %2680 = vdwg.mxu0
  %2681 = vmatpush.msra.mxu0 0.0
  %2682 = vmatpush.msra.mxu0 0.0
  %2683 = vmatpush.msra.mxu0 0.0
  %2684 = vmatpush.msra.mxu0 0.0
  %2685 = vmatpush.msra.mxu0 0.0
  %2686 = vmatpush.msra.mxu0 0.0
  %2687 = vmatpush.msra.mxu0 0.0
  %2688 = vmatpush.msra.mxu0 0.0
  %2689 = vmatpush.msra.mxu0 0.0
  %2690 = vmatpush.msra.mxu0 0.0
  %2691 = vmatpush.msra.mxu0 0.0
  %2692 = vmatpush.msra.mxu0 0.0
  %2693 = vmatpush.msra.mxu0 0.0
  %2694 = vmatpush.msra.mxu0 0.0
  %2695 = vmatpush.msra.mxu0 %v2524
  %2696 = vmatpush.msra.mxu0 %v2523
  %2697 = vmatmul.f32.gmra.mxu0 %v2538
  %v2698 = vpop.f32.mrf.mxu0
  %v2699 = vadd.f32 0.0, %v2698
  %2700 = vmatmul.f32.gmra.mxu0 %v2541
  %v2701 = vpop.f32.mrf.mxu0
  %v2702 = vadd.f32 0.0, %v2701
  %2703 = vdwg.mxu0
  %2704 = vmatpush.msra.mxu0 0.0
  %2705 = vmatpush.msra.mxu0 0.0
  %2706 = vmatpush.msra.mxu0 0.0
  %2707 = vmatpush.msra.mxu0 0.0
  %2708 = vmatpush.msra.mxu0 0.0
  %2709 = vmatpush.msra.mxu0 0.0
  %2710 = vmatpush.msra.mxu0 0.0
  %2711 = vmatpush.msra.mxu0 0.0
  %2712 = vmatpush.msra.mxu0 0.0
  %2713 = vmatpush.msra.mxu0 0.0
  %2714 = vmatpush.msra.mxu0 0.0
  %2715 = vmatpush.msra.mxu0 0.0
  %2716 = vmatpush.msra.mxu0 0.0
  %2717 = vmatpush.msra.mxu0 0.0
  %2718 = vmatpush.msra.mxu0 %v2522
  %2719 = vmatpush.msra.mxu0 %v2521
  %2720 = vmatmul.f32.gmra.mxu0 %v2538
  %v2721 = vpop.f32.mrf.mxu0
  %v2722 = vadd.f32 0.0, %v2721
  %2723 = vmatmul.f32.gmra.mxu0 %v2541
  %v2724 = vpop.f32.mrf.mxu0
  %v2725 = vadd.f32 0.0, %v2724
  %2726 = vdwg.mxu0
  %v2728 = vsel %vm951, %v2485, 0
  %v2731 = vsel %vm951, %v2486, 0
  %2733 = vmatpush.msra.mxu0 0.0
  %2734 = vmatpush.msra.mxu0 0.0
  %2735 = vmatpush.msra.mxu0 0.0
  %2736 = vmatpush.msra.mxu0 0.0
  %2737 = vmatpush.msra.mxu0 0.0
  %2738 = vmatpush.msra.mxu0 0.0
  %2739 = vmatpush.msra.mxu0 0.0
  %2740 = vmatpush.msra.mxu0 0.0
  %2741 = vmatpush.msra.mxu0 0.0
  %2742 = vmatpush.msra.mxu0 0.0
  %2743 = vmatpush.msra.mxu0 0.0
  %2744 = vmatpush.msra.mxu0 0.0
  %2745 = vmatpush.msra.mxu0 0.0
  %2746 = vmatpush.msra.mxu0 0.0
  %2747 = vmatpush.msra.mxu0 %v2473
  %2748 = vmatpush.msra.mxu0 %v2465
  %2749 = vmatmul.f32.gmra.mxu0 %v2728
  %v2750 = vpop.f32.mrf.mxu0
  %v2751 = vadd.f32 %v2561, %v2750
  %2752 = vmatmul.f32.gmra.mxu0 %v2731
  %v2753 = vpop.f32.mrf.mxu0
  %v2754 = vadd.f32 %v2564, %v2753
  %2755 = vdwg.mxu0
  %2756 = vmatpush.msra.mxu0 0.0
  %2757 = vmatpush.msra.mxu0 0.0
  %2758 = vmatpush.msra.mxu0 0.0
  %2759 = vmatpush.msra.mxu0 0.0
  %2760 = vmatpush.msra.mxu0 0.0
  %2761 = vmatpush.msra.mxu0 0.0
  %2762 = vmatpush.msra.mxu0 0.0
  %2763 = vmatpush.msra.mxu0 0.0
  %2764 = vmatpush.msra.mxu0 0.0
  %2765 = vmatpush.msra.mxu0 0.0
  %2766 = vmatpush.msra.mxu0 0.0
  %2767 = vmatpush.msra.mxu0 0.0
  %2768 = vmatpush.msra.mxu0 0.0
  %2769 = vmatpush.msra.mxu0 0.0
  %2770 = vmatpush.msra.mxu0 %v2474
  %2771 = vmatpush.msra.mxu0 %v2466
  %2772 = vmatmul.f32.gmra.mxu0 %v2728
  %v2773 = vpop.f32.mrf.mxu0
  %v2774 = vadd.f32 %v2584, %v2773
  %2775 = vmatmul.f32.gmra.mxu0 %v2731
  %v2776 = vpop.f32.mrf.mxu0
  %v2777 = vadd.f32 %v2587, %v2776
  %2778 = vdwg.mxu0
  %2779 = vmatpush.msra.mxu0 0.0
  %2780 = vmatpush.msra.mxu0 0.0
  %2781 = vmatpush.msra.mxu0 0.0
  %2782 = vmatpush.msra.mxu0 0.0
  %2783 = vmatpush.msra.mxu0 0.0
  %2784 = vmatpush.msra.mxu0 0.0
  %2785 = vmatpush.msra.mxu0 0.0
  %2786 = vmatpush.msra.mxu0 0.0
  %2787 = vmatpush.msra.mxu0 0.0
  %2788 = vmatpush.msra.mxu0 0.0
  %2789 = vmatpush.msra.mxu0 0.0
  %2790 = vmatpush.msra.mxu0 0.0
  %2791 = vmatpush.msra.mxu0 0.0
  %2792 = vmatpush.msra.mxu0 0.0
  %2793 = vmatpush.msra.mxu0 %v2475
  %2794 = vmatpush.msra.mxu0 %v2467
  %2795 = vmatmul.f32.gmra.mxu0 %v2728
  %v2796 = vpop.f32.mrf.mxu0
  %v2797 = vadd.f32 %v2607, %v2796
  %2798 = vmatmul.f32.gmra.mxu0 %v2731
  %v2799 = vpop.f32.mrf.mxu0
  %v2800 = vadd.f32 %v2610, %v2799
  %2801 = vdwg.mxu0
  %2802 = vmatpush.msra.mxu0 0.0
  %2803 = vmatpush.msra.mxu0 0.0
  %2804 = vmatpush.msra.mxu0 0.0
  %2805 = vmatpush.msra.mxu0 0.0
  %2806 = vmatpush.msra.mxu0 0.0
  %2807 = vmatpush.msra.mxu0 0.0
  %2808 = vmatpush.msra.mxu0 0.0
  %2809 = vmatpush.msra.mxu0 0.0
  %2810 = vmatpush.msra.mxu0 0.0
  %2811 = vmatpush.msra.mxu0 0.0
  %2812 = vmatpush.msra.mxu0 0.0
  %2813 = vmatpush.msra.mxu0 0.0
  %2814 = vmatpush.msra.mxu0 0.0
  %2815 = vmatpush.msra.mxu0 0.0
  %2816 = vmatpush.msra.mxu0 %v2476
  %2817 = vmatpush.msra.mxu0 %v2468
  %2818 = vmatmul.f32.gmra.mxu0 %v2728
  %v2819 = vpop.f32.mrf.mxu0
  %v2820 = vadd.f32 %v2630, %v2819
  %2821 = vmatmul.f32.gmra.mxu0 %v2731
  %v2822 = vpop.f32.mrf.mxu0
  %v2823 = vadd.f32 %v2633, %v2822
  %2824 = vdwg.mxu0
  %2825 = vmatpush.msra.mxu0 0.0
  %2826 = vmatpush.msra.mxu0 0.0
  %2827 = vmatpush.msra.mxu0 0.0
  %2828 = vmatpush.msra.mxu0 0.0
  %2829 = vmatpush.msra.mxu0 0.0
  %2830 = vmatpush.msra.mxu0 0.0
  %2831 = vmatpush.msra.mxu0 0.0
  %2832 = vmatpush.msra.mxu0 0.0
  %2833 = vmatpush.msra.mxu0 0.0
  %2834 = vmatpush.msra.mxu0 0.0
  %2835 = vmatpush.msra.mxu0 0.0
  %2836 = vmatpush.msra.mxu0 0.0
  %2837 = vmatpush.msra.mxu0 0.0
  %2838 = vmatpush.msra.mxu0 0.0
  %2839 = vmatpush.msra.mxu0 %v2477
  %2840 = vmatpush.msra.mxu0 %v2469
  %2841 = vmatmul.f32.gmra.mxu0 %v2728
  %v2842 = vpop.f32.mrf.mxu0
  %v2843 = vadd.f32 %v2653, %v2842
  %2844 = vmatmul.f32.gmra.mxu0 %v2731
  %v2845 = vpop.f32.mrf.mxu0
  %v2846 = vadd.f32 %v2656, %v2845
  %2847 = vdwg.mxu0
  %2848 = vmatpush.msra.mxu0 0.0
  %2849 = vmatpush.msra.mxu0 0.0
  %2850 = vmatpush.msra.mxu0 0.0
  %2851 = vmatpush.msra.mxu0 0.0
  %2852 = vmatpush.msra.mxu0 0.0
  %2853 = vmatpush.msra.mxu0 0.0
  %2854 = vmatpush.msra.mxu0 0.0
  %2855 = vmatpush.msra.mxu0 0.0
  %2856 = vmatpush.msra.mxu0 0.0
  %2857 = vmatpush.msra.mxu0 0.0
  %2858 = vmatpush.msra.mxu0 0.0
  %2859 = vmatpush.msra.mxu0 0.0
  %2860 = vmatpush.msra.mxu0 0.0
  %2861 = vmatpush.msra.mxu0 0.0
  %2862 = vmatpush.msra.mxu0 %v2478
  %2863 = vmatpush.msra.mxu0 %v2470
  %2864 = vmatmul.f32.gmra.mxu0 %v2728
  %v2865 = vpop.f32.mrf.mxu0
  %v2866 = vadd.f32 %v2676, %v2865
  %2867 = vmatmul.f32.gmra.mxu0 %v2731
  %v2868 = vpop.f32.mrf.mxu0
  %v2869 = vadd.f32 %v2679, %v2868
  %2870 = vdwg.mxu0
  %2871 = vmatpush.msra.mxu0 0.0
  %2872 = vmatpush.msra.mxu0 0.0
  %2873 = vmatpush.msra.mxu0 0.0
  %2874 = vmatpush.msra.mxu0 0.0
  %2875 = vmatpush.msra.mxu0 0.0
  %2876 = vmatpush.msra.mxu0 0.0
  %2877 = vmatpush.msra.mxu0 0.0
  %2878 = vmatpush.msra.mxu0 0.0
  %2879 = vmatpush.msra.mxu0 0.0
  %2880 = vmatpush.msra.mxu0 0.0
  %2881 = vmatpush.msra.mxu0 0.0
  %2882 = vmatpush.msra.mxu0 0.0
  %2883 = vmatpush.msra.mxu0 0.0
  %2884 = vmatpush.msra.mxu0 0.0
  %2885 = vmatpush.msra.mxu0 %v2479
  %2886 = vmatpush.msra.mxu0 %v2471
  %2887 = vmatmul.f32.gmra.mxu0 %v2728
  %v2888 = vpop.f32.mrf.mxu0
  %v2889 = vadd.f32 %v2699, %v2888
  %2890 = vmatmul.f32.gmra.mxu0 %v2731
  %v2891 = vpop.f32.mrf.mxu0
  %v2892 = vadd.f32 %v2702, %v2891
  %2893 = vdwg.mxu0
  %2894 = vmatpush.msra.mxu0 0.0
  %2895 = vmatpush.msra.mxu0 0.0
  %2896 = vmatpush.msra.mxu0 0.0
  %2897 = vmatpush.msra.mxu0 0.0
  %2898 = vmatpush.msra.mxu0 0.0
  %2899 = vmatpush.msra.mxu0 0.0
  %2900 = vmatpush.msra.mxu0 0.0
  %2901 = vmatpush.msra.mxu0 0.0
  %2902 = vmatpush.msra.mxu0 0.0
  %2903 = vmatpush.msra.mxu0 0.0
  %2904 = vmatpush.msra.mxu0 0.0
  %2905 = vmatpush.msra.mxu0 0.0
  %2906 = vmatpush.msra.mxu0 0.0
  %2907 = vmatpush.msra.mxu0 0.0
  %2908 = vmatpush.msra.mxu0 %v2480
  %2909 = vmatpush.msra.mxu0 %v2472
  %2910 = vmatmul.f32.gmra.mxu0 %v2728
  %v2911 = vpop.f32.mrf.mxu0
  %v2912 = vadd.f32 %v2722, %v2911
  %2913 = vmatmul.f32.gmra.mxu0 %v2731
  %v2914 = vpop.f32.mrf.mxu0
  %v2915 = vadd.f32 %v2725, %v2914
  %2916 = vdwg.mxu0
  %s2917 = scalar_lea.vmem %s4, 32
  %v2918 = vld [vmem:[%s2917] sm:$0xff]
  %v2919 = vld [vmem:[%s2917 + $0x8] sm:$0xff]
  %2920 = vrot.lane.b32.xlu0 %v2465, 126
  %v2921 = vpop.permute.xlu0 %2920
  %2922 = vrot.lane.b32.xlu0 %v2473, 126
  %v2923 = vpop.permute.xlu0 %2922
  %2924 = vrot.lane.b32.xlu0 %v2466, 126
  %v2925 = vpop.permute.xlu0 %2924
  %2926 = vrot.lane.b32.xlu0 %v2474, 126
  %v2927 = vpop.permute.xlu0 %2926
  %2928 = vrot.lane.b32.xlu0 %v2467, 126
  %v2929 = vpop.permute.xlu0 %2928
  %2930 = vrot.lane.b32.xlu0 %v2475, 126
  %v2931 = vpop.permute.xlu0 %2930
  %2932 = vrot.lane.b32.xlu0 %v2468, 126
  %v2933 = vpop.permute.xlu0 %2932
  %2934 = vrot.lane.b32.xlu0 %v2476, 126
  %v2935 = vpop.permute.xlu0 %2934
  %2936 = vrot.lane.b32.xlu0 %v2469, 126
  %v2937 = vpop.permute.xlu0 %2936
  %2938 = vrot.lane.b32.xlu0 %v2477, 126
  %v2939 = vpop.permute.xlu0 %2938
  %2940 = vrot.lane.b32.xlu0 %v2470, 126
  %v2941 = vpop.permute.xlu0 %2940
  %2942 = vrot.lane.b32.xlu0 %v2478, 126
  %v2943 = vpop.permute.xlu0 %2942
  %2944 = vrot.lane.b32.xlu0 %v2471, 126
  %v2945 = vpop.permute.xlu0 %2944
  %2946 = vrot.lane.b32.xlu0 %v2479, 126
  %v2947 = vpop.permute.xlu0 %2946
  %2948 = vrot.lane.b32.xlu0 %v2472, 126
  %v2949 = vpop.permute.xlu0 %2948
  %2950 = vrot.lane.b32.xlu0 %v2480, 126
  %v2951 = vpop.permute.xlu0 %2950
  %v2952 = vsel %vm2200, %v2945, %v2949
  %v2953 = vsel %vm2200, %v2947, %v2951
  %v2954 = vsel %vm2200, %v2941, %v2945
  %v2955 = vsel %vm2200, %v2943, %v2947
  %v2956 = vsel %vm2200, %v2937, %v2941
  %v2957 = vsel %vm2200, %v2939, %v2943
  %v2958 = vsel %vm2200, %v2933, %v2937
  %v2959 = vsel %vm2200, %v2935, %v2939
  %v2960 = vsel %vm2200, %v2929, %v2933
  %v2961 = vsel %vm2200, %v2931, %v2935
  %v2962 = vsel %vm2200, %v2925, %v2929
  %v2963 = vsel %vm2200, %v2927, %v2931
  %v2964 = vsel %vm2200, %v2921, %v2925
  %v2965 = vsel %vm2200, %v2923, %v2927
  %v2966 = vsel %vm2200, %v2949, %v2921
  %v2967 = vsel %vm2200, %v2951, %v2923
  %v2969 = vsel %vm951, %v2918, 0
  %v2972 = vsel %vm951, %v2919, 0
  %2974 = vmatpush.msra.mxu0 0.0
  %2975 = vmatpush.msra.mxu0 0.0
  %2976 = vmatpush.msra.mxu0 0.0
  %2977 = vmatpush.msra.mxu0 0.0
  %2978 = vmatpush.msra.mxu0 0.0
  %2979 = vmatpush.msra.mxu0 0.0
  %2980 = vmatpush.msra.mxu0 0.0
  %2981 = vmatpush.msra.mxu0 0.0
  %2982 = vmatpush.msra.mxu0 0.0
  %2983 = vmatpush.msra.mxu0 0.0
  %2984 = vmatpush.msra.mxu0 0.0
  %2985 = vmatpush.msra.mxu0 0.0
  %2986 = vmatpush.msra.mxu0 0.0
  %2987 = vmatpush.msra.mxu0 0.0
  %2988 = vmatpush.msra.mxu0 %v2965
  %2989 = vmatpush.msra.mxu0 %v2964
  %2990 = vmatmul.f32.gmra.mxu0 %v2969
  %v2991 = vpop.f32.mrf.mxu0
  %v2992 = vadd.f32 0.0, %v2991
  %2993 = vmatmul.f32.gmra.mxu0 %v2972
  %v2994 = vpop.f32.mrf.mxu0
  %v2995 = vadd.f32 0.0, %v2994
  %2996 = vdwg.mxu0
  %2997 = vmatpush.msra.mxu0 0.0
  %2998 = vmatpush.msra.mxu0 0.0
  %2999 = vmatpush.msra.mxu0 0.0
  %3000 = vmatpush.msra.mxu0 0.0
  %3001 = vmatpush.msra.mxu0 0.0
  %3002 = vmatpush.msra.mxu0 0.0
  %3003 = vmatpush.msra.mxu0 0.0
  %3004 = vmatpush.msra.mxu0 0.0
  %3005 = vmatpush.msra.mxu0 0.0
  %3006 = vmatpush.msra.mxu0 0.0
  %3007 = vmatpush.msra.mxu0 0.0
  %3008 = vmatpush.msra.mxu0 0.0
  %3009 = vmatpush.msra.mxu0 0.0
  %3010 = vmatpush.msra.mxu0 0.0
  %3011 = vmatpush.msra.mxu0 %v2963
  %3012 = vmatpush.msra.mxu0 %v2962
  %3013 = vmatmul.f32.gmra.mxu0 %v2969
  %v3014 = vpop.f32.mrf.mxu0
  %v3015 = vadd.f32 0.0, %v3014
  %3016 = vmatmul.f32.gmra.mxu0 %v2972
  %v3017 = vpop.f32.mrf.mxu0
  %v3018 = vadd.f32 0.0, %v3017
  %3019 = vdwg.mxu0
  %3020 = vmatpush.msra.mxu0 0.0
  %3021 = vmatpush.msra.mxu0 0.0
  %3022 = vmatpush.msra.mxu0 0.0
  %3023 = vmatpush.msra.mxu0 0.0
  %3024 = vmatpush.msra.mxu0 0.0
  %3025 = vmatpush.msra.mxu0 0.0
  %3026 = vmatpush.msra.mxu0 0.0
  %3027 = vmatpush.msra.mxu0 0.0
  %3028 = vmatpush.msra.mxu0 0.0
  %3029 = vmatpush.msra.mxu0 0.0
  %3030 = vmatpush.msra.mxu0 0.0
  %3031 = vmatpush.msra.mxu0 0.0
  %3032 = vmatpush.msra.mxu0 0.0
  %3033 = vmatpush.msra.mxu0 0.0
  %3034 = vmatpush.msra.mxu0 %v2961
  %3035 = vmatpush.msra.mxu0 %v2960
  %3036 = vmatmul.f32.gmra.mxu0 %v2969
  %v3037 = vpop.f32.mrf.mxu0
  %v3038 = vadd.f32 0.0, %v3037
  %3039 = vmatmul.f32.gmra.mxu0 %v2972
  %v3040 = vpop.f32.mrf.mxu0
  %v3041 = vadd.f32 0.0, %v3040
  %3042 = vdwg.mxu0
  %3043 = vmatpush.msra.mxu0 0.0
  %3044 = vmatpush.msra.mxu0 0.0
  %3045 = vmatpush.msra.mxu0 0.0
  %3046 = vmatpush.msra.mxu0 0.0
  %3047 = vmatpush.msra.mxu0 0.0
  %3048 = vmatpush.msra.mxu0 0.0
  %3049 = vmatpush.msra.mxu0 0.0
  %3050 = vmatpush.msra.mxu0 0.0
  %3051 = vmatpush.msra.mxu0 0.0
  %3052 = vmatpush.msra.mxu0 0.0
  %3053 = vmatpush.msra.mxu0 0.0
  %3054 = vmatpush.msra.mxu0 0.0
  %3055 = vmatpush.msra.mxu0 0.0
  %3056 = vmatpush.msra.mxu0 0.0
  %3057 = vmatpush.msra.mxu0 %v2959
  %3058 = vmatpush.msra.mxu0 %v2958
  %3059 = vmatmul.f32.gmra.mxu0 %v2969
  %v3060 = vpop.f32.mrf.mxu0
  %v3061 = vadd.f32 0.0, %v3060
  %3062 = vmatmul.f32.gmra.mxu0 %v2972
  %v3063 = vpop.f32.mrf.mxu0
  %v3064 = vadd.f32 0.0, %v3063
  %3065 = vdwg.mxu0
  %3066 = vmatpush.msra.mxu0 0.0
  %3067 = vmatpush.msra.mxu0 0.0
  %3068 = vmatpush.msra.mxu0 0.0
  %3069 = vmatpush.msra.mxu0 0.0
  %3070 = vmatpush.msra.mxu0 0.0
  %3071 = vmatpush.msra.mxu0 0.0
  %3072 = vmatpush.msra.mxu0 0.0
  %3073 = vmatpush.msra.mxu0 0.0
  %3074 = vmatpush.msra.mxu0 0.0
  %3075 = vmatpush.msra.mxu0 0.0
  %3076 = vmatpush.msra.mxu0 0.0
  %3077 = vmatpush.msra.mxu0 0.0
  %3078 = vmatpush.msra.mxu0 0.0
  %3079 = vmatpush.msra.mxu0 0.0
  %3080 = vmatpush.msra.mxu0 %v2957
  %3081 = vmatpush.msra.mxu0 %v2956
  %3082 = vmatmul.f32.gmra.mxu0 %v2969
  %v3083 = vpop.f32.mrf.mxu0
  %v3084 = vadd.f32 0.0, %v3083
  %3085 = vmatmul.f32.gmra.mxu0 %v2972
  %v3086 = vpop.f32.mrf.mxu0
  %v3087 = vadd.f32 0.0, %v3086
  %3088 = vdwg.mxu0
  %3089 = vmatpush.msra.mxu0 0.0
  %3090 = vmatpush.msra.mxu0 0.0
  %3091 = vmatpush.msra.mxu0 0.0
  %3092 = vmatpush.msra.mxu0 0.0
  %3093 = vmatpush.msra.mxu0 0.0
  %3094 = vmatpush.msra.mxu0 0.0
  %3095 = vmatpush.msra.mxu0 0.0
  %3096 = vmatpush.msra.mxu0 0.0
  %3097 = vmatpush.msra.mxu0 0.0
  %3098 = vmatpush.msra.mxu0 0.0
  %3099 = vmatpush.msra.mxu0 0.0
  %3100 = vmatpush.msra.mxu0 0.0
  %3101 = vmatpush.msra.mxu0 0.0
  %3102 = vmatpush.msra.mxu0 0.0
  %3103 = vmatpush.msra.mxu0 %v2955
  %3104 = vmatpush.msra.mxu0 %v2954
  %3105 = vmatmul.f32.gmra.mxu0 %v2969
  %v3106 = vpop.f32.mrf.mxu0
  %v3107 = vadd.f32 0.0, %v3106
  %3108 = vmatmul.f32.gmra.mxu0 %v2972
  %v3109 = vpop.f32.mrf.mxu0
  %v3110 = vadd.f32 0.0, %v3109
  %3111 = vdwg.mxu0
  %3112 = vmatpush.msra.mxu0 0.0
  %3113 = vmatpush.msra.mxu0 0.0
  %3114 = vmatpush.msra.mxu0 0.0
  %3115 = vmatpush.msra.mxu0 0.0
  %3116 = vmatpush.msra.mxu0 0.0
  %3117 = vmatpush.msra.mxu0 0.0
  %3118 = vmatpush.msra.mxu0 0.0
  %3119 = vmatpush.msra.mxu0 0.0
  %3120 = vmatpush.msra.mxu0 0.0
  %3121 = vmatpush.msra.mxu0 0.0
  %3122 = vmatpush.msra.mxu0 0.0
  %3123 = vmatpush.msra.mxu0 0.0
  %3124 = vmatpush.msra.mxu0 0.0
  %3125 = vmatpush.msra.mxu0 0.0
  %3126 = vmatpush.msra.mxu0 %v2953
  %3127 = vmatpush.msra.mxu0 %v2952
  %3128 = vmatmul.f32.gmra.mxu0 %v2969
  %v3129 = vpop.f32.mrf.mxu0
  %v3130 = vadd.f32 0.0, %v3129
  %3131 = vmatmul.f32.gmra.mxu0 %v2972
  %v3132 = vpop.f32.mrf.mxu0
  %v3133 = vadd.f32 0.0, %v3132
  %3134 = vdwg.mxu0
  %3135 = vmatpush.msra.mxu0 0.0
  %3136 = vmatpush.msra.mxu0 0.0
  %3137 = vmatpush.msra.mxu0 0.0
  %3138 = vmatpush.msra.mxu0 0.0
  %3139 = vmatpush.msra.mxu0 0.0
  %3140 = vmatpush.msra.mxu0 0.0
  %3141 = vmatpush.msra.mxu0 0.0
  %3142 = vmatpush.msra.mxu0 0.0
  %3143 = vmatpush.msra.mxu0 0.0
  %3144 = vmatpush.msra.mxu0 0.0
  %3145 = vmatpush.msra.mxu0 0.0
  %3146 = vmatpush.msra.mxu0 0.0
  %3147 = vmatpush.msra.mxu0 0.0
  %3148 = vmatpush.msra.mxu0 0.0
  %3149 = vmatpush.msra.mxu0 %v2967
  %3150 = vmatpush.msra.mxu0 %v2966
  %3151 = vmatmul.f32.gmra.mxu0 %v2969
  %v3152 = vpop.f32.mrf.mxu0
  %v3153 = vadd.f32 0.0, %v3152
  %3154 = vmatmul.f32.gmra.mxu0 %v2972
  %v3155 = vpop.f32.mrf.mxu0
  %v3156 = vadd.f32 0.0, %v3155
  %3157 = vdwg.mxu0
  %v3158 = vadd.f32 %v2751, %v2992
  %v3159 = vadd.f32 %v2774, %v3015
  %v3160 = vadd.f32 %v2797, %v3038
  %v3161 = vadd.f32 %v2820, %v3061
  %v3162 = vadd.f32 %v2843, %v3084
  %v3163 = vadd.f32 %v2866, %v3107
  %v3164 = vadd.f32 %v2889, %v3130
  %v3165 = vadd.f32 %v2912, %v3153
  %v3166 = vadd.f32 %v2754, %v2995
  %v3167 = vadd.f32 %v2777, %v3018
  %v3168 = vadd.f32 %v2800, %v3041
  %v3169 = vadd.f32 %v2823, %v3064
  %v3170 = vadd.f32 %v2846, %v3087
  %v3171 = vadd.f32 %v2869, %v3110
  %v3172 = vadd.f32 %v2892, %v3133
  %v3173 = vadd.f32 %v2915, %v3156
  %3175 = vset.pattern.permute.xlu0 0
  %3176 = vperm.xlu0 %3175, %v2482
  %v3177 = vpop.permute.xlu0 %3176
  %3180 = vset.pattern.permute.xlu0 0
  %3181 = vperm.xlu0 %3180, %v2483
  %v3182 = vpop.permute.xlu0 %3181
  %v3184 = vadd.f32 %v3158, %v3177
  %v3185 = vadd.f32 %v3159, %v3177
  %v3186 = vadd.f32 %v3160, %v3177
  %v3187 = vadd.f32 %v3161, %v3177
  %v3188 = vadd.f32 %v3162, %v3177
  %v3189 = vadd.f32 %v3163, %v3177
  %v3190 = vadd.f32 %v3164, %v3177
  %v3191 = vadd.f32 %v3165, %v3177
  %v3192 = vadd.f32 %v3166, %v3182
  %v3193 = vadd.f32 %v3167, %v3182
  %v3194 = vadd.f32 %v3168, %v3182
  %v3195 = vadd.f32 %v3169, %v3182
  %v3196 = vadd.f32 %v3170, %v3182
  %v3197 = vadd.f32 %v3171, %v3182
  %v3198 = vadd.f32 %v3172, %v3182
  %v3199 = vadd.f32 %v3173, %v3182
  %v3200 = vmax.f32 %v3184, 0.0
  %v3201 = vmax.f32 %v3185, 0.0
  %v3202 = vmax.f32 %v3186, 0.0
  %v3203 = vmax.f32 %v3187, 0.0
  %v3204 = vmax.f32 %v3188, 0.0
  %v3205 = vmax.f32 %v3189, 0.0
  %v3206 = vmax.f32 %v3190, 0.0
  %v3207 = vmax.f32 %v3191, 0.0
  %v3208 = vmax.f32 %v3192, 0.0
  %v3209 = vmax.f32 %v3193, 0.0
  %v3210 = vmax.f32 %v3194, 0.0
  %v3211 = vmax.f32 %v3195, 0.0
  %v3212 = vmax.f32 %v3196, 0.0
  %v3213 = vmax.f32 %v3197, 0.0
  %v3214 = vmax.f32 %v3198, 0.0
  %v3215 = vmax.f32 %v3199, 0.0
  %v3217 = vsel %vm951, 1.0, 0
  %3219 = vmatpush.msra.mxu0 0.0
  %3220 = vmatpush.msra.mxu0 0.0
  %3221 = vmatpush.msra.mxu0 0.0
  %3222 = vmatpush.msra.mxu0 0.0
  %3223 = vmatpush.msra.mxu0 0.0
  %3224 = vmatpush.msra.mxu0 0.0
  %3225 = vmatpush.msra.mxu0 0.0
  %3226 = vmatpush.msra.mxu0 0.0
  %3227 = vmatpush.msra.mxu0 0.0
  %3228 = vmatpush.msra.mxu0 0.0
  %3229 = vmatpush.msra.mxu0 0.0
  %3230 = vmatpush.msra.mxu0 0.0
  %3231 = vmatpush.msra.mxu0 0.0
  %3232 = vmatpush.msra.mxu0 0.0
  %3233 = vmatpush.msra.mxu0 %v3208
  %3234 = vmatpush.msra.mxu0 %v3200
  %3235 = vmatmul.f32.gmra.mxu0 %v3217
  %v3236 = vpop.f32.mrf.mxu0
  %v3237 = vadd.f32 0.0, %v3236
  %3238 = vdwg.mxu0
  %3239 = vmatpush.msra.mxu0 0.0
  %3240 = vmatpush.msra.mxu0 0.0
  %3241 = vmatpush.msra.mxu0 0.0
  %3242 = vmatpush.msra.mxu0 0.0
  %3243 = vmatpush.msra.mxu0 0.0
  %3244 = vmatpush.msra.mxu0 0.0
  %3245 = vmatpush.msra.mxu0 0.0
  %3246 = vmatpush.msra.mxu0 0.0
  %3247 = vmatpush.msra.mxu0 0.0
  %3248 = vmatpush.msra.mxu0 0.0
  %3249 = vmatpush.msra.mxu0 0.0
  %3250 = vmatpush.msra.mxu0 0.0
  %3251 = vmatpush.msra.mxu0 0.0
  %3252 = vmatpush.msra.mxu0 0.0
  %3253 = vmatpush.msra.mxu0 %v3209
  %3254 = vmatpush.msra.mxu0 %v3201
  %3255 = vmatmul.f32.gmra.mxu0 %v3217
  %v3256 = vpop.f32.mrf.mxu0
  %v3257 = vadd.f32 0.0, %v3256
  %3258 = vdwg.mxu0
  %3259 = vmatpush.msra.mxu0 0.0
  %3260 = vmatpush.msra.mxu0 0.0
  %3261 = vmatpush.msra.mxu0 0.0
  %3262 = vmatpush.msra.mxu0 0.0
  %3263 = vmatpush.msra.mxu0 0.0
  %3264 = vmatpush.msra.mxu0 0.0
  %3265 = vmatpush.msra.mxu0 0.0
  %3266 = vmatpush.msra.mxu0 0.0
  %3267 = vmatpush.msra.mxu0 0.0
  %3268 = vmatpush.msra.mxu0 0.0
  %3269 = vmatpush.msra.mxu0 0.0
  %3270 = vmatpush.msra.mxu0 0.0
  %3271 = vmatpush.msra.mxu0 0.0
  %3272 = vmatpush.msra.mxu0 0.0
  %3273 = vmatpush.msra.mxu0 %v3210
  %3274 = vmatpush.msra.mxu0 %v3202
  %3275 = vmatmul.f32.gmra.mxu0 %v3217
  %v3276 = vpop.f32.mrf.mxu0
  %v3277 = vadd.f32 0.0, %v3276
  %3278 = vdwg.mxu0
  %3279 = vmatpush.msra.mxu0 0.0
  %3280 = vmatpush.msra.mxu0 0.0
  %3281 = vmatpush.msra.mxu0 0.0
  %3282 = vmatpush.msra.mxu0 0.0
  %3283 = vmatpush.msra.mxu0 0.0
  %3284 = vmatpush.msra.mxu0 0.0
  %3285 = vmatpush.msra.mxu0 0.0
  %3286 = vmatpush.msra.mxu0 0.0
  %3287 = vmatpush.msra.mxu0 0.0
  %3288 = vmatpush.msra.mxu0 0.0
  %3289 = vmatpush.msra.mxu0 0.0
  %3290 = vmatpush.msra.mxu0 0.0
  %3291 = vmatpush.msra.mxu0 0.0
  %3292 = vmatpush.msra.mxu0 0.0
  %3293 = vmatpush.msra.mxu0 %v3211
  %3294 = vmatpush.msra.mxu0 %v3203
  %3295 = vmatmul.f32.gmra.mxu0 %v3217
  %v3296 = vpop.f32.mrf.mxu0
  %v3297 = vadd.f32 0.0, %v3296
  %3298 = vdwg.mxu0
  %3299 = vmatpush.msra.mxu0 0.0
  %3300 = vmatpush.msra.mxu0 0.0
  %3301 = vmatpush.msra.mxu0 0.0
  %3302 = vmatpush.msra.mxu0 0.0
  %3303 = vmatpush.msra.mxu0 0.0
  %3304 = vmatpush.msra.mxu0 0.0
  %3305 = vmatpush.msra.mxu0 0.0
  %3306 = vmatpush.msra.mxu0 0.0
  %3307 = vmatpush.msra.mxu0 0.0
  %3308 = vmatpush.msra.mxu0 0.0
  %3309 = vmatpush.msra.mxu0 0.0
  %3310 = vmatpush.msra.mxu0 0.0
  %3311 = vmatpush.msra.mxu0 0.0
  %3312 = vmatpush.msra.mxu0 0.0
  %3313 = vmatpush.msra.mxu0 %v3212
  %3314 = vmatpush.msra.mxu0 %v3204
  %3315 = vmatmul.f32.gmra.mxu0 %v3217
  %v3316 = vpop.f32.mrf.mxu0
  %v3317 = vadd.f32 0.0, %v3316
  %3318 = vdwg.mxu0
  %3319 = vmatpush.msra.mxu0 0.0
  %3320 = vmatpush.msra.mxu0 0.0
  %3321 = vmatpush.msra.mxu0 0.0
  %3322 = vmatpush.msra.mxu0 0.0
  %3323 = vmatpush.msra.mxu0 0.0
  %3324 = vmatpush.msra.mxu0 0.0
  %3325 = vmatpush.msra.mxu0 0.0
  %3326 = vmatpush.msra.mxu0 0.0
  %3327 = vmatpush.msra.mxu0 0.0
  %3328 = vmatpush.msra.mxu0 0.0
  %3329 = vmatpush.msra.mxu0 0.0
  %3330 = vmatpush.msra.mxu0 0.0
  %3331 = vmatpush.msra.mxu0 0.0
  %3332 = vmatpush.msra.mxu0 0.0
  %3333 = vmatpush.msra.mxu0 %v3213
  %3334 = vmatpush.msra.mxu0 %v3205
  %3335 = vmatmul.f32.gmra.mxu0 %v3217
  %v3336 = vpop.f32.mrf.mxu0
  %v3337 = vadd.f32 0.0, %v3336
  %3338 = vdwg.mxu0
  %3339 = vmatpush.msra.mxu0 0.0
  %3340 = vmatpush.msra.mxu0 0.0
  %3341 = vmatpush.msra.mxu0 0.0
  %3342 = vmatpush.msra.mxu0 0.0
  %3343 = vmatpush.msra.mxu0 0.0
  %3344 = vmatpush.msra.mxu0 0.0
  %3345 = vmatpush.msra.mxu0 0.0
  %3346 = vmatpush.msra.mxu0 0.0
  %3347 = vmatpush.msra.mxu0 0.0
  %3348 = vmatpush.msra.mxu0 0.0
  %3349 = vmatpush.msra.mxu0 0.0
  %3350 = vmatpush.msra.mxu0 0.0
  %3351 = vmatpush.msra.mxu0 0.0
  %3352 = vmatpush.msra.mxu0 0.0
  %3353 = vmatpush.msra.mxu0 %v3214
  %3354 = vmatpush.msra.mxu0 %v3206
  %3355 = vmatmul.f32.gmra.mxu0 %v3217
  %v3356 = vpop.f32.mrf.mxu0
  %v3357 = vadd.f32 0.0, %v3356
  %3358 = vdwg.mxu0
  %3359 = vmatpush.msra.mxu0 0.0
  %3360 = vmatpush.msra.mxu0 0.0
  %3361 = vmatpush.msra.mxu0 0.0
  %3362 = vmatpush.msra.mxu0 0.0
  %3363 = vmatpush.msra.mxu0 0.0
  %3364 = vmatpush.msra.mxu0 0.0
  %3365 = vmatpush.msra.mxu0 0.0
  %3366 = vmatpush.msra.mxu0 0.0
  %3367 = vmatpush.msra.mxu0 0.0
  %3368 = vmatpush.msra.mxu0 0.0
  %3369 = vmatpush.msra.mxu0 0.0
  %3370 = vmatpush.msra.mxu0 0.0
  %3371 = vmatpush.msra.mxu0 0.0
  %3372 = vmatpush.msra.mxu0 0.0
  %3373 = vmatpush.msra.mxu0 %v3215
  %3374 = vmatpush.msra.mxu0 %v3207
  %3375 = vmatmul.f32.gmra.mxu0 %v3217
  %v3376 = vpop.f32.mrf.mxu0
  %v3377 = vadd.f32 0.0, %v3376
  %3378 = vdwg.mxu0
  %3379 = vst [vmem:[#allocation2] sm:$0x1] %v3237
  %3380 = vst [vmem:[#allocation2 + $0x1] sm:$0x1] %v3257
  %3381 = vst [vmem:[#allocation2 + $0x2] sm:$0x1] %v3277
  %3382 = vst [vmem:[#allocation2 + $0x3] sm:$0x1] %v3297
  %3383 = vst [vmem:[#allocation2 + $0x4] sm:$0x1] %v3317
  %3384 = vst [vmem:[#allocation2 + $0x5] sm:$0x1] %v3337
  %3385 = vst [vmem:[#allocation2 + $0x6] sm:$0x1] %v3357
  %3386 = vst [vmem:[#allocation2 + $0x7] sm:$0x1] %v3377
  %v3387 = vld [vmem:[#allocation2] sm:$0xff]
  %v3388 = vld [vmem:[%s6] sm:$0xff]
  %v3389 = vld [vmem:[%s6 + $0x8] sm:$0xff]
  %v3390 = vld [vmem:[%s6 + $0x10] sm:$0xff]
  %v3391 = vld [vmem:[%s6 + $0x18] sm:$0xff]
  %v3392 = vld [vmem:[%s6 + $0x20] sm:$0xff]
  %v3393 = vld [vmem:[%s6 + $0x28] sm:$0xff]
  %v3394 = vld [vmem:[%s6 + $0x30] sm:$0xff]
  %v3395 = vld [vmem:[%s6 + $0x38] sm:$0xff]
  %v3396 = vld [vmem:[%s6 + $0x40] sm:$0xff]
  %v3397 = vld [vmem:[%s6 + $0x48] sm:$0xff]
  %v3398 = vld [vmem:[%s6 + $0x50] sm:$0xff]
  %v3399 = vld [vmem:[%s6 + $0x58] sm:$0xff]
  %v3400 = vld [vmem:[%s6 + $0x60] sm:$0xff]
  %v3401 = vld [vmem:[%s6 + $0x68] sm:$0xff]
  %v3402 = vld [vmem:[%s6 + $0x70] sm:$0xff]
  %v3403 = vld [vmem:[%s6 + $0x78] sm:$0xff]
  %v3404 = vld [vmem:[%s7] sm:$0x1]
  %v3406 = vperm.slane %v3404, 0
  %3408 = vmatpush.msra.mxu0 %v3403
  %3409 = vmatpush.msra.mxu0 %v3402
  %3410 = vmatpush.msra.mxu0 %v3401
  %3411 = vmatpush.msra.mxu0 %v3400
  %3412 = vmatpush.msra.mxu0 %v3399
  %3413 = vmatpush.msra.mxu0 %v3398
  %3414 = vmatpush.msra.mxu0 %v3397
  %3415 = vmatpush.msra.mxu0 %v3396
  %3416 = vmatpush.msra.mxu0 %v3395
  %3417 = vmatpush.msra.mxu0 %v3394
  %3418 = vmatpush.msra.mxu0 %v3393
  %3419 = vmatpush.msra.mxu0 %v3392
  %3420 = vmatpush.msra.mxu0 %v3391
  %3421 = vmatpush.msra.mxu0 %v3390
  %3422 = vmatpush.msra.mxu0 %v3389
  %3423 = vmatpush.msra.mxu0 %v3388
  %3424 = vmatmul.f32.gmra.mxu0 %v3387
  %v3425 = vpop.f32.mrf.mxu0
  %v3426 = vadd.f32 %v3406, %v3425
  %3427 = vdwg.mxu0
  %vm3428 = vcmask 64512
  %3429 = vst.msk [vmem:[%s10] sm:$0xff] %vm3428, %v3426
  // Predicated region
  $region42: #{cnn_forward.1} parent=0 // pred_check
    _
  $region43: #{cnn_forward.1} parent=0 // pred_check_branch
    %3431 = sbr.rel (0) target = $region45
  $region44: #{cnn_forward.1} parent=0 // pred_region
    _
  $region45: #{cnn_forward.1} parent=0 // pred_fallthru
    _
  // Predicated region
  $region46: #{cnn_forward.1} parent=0 // pred_check
    _
  $region47: #{cnn_forward.1} parent=0 // pred_check_branch
    %3433 = sbr.rel (0) target = $region49
  $region48: #{cnn_forward.1} parent=0 // pred_region
    _
  $region49: #{cnn_forward.1} parent=0 // pred_fallthru
    _

</llo_original>
